<compile_context>
chip_gen: v6e
topology: v6e:2x2x1
jax: 0.10.0
libtpu: 0.0.40
codegen_flags: <defaults>
</compile_context>

<pallas_src>
import jax
import jax.numpy as jnp
from jax import lax
from jax.experimental import pallas as pl
from jax.experimental.pallas import tpu as pltpu

C = 32      # channels fixed by the module (Conv3d(32, 32, ...))
D_IN = 24   # temporal bins: (24+2-3)//2+1 = 12 -> 12 -> 12-12+1 = 1 (squeeze(2))


def _round_up(x, m):
    return (x + m - 1) // m * m


# -----------------------------------------------------------------------------
# Depth-only Conv3d (kernel (K,1,1)) as a dense (D_in*C_in, D_out*C_out) matrix
# for DEPTH-MAJOR flattening (col = d*C + c), so flat_out = flat_in @ M.
# -----------------------------------------------------------------------------
def conv_depth_to_matmul(W, D_in, stride, pad):
    C_out, C_in, K = W.shape
    D_out = (D_in + 2 * pad - K) // stride + 1
    M = jnp.zeros((D_in * C_in, D_out * C_out), dtype=jnp.float32)
    for k in range(K):
        for t_out in range(D_out):
            t_in = stride * t_out - pad + k
            if 0 <= t_in < D_in:
                M = M.at[t_in * C_in:(t_in + 1) * C_in,
                         t_out * C_out:(t_out + 1) * C_out].add(W[:, :, k].T)
    return M, D_out


# -----------------------------------------------------------------------------
# Pallas kernel: fused e2v (VPU/XLU only) -> fused conv1+conv2 -> ReLU -> conv3.
# MXU sees only the two real matmuls (bf16 operands, f32 accumulation).
# -----------------------------------------------------------------------------
def _efas1_kernel(fea_ref, wm_ref, w12_ref, b12_ref, w3_ref, b3_ref, o_ref):
    fea = fea_ref[...]                         # (tm, C)    bf16
    wm = wm_ref[...]                           # (tm, D_IN) bf16

    # Fused e2v, depth-major:  vox[r, d*C + c] = fea[r, c] * wm[r, d]
    # Built with lane-broadcast multiplies + one lane concatenation; this
    # replaces the two former 0/1 selection matmuls (no MXU passes here).
    vox = jnp.concatenate(
        [fea * wm[:, d:d + 1] for d in range(D_IN)], axis=1)  # (tm, C*D_IN) bf16

    # conv1 + conv2 fused into a single precomputed matrix (linear chain).
    h = jnp.dot(vox, w12_ref[...], preferred_element_type=jnp.float32)
    h = jnp.maximum(h + b12_ref[...], 0.0).astype(jnp.bfloat16)   # nn.ReLU(True)

    o = jnp.dot(h, w3_ref[...], preferred_element_type=jnp.float32)
    o_ref[...] = o + b3_ref[...]


def efas1_aggre_pallas(fea_rows, wm_rows, w12m, b12, w3m, b3, tm=512):
    """fea_rows: (R, C) bf16, wm_rows: (R, D_IN) bf16 -> (R, C) f32."""
    R, c_in = fea_rows.shape
    d_in = wm_rows.shape[1]
    c_out = w3m.shape[1]

    # Aim for >=4 grid steps (both v7x TensorCores busy, pipeline overlap),
    # rows kept a multiple of 64 (bf16/f32 sublane friendly), capped at `tm`.
    tm = max(64, min(tm, _round_up(pl.cdiv(R, 4), 64)))
    R_pad = _round_up(R, tm)
    if R_pad != R:
        fea_rows = jnp.pad(fea_rows, ((0, R_pad - R), (0, 0)))
        wm_rows = jnp.pad(wm_rows, ((0, R_pad - R), (0, 0)))

    out = pl.pallas_call(
        _efas1_kernel,
        out_shape=jax.ShapeDtypeStruct((R_pad, c_out), jnp.float32),
        grid_spec=pltpu.PrefetchScalarGridSpec(
            num_scalar_prefetch=0,
            grid=(R_pad // tm,),
            in_specs=[
                pl.BlockSpec((tm, c_in), lambda i: (i, 0)),
                pl.BlockSpec((tm, d_in), lambda i: (i, 0)),
                pl.BlockSpec(w12m.shape, lambda i: (0, 0)),
                pl.BlockSpec(b12.shape, lambda i: (0, 0)),
                pl.BlockSpec(w3m.shape, lambda i: (0, 0)),
                pl.BlockSpec(b3.shape, lambda i: (0, 0)),
            ],
            out_specs=pl.BlockSpec((tm, c_out), lambda i: (i, 0)),
        ),
        compiler_params=pltpu.CompilerParams(
            dimension_semantics=("parallel",),
            vmem_limit_bytes=32 * 1024 * 1024,
        ),
    )(fea_rows, wm_rows, w12m, b12, w3m, b3)
    return out[:R]   # padded rows are non-zero; this slice must stay.


# -----------------------------------------------------------------------------
# TODO(synk): `e2v` is defined outside the provided module; this deterministic
# stand-in (fea * (events*e_ratio + img_ratio) * mask) is what the kernel fuses.
# -----------------------------------------------------------------------------
def e2v(fea, events, e_ratio, img_ratio, mask):
    w = events[:, None, :, :, :] * e_ratio + img_ratio            # (N,1,D,H,W)
    voxel = fea[:, :, None, :, :] * w                             # (N,C,D,H,W)
    return voxel * mask[:, :, None, :, :].astype(voxel.dtype)


# -----------------------------------------------------------------------------
# Module wrapper with deterministic parameter init.
# -----------------------------------------------------------------------------
class EFAS1Atten:
    def __init__(self, key):
        ks = jax.random.split(key, 6)
        # Conv3d(32,32,(3,1,1),(2,1,1),(1,0,0)) / Conv3d(32,32,(3,1,1),1,(1,0,0))
        # / ReLU / Conv3d(32,32,(12,1,1),1,0) — spatial kernel dims are all 1.
        self.w1 = jax.random.normal(ks[0], (C, C, 3), jnp.float32) * 0.05
        self.b1 = jax.random.normal(ks[1], (C,), jnp.float32) * 0.05
        self.w2 = jax.random.normal(ks[2], (C, C, 3), jnp.float32) * 0.05
        self.b2 = jax.random.normal(ks[3], (C,), jnp.float32) * 0.05
        self.w3 = jax.random.normal(ks[4], (C, C, 12), jnp.float32) * 0.05
        self.b3 = jax.random.normal(ks[5], (C,), jnp.float32) * 0.05

        w1m, d1 = conv_depth_to_matmul(self.w1, D_IN, stride=2, pad=1)
        w2m, d2 = conv_depth_to_matmul(self.w2, d1, stride=1, pad=1)
        w3m, d3 = conv_depth_to_matmul(self.w3, d2, stride=1, pad=0)
        assert d3 == 1, "final depth must be 1 for squeeze(2)"
        # Depth-major flattened biases: b[d*C + c] = b[c]  ->  tile (not repeat)
        b1f = jnp.tile(self.b1, d1)[None, :]
        b2f = jnp.tile(self.b2, d2)[None, :]

        # conv1+conv2 fused (linear, no nonlinearity in between).
        self.w12m = (w1m @ w2m).astype(jnp.bfloat16)          # (768, 384)
        self.b12 = (b1f @ w2m + b2f).astype(jnp.float32)      # (1, 384)
        self.w3m = w3m.astype(jnp.bfloat16)                   # (384, 32)
        self.b3f = self.b3[None, :].astype(jnp.float32)       # (1, 32), d3 == 1

    def __call__(self, feas, events, e_ratio, img_ratio, mask):
        L_fea, R_fea = feas
        N, Cc, H, W = L_fea.shape
        M = N * H * W

        def to_rows(x):  # (N, K, H, W) -> (N*H*W, K) ; only narrow arrays
            return jnp.transpose(x, (0, 2, 3, 1)).reshape(M, x.shape[1])

        fea_all = jnp.concatenate([to_rows(L_fea), to_rows(R_fea)], axis=0)
        ev_rows = to_rows(events)                              # (M, 24)
        m_rows = to_rows(mask.astype(jnp.float32))             # (M, 1)

        # Shared event weighting computed once; mask folded per stream
        # (R stream uses ~mask which equals 1 - mask for a {0,1} mask).
        wev = ev_rows * e_ratio + img_ratio
        wm_all = jnp.concatenate([wev * m_rows, wev * (1.0 - m_rows)], axis=0)

        out = efas1_aggre_pallas(
            fea_all.astype(jnp.bfloat16), wm_all.astype(jnp.bfloat16),
            self.w12m, self.b12, self.w3m, self.b3f)

        out = out.reshape(2, N, H, W, Cc)
        out = jnp.transpose(out, (0, 1, 4, 2, 3))              # (2, N, C, H, W)
        return out[0], out[1]


# -----------------------------------------------------------------------------
# Pure-JAX f32 reference of `aggre` (lax 3D convs) for a sanity check.
# -----------------------------------------------------------------------------
def aggre_ref(voxel, w1, b1, w2, b2, w3, b3):
    dn = ("NCDHW", "OIDHW", "NCDHW")
    x = lax.conv_general_dilated(voxel, w1[..., None, None], (2, 1, 1),
                                 [(1, 1), (0, 0), (0, 0)], dimension_numbers=dn)
    x = x + b1[None, :, None, None, None]
    x = lax.conv_general_dilated(x, w2[..., None, None], (1, 1, 1),
                                 [(1, 1), (0, 0), (0, 0)], dimension_numbers=dn)
    x = x + b2[None, :, None, None, None]
    x = jnp.maximum(x, 0.0)
    x = lax.conv_general_dilated(x, w3[..., None, None], (1, 1, 1),
                                 [(0, 0), (0, 0), (0, 0)], dimension_numbers=dn)
    x = x + b3[None, :, None, None, None]
    return jnp.squeeze(x, axis=2)


def _rel_max_err(a, b):
    return float(jnp.max(jnp.abs(a - b)) / (jnp.max(jnp.abs(b)) + 1e-8))


if __name__ == "__main__":
    key = jax.random.PRNGKey(0)
    kf1, kf2, ke, km, kp = jax.random.split(key, 5)
    N, H, W = 2, 8, 8

    L_fea = jax.random.normal(kf1, (N, C, H, W), jnp.float32)
    R_fea = jax.random.normal(kf2, (N, C, H, W), jnp.float32)
    events = jax.random.uniform(ke, (N, D_IN, H, W), jnp.float32)
    mask = jax.random.bernoulli(km, 0.5, (N, 1, H, W))
    e_ratio = jnp.float32(0.7)
    img_ratio = jnp.float32(0.3)

    model = EFAS1Atten(kp)
    fwd = jax.jit(model.__call__)
    L_flow, R_flow = fwd((L_fea, R_fea), events, e_ratio, img_ratio, mask)
    jax.block_until_ready((L_flow, R_flow))

    assert L_flow.shape == (N, C, H, W) and R_flow.shape == (N, C, H, W)

    # Sanity-check against the f32 lax-conv reference (bf16 operands with f32
    # accumulation -> small relative error; check against output magnitude).
    L_voxel = e2v(L_fea, events, e_ratio, img_ratio, mask)
    R_voxel = e2v(R_fea, events, e_ratio, img_ratio, ~mask)
    L_ref = aggre_ref(L_voxel, model.w1, model.b1, model.w2, model.b2,
                      model.w3, model.b3)
    R_ref = aggre_ref(R_voxel, model.w1, model.b1, model.w2, model.b2,
                      model.w3, model.b3)
    assert _rel_max_err(L_flow, L_ref) < 2e-2, _rel_max_err(L_flow, L_ref)
    assert _rel_max_err(R_flow, R_ref) < 2e-2, _rel_max_err(R_flow, R_ref)

    print("KERNEL_OK")
</pallas_src>

<mosaic_0001>
module attributes {stable_mosaic.version = 11 : i64} {
  func.func @_efas1_kernel(%arg0: i32, %arg1: memref<64x32xbf16, #tpu.memory_space<vmem>>, %arg2: memref<64x24xbf16, #tpu.memory_space<vmem>>, %arg3: memref<768x384xbf16, #tpu.memory_space<vmem>>, %arg4: memref<1x384xf32, #tpu.memory_space<vmem>>, %arg5: memref<384x32xbf16, #tpu.memory_space<vmem>>, %arg6: memref<1x32xf32, #tpu.memory_space<vmem>>, %arg7: memref<64x32xf32, #tpu.memory_space<vmem>>) attributes {dimension_semantics = [#tpu.dimension_semantics<parallel>], iteration_bounds = array<i64: 4>, scalar_prefetch = 0 : i64, scratch_operands = 0 : i64, tpu.core_type = #tpu.core_type<tc>, window_params = [{transform_indices = @transform_0, window_bounds = array<i64: 64, 32>}, {transform_indices = @transform_1, window_bounds = array<i64: 64, 24>}, {pipeline_mode = #tpu.pipeline_mode<synchronous>, transform_indices = @transform_2, window_bounds = array<i64: 768, 384>}, {pipeline_mode = #tpu.pipeline_mode<synchronous>, transform_indices = @transform_3, window_bounds = array<i64: 1, 384>}, {pipeline_mode = #tpu.pipeline_mode<synchronous>, transform_indices = @transform_4, window_bounds = array<i64: 384, 32>}, {pipeline_mode = #tpu.pipeline_mode<synchronous>, transform_indices = @transform_5, window_bounds = array<i64: 1, 32>}, {transform_indices = @transform_6, window_bounds = array<i64: 64, 32>}]} {
    %c0 = arith.constant 0 : index
    %c0_0 = arith.constant 0 : index
    %0 = vector.load %arg1[%c0, %c0_0] : memref<64x32xbf16, #tpu.memory_space<vmem>>, vector<64x32xbf16>
    %c0_1 = arith.constant 0 : index
    %c0_2 = arith.constant 0 : index
    %1 = vector.load %arg2[%c0_1, %c0_2] : memref<64x24xbf16, #tpu.memory_space<vmem>>, vector<64x24xbf16>
    %2 = vector.extract_strided_slice %1 {offsets = [0, 0], sizes = [64, 1], strides = [1, 1]} : vector<64x24xbf16> to vector<64x1xbf16>
    %3 = vector.broadcast %2 : vector<64x1xbf16> to vector<64x32xbf16>
    %4 = arith.mulf %0, %3 : vector<64x32xbf16>
    %5 = vector.extract_strided_slice %1 {offsets = [0, 1], sizes = [64, 1], strides = [1, 1]} : vector<64x24xbf16> to vector<64x1xbf16>
    %6 = vector.broadcast %5 : vector<64x1xbf16> to vector<64x32xbf16>
    %7 = arith.mulf %0, %6 : vector<64x32xbf16>
    %8 = vector.extract_strided_slice %1 {offsets = [0, 2], sizes = [64, 1], strides = [1, 1]} : vector<64x24xbf16> to vector<64x1xbf16>
    %9 = vector.broadcast %8 : vector<64x1xbf16> to vector<64x32xbf16>
    %10 = arith.mulf %0, %9 : vector<64x32xbf16>
    %11 = vector.extract_strided_slice %1 {offsets = [0, 3], sizes = [64, 1], strides = [1, 1]} : vector<64x24xbf16> to vector<64x1xbf16>
    %12 = vector.broadcast %11 : vector<64x1xbf16> to vector<64x32xbf16>
    %13 = arith.mulf %0, %12 : vector<64x32xbf16>
    %14 = vector.extract_strided_slice %1 {offsets = [0, 4], sizes = [64, 1], strides = [1, 1]} : vector<64x24xbf16> to vector<64x1xbf16>
    %15 = vector.broadcast %14 : vector<64x1xbf16> to vector<64x32xbf16>
    %16 = arith.mulf %0, %15 : vector<64x32xbf16>
    %17 = vector.extract_strided_slice %1 {offsets = [0, 5], sizes = [64, 1], strides = [1, 1]} : vector<64x24xbf16> to vector<64x1xbf16>
    %18 = vector.broadcast %17 : vector<64x1xbf16> to vector<64x32xbf16>
    %19 = arith.mulf %0, %18 : vector<64x32xbf16>
    %20 = vector.extract_strided_slice %1 {offsets = [0, 6], sizes = [64, 1], strides = [1, 1]} : vector<64x24xbf16> to vector<64x1xbf16>
    %21 = vector.broadcast %20 : vector<64x1xbf16> to vector<64x32xbf16>
    %22 = arith.mulf %0, %21 : vector<64x32xbf16>
    %23 = vector.extract_strided_slice %1 {offsets = [0, 7], sizes = [64, 1], strides = [1, 1]} : vector<64x24xbf16> to vector<64x1xbf16>
    %24 = vector.broadcast %23 : vector<64x1xbf16> to vector<64x32xbf16>
    %25 = arith.mulf %0, %24 : vector<64x32xbf16>
    %26 = vector.extract_strided_slice %1 {offsets = [0, 8], sizes = [64, 1], strides = [1, 1]} : vector<64x24xbf16> to vector<64x1xbf16>
    %27 = vector.broadcast %26 : vector<64x1xbf16> to vector<64x32xbf16>
    %28 = arith.mulf %0, %27 : vector<64x32xbf16>
    %29 = vector.extract_strided_slice %1 {offsets = [0, 9], sizes = [64, 1], strides = [1, 1]} : vector<64x24xbf16> to vector<64x1xbf16>
    %30 = vector.broadcast %29 : vector<64x1xbf16> to vector<64x32xbf16>
    %31 = arith.mulf %0, %30 : vector<64x32xbf16>
    %32 = vector.extract_strided_slice %1 {offsets = [0, 10], sizes = [64, 1], strides = [1, 1]} : vector<64x24xbf16> to vector<64x1xbf16>
    %33 = vector.broadcast %32 : vector<64x1xbf16> to vector<64x32xbf16>
    %34 = arith.mulf %0, %33 : vector<64x32xbf16>
    %35 = vector.extract_strided_slice %1 {offsets = [0, 11], sizes = [64, 1], strides = [1, 1]} : vector<64x24xbf16> to vector<64x1xbf16>
    %36 = vector.broadcast %35 : vector<64x1xbf16> to vector<64x32xbf16>
    %37 = arith.mulf %0, %36 : vector<64x32xbf16>
    %38 = vector.extract_strided_slice %1 {offsets = [0, 12], sizes = [64, 1], strides = [1, 1]} : vector<64x24xbf16> to vector<64x1xbf16>
    %39 = vector.broadcast %38 : vector<64x1xbf16> to vector<64x32xbf16>
    %40 = arith.mulf %0, %39 : vector<64x32xbf16>
    %41 = vector.extract_strided_slice %1 {offsets = [0, 13], sizes = [64, 1], strides = [1, 1]} : vector<64x24xbf16> to vector<64x1xbf16>
    %42 = vector.broadcast %41 : vector<64x1xbf16> to vector<64x32xbf16>
    %43 = arith.mulf %0, %42 : vector<64x32xbf16>
    %44 = vector.extract_strided_slice %1 {offsets = [0, 14], sizes = [64, 1], strides = [1, 1]} : vector<64x24xbf16> to vector<64x1xbf16>
    %45 = vector.broadcast %44 : vector<64x1xbf16> to vector<64x32xbf16>
    %46 = arith.mulf %0, %45 : vector<64x32xbf16>
    %47 = vector.extract_strided_slice %1 {offsets = [0, 15], sizes = [64, 1], strides = [1, 1]} : vector<64x24xbf16> to vector<64x1xbf16>
    %48 = vector.broadcast %47 : vector<64x1xbf16> to vector<64x32xbf16>
    %49 = arith.mulf %0, %48 : vector<64x32xbf16>
    %50 = vector.extract_strided_slice %1 {offsets = [0, 16], sizes = [64, 1], strides = [1, 1]} : vector<64x24xbf16> to vector<64x1xbf16>
    %51 = vector.broadcast %50 : vector<64x1xbf16> to vector<64x32xbf16>
    %52 = arith.mulf %0, %51 : vector<64x32xbf16>
    %53 = vector.extract_strided_slice %1 {offsets = [0, 17], sizes = [64, 1], strides = [1, 1]} : vector<64x24xbf16> to vector<64x1xbf16>
    %54 = vector.broadcast %53 : vector<64x1xbf16> to vector<64x32xbf16>
    %55 = arith.mulf %0, %54 : vector<64x32xbf16>
    %56 = vector.extract_strided_slice %1 {offsets = [0, 18], sizes = [64, 1], strides = [1, 1]} : vector<64x24xbf16> to vector<64x1xbf16>
    %57 = vector.broadcast %56 : vector<64x1xbf16> to vector<64x32xbf16>
    %58 = arith.mulf %0, %57 : vector<64x32xbf16>
    %59 = vector.extract_strided_slice %1 {offsets = [0, 19], sizes = [64, 1], strides = [1, 1]} : vector<64x24xbf16> to vector<64x1xbf16>
    %60 = vector.broadcast %59 : vector<64x1xbf16> to vector<64x32xbf16>
    %61 = arith.mulf %0, %60 : vector<64x32xbf16>
    %62 = vector.extract_strided_slice %1 {offsets = [0, 20], sizes = [64, 1], strides = [1, 1]} : vector<64x24xbf16> to vector<64x1xbf16>
    %63 = vector.broadcast %62 : vector<64x1xbf16> to vector<64x32xbf16>
    %64 = arith.mulf %0, %63 : vector<64x32xbf16>
    %65 = vector.extract_strided_slice %1 {offsets = [0, 21], sizes = [64, 1], strides = [1, 1]} : vector<64x24xbf16> to vector<64x1xbf16>
    %66 = vector.broadcast %65 : vector<64x1xbf16> to vector<64x32xbf16>
    %67 = arith.mulf %0, %66 : vector<64x32xbf16>
    %68 = vector.extract_strided_slice %1 {offsets = [0, 22], sizes = [64, 1], strides = [1, 1]} : vector<64x24xbf16> to vector<64x1xbf16>
    %69 = vector.broadcast %68 : vector<64x1xbf16> to vector<64x32xbf16>
    %70 = arith.mulf %0, %69 : vector<64x32xbf16>
    %71 = vector.extract_strided_slice %1 {offsets = [0, 23], sizes = [64, 1], strides = [1, 1]} : vector<64x24xbf16> to vector<64x1xbf16>
    %72 = vector.broadcast %71 : vector<64x1xbf16> to vector<64x32xbf16>
    %73 = arith.mulf %0, %72 : vector<64x32xbf16>
    %74 = tpu.concatenate %4, %7, %10, %13, %16, %19, %22, %25, %28, %31, %34, %37, %40, %43, %46, %49 in 1 : vector<64x32xbf16>, vector<64x32xbf16>, vector<64x32xbf16>, vector<64x32xbf16>, vector<64x32xbf16>, vector<64x32xbf16>, vector<64x32xbf16>, vector<64x32xbf16>, vector<64x32xbf16>, vector<64x32xbf16>, vector<64x32xbf16>, vector<64x32xbf16>, vector<64x32xbf16>, vector<64x32xbf16>, vector<64x32xbf16>, vector<64x32xbf16> -> vector<64x512xbf16>
    %75 = tpu.concatenate %52, %55, %58, %61, %64, %67, %70, %73 in 1 : vector<64x32xbf16>, vector<64x32xbf16>, vector<64x32xbf16>, vector<64x32xbf16>, vector<64x32xbf16>, vector<64x32xbf16>, vector<64x32xbf16>, vector<64x32xbf16> -> vector<64x256xbf16>
    %76 = tpu.concatenate %74, %75 in 1 : vector<64x512xbf16>, vector<64x256xbf16> -> vector<64x768xbf16>
    %c0_3 = arith.constant 0 : index
    %c0_4 = arith.constant 0 : index
    %77 = vector.load %arg3[%c0_3, %c0_4] : memref<768x384xbf16, #tpu.memory_space<vmem>>, vector<768x384xbf16>
    %cst = arith.constant dense<0.000000e+00> : vector<64x384xf32>
    %78 = tpu.matmul %76, %77, %cst {dimension_numbers = #tpu.dot_dimension_numbers<[1], [0], [0], [1], [0, 0, 1, 1], [], []>} : vector<64x768xbf16>, vector<768x384xbf16>, vector<64x384xf32> -> vector<64x384xf32>
    %c0_5 = arith.constant 0 : index
    %c0_6 = arith.constant 0 : index
    %79 = vector.load %arg4[%c0_5, %c0_6] : memref<1x384xf32, #tpu.memory_space<vmem>>, vector<1x384xf32>
    %80 = vector.broadcast %79 : vector<1x384xf32> to vector<64x384xf32>
    %81 = arith.addf %78, %80 : vector<64x384xf32>
    %cst_7 = arith.constant 0.000000e+00 : f32
    %82 = vector.broadcast %cst_7 : f32 to vector<64x384xf32>
    %83 = arith.maximumf %81, %82 : vector<64x384xf32>
    %84 = arith.truncf %83 : vector<64x384xf32> to vector<64x384xbf16>
    %c0_8 = arith.constant 0 : index
    %c0_9 = arith.constant 0 : index
    %85 = vector.load %arg5[%c0_8, %c0_9] : memref<384x32xbf16, #tpu.memory_space<vmem>>, vector<384x32xbf16>
    %cst_10 = arith.constant dense<0.000000e+00> : vector<64x32xf32>
    %86 = tpu.matmul %84, %85, %cst_10 {dimension_numbers = #tpu.dot_dimension_numbers<[1], [0], [0], [1], [0, 0, 1, 1], [], []>} : vector<64x384xbf16>, vector<384x32xbf16>, vector<64x32xf32> -> vector<64x32xf32>
    %c0_11 = arith.constant 0 : index
    %c0_12 = arith.constant 0 : index
    %87 = vector.load %arg6[%c0_11, %c0_12] : memref<1x32xf32, #tpu.memory_space<vmem>>, vector<1x32xf32>
    %88 = vector.broadcast %87 : vector<1x32xf32> to vector<64x32xf32>
    %89 = arith.addf %86, %88 : vector<64x32xf32>
    %c0_13 = arith.constant 0 : index
    %c0_14 = arith.constant 0 : index
    %90 = vector.load %arg7[%c0_13, %c0_14] : memref<64x32xf32, #tpu.memory_space<vmem>>, vector<64x32xf32>
    tpu.vector_store %arg7[%c0_13, %c0_14], %89 {strides = array<i32>} : memref<64x32xf32, #tpu.memory_space<vmem>>, vector<64x32xf32>,
    return
  }
  func.func @transform_0(%arg0: i32) -> (i32, i32) {
    %c0_i32 = arith.constant 0 : i32
    %c0_i32_0 = arith.constant 0 : i32
    return %arg0, %c0_i32 : i32, i32
  }
  func.func @transform_1(%arg0: i32) -> (i32, i32) {
    %c0_i32 = arith.constant 0 : i32
    %c0_i32_0 = arith.constant 0 : i32
    return %arg0, %c0_i32 : i32, i32
  }
  func.func @transform_2(%arg0: i32) -> (i32, i32) {
    %c0_i32 = arith.constant 0 : i32
    %c0_i32_0 = arith.constant 0 : i32
    %c0_i32_1 = arith.constant 0 : i32
    return %c0_i32, %c0_i32_0 : i32, i32
  }
  func.func @transform_3(%arg0: i32) -> (i32, i32) {
    %c0_i32 = arith.constant 0 : i32
    %c0_i32_0 = arith.constant 0 : i32
    %c0_i32_1 = arith.constant 0 : i32
    return %c0_i32, %c0_i32_0 : i32, i32
  }
  func.func @transform_4(%arg0: i32) -> (i32, i32) {
    %c0_i32 = arith.constant 0 : i32
    %c0_i32_0 = arith.constant 0 : i32
    %c0_i32_1 = arith.constant 0 : i32
    return %c0_i32, %c0_i32_0 : i32, i32
  }
  func.func @transform_5(%arg0: i32) -> (i32, i32) {
    %c0_i32 = arith.constant 0 : i32
    %c0_i32_0 = arith.constant 0 : i32
    %c0_i32_1 = arith.constant 0 : i32
    return %c0_i32, %c0_i32_0 : i32, i32
  }
  func.func @transform_6(%arg0: i32) -> (i32, i32) {
    %c0_i32 = arith.constant 0 : i32
    %c0_i32_0 = arith.constant 0 : i32
    return %arg0, %c0_i32 : i32, i32
  }
}

</mosaic_0001>

<llo_original>
// kernel: a_call__.1
$region0: #{a_call__.1}
  #allocation0 [shape = 'u32[]', space=smem, size = 0x4, offset = 0x4, fixed_abs, tag = 'smem constant byte address 0x4 - core index']
  #allocation1 [shape = 'u32[144,128]{1,0:T(1,128)}', space=vmem, size = 0x12000, scoped, tag = 'internal scratch']
  %s0 = inlined_call_operand.vmem [shape: bf16[256,32], index: 0, kind: input, shape index: {}]
  %s1 = inlined_call_operand.vmem [shape: bf16[256,24], index: 1, kind: input, shape index: {}]
  %s2 = inlined_call_operand.vmem [shape: bf16[768,384], index: 2, kind: input, shape index: {}]
  %s3 = inlined_call_operand.vmem [shape: f32[1,384], index: 3, kind: input, shape index: {}]
  %s4 = inlined_call_operand.vmem [shape: bf16[384,32], index: 4, kind: input, shape index: {}]
  %s5 = inlined_call_operand.vmem [shape: f32[1,32], index: 5, kind: input, shape index: {}]
  %s6 = inlined_call_operand.vmem [shape: f32[256,32], index: 6, kind: output, shape index: {}]
  %s7 = sld [smem:[#allocation0]]
  $region57: #{a_call__.1} parent=0
    _
  %s9 = ssub.s32 1, %s7
  %s10 = scalar_select 0, %s9, %s7
  loop: start=0, step=1, limit=6
  $region2: #{a_call__.1} parent=0 // loop_pre_header
    _
  $region3: #{a_call__.1} parent=0 // loop_header
    %s12 = sphi 0, %s16
    %p13 = scmp.ge.s32.totalorder %s12, 6
    %s22 = sphi 0, %s24
    %s25 = sphi 0, %s22
    %s26 = sphi 0, %s25
    %s42 = sphi 0, %s26
    %s48 = sphi 0, %s50
    %s51 = sphi 0, %s48
    %s52 = sphi 0, %s51
    %s68 = sphi 0, %s52
    %s72 = sphi 0, %s72
    %s74 = sphi 0, %s72
    %s75 = sphi 0, %s74
    %s89 = sphi 0, %s75
    %s93 = sphi 0, %s93
    %s95 = sphi 0, %s93
    %s96 = sphi 0, %s95
    %s110 = sphi 0, %s96
    %s114 = sphi 0, %s114
    %s116 = sphi 0, %s114
    %s117 = sphi 0, %s116
    %s131 = sphi 0, %s117
    %s135 = sphi 0, %s135
    %s137 = sphi 0, %s135
    %s138 = sphi 0, %s137
    %s152 = sphi 0, %s138
    %s158 = sphi 0, %s160
    %s161 = sphi 0, %s158
    %s162 = sphi 0, %s161
    %s178 = sphi 0, %s162
  $region4: #{a_call__.1} parent=0 // loop_header_branch
    %15 = sbr.rel (%p13) target = $region8
  $region5: #{a_call__.1} parent=0 // loop_body
    %s17 = ssub.s32 %s12, 1
    %s18 = ssub.s32 %s12, 2
    %s19 = sadd.s32 %s12, 1
    %s20 = ssub.s32 %s12, %s19
    %p21 = scmp.eq.s32.totalorder %s20, 0
    %s23 = sadd.s32 %s22, 1
    %s24 = scalar_select %p21, %s22, %s23
    %p27 = pneg %p21
    %p28 = scmp.eq.s32.totalorder %s12, 3
    %p29 = por %p27, %p28
    %p30 = scmp.ne.s32.totalorder %s22, %s25
    %p31 = scmp.eq.s32.totalorder %s12, 0
    %p32 = por %p30, %p31
    %p33 = scmp.ne.s32.totalorder %s22, %s25
    %p34 = scmp.eq.s32.totalorder %s17, 3
    %p35 = por %p33, %p34
    %p36 = scmp.ne.s32.totalorder %s25, %s26
    %p37 = scmp.eq.s32.totalorder %s17, 0
    %p38 = por %p36, %p37
    %p39 = scmp.ne.s32.totalorder %s25, %s26
    %p40 = scmp.eq.s32.totalorder %s18, 3
    %p41 = por %p39, %p40
    %p43 = scmp.ne.s32.totalorder %s26, %s42
    %p44 = scmp.eq.s32.totalorder %s18, 0
    %p45 = por %p43, %p44
    %s46 = ssub.s32 %s12, %s19
    %p47 = scmp.eq.s32.totalorder %s46, 0
    %s49 = sadd.s32 %s48, 1
    %s50 = scalar_select %p47, %s48, %s49
    %p53 = pneg %p47
    %p54 = scmp.eq.s32.totalorder %s12, 3
    %p55 = por %p53, %p54
    %p56 = scmp.ne.s32.totalorder %s48, %s51
    %p57 = scmp.eq.s32.totalorder %s12, 0
    %p58 = por %p56, %p57
    %p59 = scmp.ne.s32.totalorder %s48, %s51
    %p60 = scmp.eq.s32.totalorder %s17, 3
    %p61 = por %p59, %p60
    %p62 = scmp.ne.s32.totalorder %s51, %s52
    %p63 = scmp.eq.s32.totalorder %s17, 0
    %p64 = por %p62, %p63
    %p65 = scmp.ne.s32.totalorder %s51, %s52
    %p66 = scmp.eq.s32.totalorder %s18, 3
    %p67 = por %p65, %p66
    %p69 = scmp.ne.s32.totalorder %s52, %s68
    %p70 = scmp.eq.s32.totalorder %s18, 0
    %p71 = por %p69, %p70
    %s73 = sadd.s32 %s72, 1
    %p76 = scmp.eq.s32.totalorder %s12, 3
    %p77 = scmp.ne.s32.totalorder %s72, %s74
    %p78 = scmp.eq.s32.totalorder %s12, 0
    %p79 = por %p77, %p78
    %p80 = scmp.ne.s32.totalorder %s72, %s74
    %p81 = scmp.eq.s32.totalorder %s17, 3
    %p82 = por %p80, %p81
    %p83 = scmp.ne.s32.totalorder %s74, %s75
    %p84 = scmp.eq.s32.totalorder %s17, 0
    %p85 = por %p83, %p84
    %p86 = scmp.ne.s32.totalorder %s74, %s75
    %p87 = scmp.eq.s32.totalorder %s18, 3
    %p88 = por %p86, %p87
    %p90 = scmp.ne.s32.totalorder %s75, %s89
    %p91 = scmp.eq.s32.totalorder %s18, 0
    %p92 = por %p90, %p91
    %s94 = sadd.s32 %s93, 1
    %p97 = scmp.eq.s32.totalorder %s12, 3
    %p98 = scmp.ne.s32.totalorder %s93, %s95
    %p99 = scmp.eq.s32.totalorder %s12, 0
    %p100 = por %p98, %p99
    %p101 = scmp.ne.s32.totalorder %s93, %s95
    %p102 = scmp.eq.s32.totalorder %s17, 3
    %p103 = por %p101, %p102
    %p104 = scmp.ne.s32.totalorder %s95, %s96
    %p105 = scmp.eq.s32.totalorder %s17, 0
    %p106 = por %p104, %p105
    %p107 = scmp.ne.s32.totalorder %s95, %s96
    %p108 = scmp.eq.s32.totalorder %s18, 3
    %p109 = por %p107, %p108
    %p111 = scmp.ne.s32.totalorder %s96, %s110
    %p112 = scmp.eq.s32.totalorder %s18, 0
    %p113 = por %p111, %p112
    %s115 = sadd.s32 %s114, 1
    %p118 = scmp.eq.s32.totalorder %s12, 3
    %p119 = scmp.ne.s32.totalorder %s114, %s116
    %p120 = scmp.eq.s32.totalorder %s12, 0
    %p121 = por %p119, %p120
    %p122 = scmp.ne.s32.totalorder %s114, %s116
    %p123 = scmp.eq.s32.totalorder %s17, 3
    %p124 = por %p122, %p123
    %p125 = scmp.ne.s32.totalorder %s116, %s117
    %p126 = scmp.eq.s32.totalorder %s17, 0
    %p127 = por %p125, %p126
    %p128 = scmp.ne.s32.totalorder %s116, %s117
    %p129 = scmp.eq.s32.totalorder %s18, 3
    %p130 = por %p128, %p129
    %p132 = scmp.ne.s32.totalorder %s117, %s131
    %p133 = scmp.eq.s32.totalorder %s18, 0
    %p134 = por %p132, %p133
    %s136 = sadd.s32 %s135, 1
    %p139 = scmp.eq.s32.totalorder %s12, 3
    %p140 = scmp.ne.s32.totalorder %s135, %s137
    %p141 = scmp.eq.s32.totalorder %s12, 0
    %p142 = por %p140, %p141
    %p143 = scmp.ne.s32.totalorder %s135, %s137
    %p144 = scmp.eq.s32.totalorder %s17, 3
    %p145 = por %p143, %p144
    %p146 = scmp.ne.s32.totalorder %s137, %s138
    %p147 = scmp.eq.s32.totalorder %s17, 0
    %p148 = por %p146, %p147
    %p149 = scmp.ne.s32.totalorder %s137, %s138
    %p150 = scmp.eq.s32.totalorder %s18, 3
    %p151 = por %p149, %p150
    %p153 = scmp.ne.s32.totalorder %s138, %s152
    %p154 = scmp.eq.s32.totalorder %s18, 0
    %p155 = por %p153, %p154
    %s156 = ssub.s32 %s12, %s19
    %p157 = scmp.eq.s32.totalorder %s156, 0
    %s159 = sadd.s32 %s158, 1
    %s160 = scalar_select %p157, %s158, %s159
    %p163 = pneg %p157
    %p164 = scmp.eq.s32.totalorder %s12, 3
    %p165 = por %p163, %p164
    %p166 = scmp.ne.s32.totalorder %s158, %s161
    %p167 = scmp.eq.s32.totalorder %s12, 0
    %p168 = por %p166, %p167
    %p169 = scmp.ne.s32.totalorder %s158, %s161
    %p170 = scmp.eq.s32.totalorder %s17, 3
    %p171 = por %p169, %p170
    %p172 = scmp.ne.s32.totalorder %s161, %s162
    %p173 = scmp.eq.s32.totalorder %s17, 0
    %p174 = por %p172, %p173
    %p175 = scmp.ne.s32.totalorder %s161, %s162
    %p176 = scmp.eq.s32.totalorder %s18, 3
    %p177 = por %p175, %p176
    %p179 = scmp.ne.s32.totalorder %s162, %s178
    %p180 = scmp.eq.s32.totalorder %s18, 0
    %p181 = por %p179, %p180
    %p182 = scmp.le.s32.totalorder 1, %s12
    %p183 = scmp.lt.s32.totalorder %s12, 5
    %p184 = pnand %p182, %p183
    %p185 = pneg %p184
    // Predicated region
    $region9: #{a_call__.1} parent=5 // pred_check
      _
    $region10: #{a_call__.1} parent=5 // pred_check_branch
      %187 = sbr.rel (%p184) target = $region12
    $region11: #{a_call__.1} parent=5 // pred_region
      %s188 = ssub.s32 %s12, 1
      // Predicated region
      $region13: #{a_call__.1} parent=11 // pred_check
        %p189 = pneg %p85
      $region14: #{a_call__.1} parent=11 // pred_check_branch
        %191 = sbr.rel (%p189) target = $region16
      $region15: #{a_call__.1} parent=11 // pred_region
        _
      $region16: #{a_call__.1} parent=11 // pred_fallthru
        _
      // Predicated region
      $region17: #{a_call__.1} parent=11 // pred_check
        %p192 = pneg %p106
      $region18: #{a_call__.1} parent=11 // pred_check_branch
        %194 = sbr.rel (%p192) target = $region20
      $region19: #{a_call__.1} parent=11 // pred_region
        _
      $region20: #{a_call__.1} parent=11 // pred_fallthru
        _
      // Predicated region
      $region21: #{a_call__.1} parent=11 // pred_check
        %p195 = pneg %p127
      $region22: #{a_call__.1} parent=11 // pred_check_branch
        %197 = sbr.rel (%p195) target = $region24
      $region23: #{a_call__.1} parent=11 // pred_region
        _
      $region24: #{a_call__.1} parent=11 // pred_fallthru
        _
      // Predicated region
      $region25: #{a_call__.1} parent=11 // pred_check
        %p198 = pneg %p148
      $region26: #{a_call__.1} parent=11 // pred_check_branch
        %200 = sbr.rel (%p198) target = $region28
      $region27: #{a_call__.1} parent=11 // pred_region
        _
      $region28: #{a_call__.1} parent=11 // pred_fallthru
        _
    $region12: #{a_call__.1} parent=5 // pred_fallthru
      _
    %p201 = scmp.lt.s32.totalorder %s12, 4
    // Predicated region
    $region29: #{a_call__.1} parent=5 // pred_check
      %p202 = pneg %p201
    $region30: #{a_call__.1} parent=5 // pred_check_branch
      %204 = sbr.rel (%p202) target = $region32
    $region31: #{a_call__.1} parent=5 // pred_region
      // Predicated region
      $region33: #{a_call__.1} parent=31 // pred_check
        %p205 = pneg %p32
      $region34: #{a_call__.1} parent=31 // pred_check_branch
        %207 = sbr.rel (%p205) target = $region36
      $region35: #{a_call__.1} parent=31 // pred_region
        %s208 = smul.u32 8, %s12
        %p209 = scmp.lt.s32.totalorder %s208, 31
        %s210 = scalar_select %p209, %s208, 31
        %s211 = smul.addr %s210, 4
        %s212 = scalar_lea.vmem %s0, %s211
        %s213 = smul.u32 8, %s12
      $region36: #{a_call__.1} parent=31 // pred_fallthru
        _
      // Predicated region
      $region37: #{a_call__.1} parent=31 // pred_check
        %p214 = pneg %p58
      $region38: #{a_call__.1} parent=31 // pred_check_branch
        %216 = sbr.rel (%p214) target = $region40
      $region39: #{a_call__.1} parent=31 // pred_region
        %s217 = smul.u32 8, %s12
        %p218 = scmp.lt.s32.totalorder %s217, 31
        %s219 = scalar_select %p218, %s217, 31
        %s220 = smul.addr %s219, 4
        %s221 = scalar_lea.vmem %s1, %s220
        %s222 = smul.u32 8, %s12
      $region40: #{a_call__.1} parent=31 // pred_fallthru
        _
    $region32: #{a_call__.1} parent=5 // pred_fallthru
      _
    %p223 = scmp.le.s32.totalorder 1, %s12
    %p224 = scmp.lt.s32.totalorder %s12, 5
    %p225 = pnand %p223, %p224
    %p226 = pneg %p225
    // Predicated region
    $region41: #{a_call__.1} parent=5 // pred_check
      _
    $region42: #{a_call__.1} parent=5 // pred_check_branch
      %228 = sbr.rel (%p225) target = $region44
    $region43: #{a_call__.1} parent=5 // pred_region
      %s229 = ssub.s32 %s12, 1
      %s230 = smul.u32 8, %s17
      %p231 = scmp.lt.s32.totalorder %s230, 31
      %s232 = scalar_select %p231, %s230, 31
      %s233 = smul.addr %s232, 4
      %s234 = scalar_lea.vmem %s0, %s233
      %p235 = pneg %p38
      %p236 = pneg %p35
      %s237 = smul.u32 8, %s17
      %p238 = scmp.lt.s32.totalorder %s237, 31
      %s239 = scalar_select %p238, %s237, 31
      %s240 = smul.addr %s239, 4
      %s241 = scalar_lea.vmem %s1, %s240
      %p242 = pneg %p64
      %p243 = pneg %p61
      %p244 = pneg %p85
      %p245 = pneg %p82
      %p246 = pneg %p106
      %p247 = pneg %p103
      %p248 = pneg %p127
      %p249 = pneg %p124
      %p250 = pneg %p148
      %p251 = pneg %p145
      %p252 = pneg %p174
      %p253 = pneg %p171
      %s254 = smul.u32 8, %s17
      %p255 = scmp.lt.s32.totalorder %s254, 31
      %s256 = scalar_select %p255, %s254, 31
      %s257 = smul.addr %s256, 8
      %s258 = scalar_lea.vmem %s6, %s257
      %s259 = smul.u32 8, %s17
      %p260 = scmp.lt.s32.totalorder %s259, 31
      %s261 = scalar_select %p260, %s259, 31
      %s262 = smul.addr %s261, 4
      %s263 = scalar_lea.vmem %s0, %s262
      %s264 = smul.u32 8, %s17
      %s265 = smul.u32 8, %s17
      %p266 = scmp.lt.s32.totalorder %s265, 31
      %s267 = scalar_select %p266, %s265, 31
      %s268 = smul.addr %s267, 4
      %s269 = scalar_lea.vmem %s1, %s268
      %s270 = smul.u32 8, %s17
      %s271 = smul.u32 8, %s17
      %p272 = scmp.lt.s32.totalorder %s271, 31
      %s273 = scalar_select %p272, %s271, 31
      %s274 = smul.addr %s273, 8
      %s275 = scalar_lea.vmem %s6, %s274
      %s276 = smul.u32 8, %s17
      %v278 = vld [vmem:[%s263] sm:$0xf]
      %v279 = vld [vmem:[%s263 + $0x4] sm:$0xf]
      %v280 = vld [vmem:[%s263 + $0x8] sm:$0xf]
      %v281 = vld [vmem:[%s263 + $0xc] sm:$0xf]
      %v282 = vld [vmem:[%s263 + $0x10] sm:$0xf]
      %v283 = vld [vmem:[%s263 + $0x14] sm:$0xf]
      %v284 = vld [vmem:[%s263 + $0x18] sm:$0xf]
      %v285 = vld [vmem:[%s263 + $0x1c] sm:$0xf]
      %v286 = vld [vmem:[%s269] sm:$0xf]
      %v287 = vld [vmem:[%s269 + $0x4] sm:$0xf]
      %v288 = vld [vmem:[%s269 + $0x8] sm:$0xf]
      %v289 = vld [vmem:[%s269 + $0xc] sm:$0xf]
      %v290 = vld [vmem:[%s269 + $0x10] sm:$0xf]
      %v291 = vld [vmem:[%s269 + $0x14] sm:$0xf]
      %v292 = vld [vmem:[%s269 + $0x18] sm:$0xf]
      %v293 = vld [vmem:[%s269 + $0x1c] sm:$0xf]
      %295 = vset.pattern.permute.xlu0 0
      %296 = vperm.xlu0 %295, %v286
      %v297 = vpop.permute.xlu0 %296
      %v300 = vunpack.c.l.s4 839922192
      %v301 = vunpack.c.0.s8 %v300
      %v302 = vlaneseq
      %v303 = vshrl.u32 %v302, 7
      %v304 = vsub.s32 %v301, %v303
      %v305 = vrot.slane %v297, %v304
      %307 = vset.pattern.permute.xlu0 0
      %308 = vperm.xlu0 %307, %v287
      %v309 = vpop.permute.xlu0 %308
      %v312 = vunpack.c.l.s4 839922192
      %v313 = vunpack.c.0.s8 %v312
      %v314 = vlaneseq
      %v315 = vshrl.u32 %v314, 7
      %v316 = vsub.s32 %v313, %v315
      %v317 = vrot.slane %v309, %v316
      %319 = vset.pattern.permute.xlu0 0
      %320 = vperm.xlu0 %319, %v288
      %v321 = vpop.permute.xlu0 %320
      %v324 = vunpack.c.l.s4 839922192
      %v325 = vunpack.c.0.s8 %v324
      %v326 = vlaneseq
      %v327 = vshrl.u32 %v326, 7
      %v328 = vsub.s32 %v325, %v327
      %v329 = vrot.slane %v321, %v328
      %331 = vset.pattern.permute.xlu0 0
      %332 = vperm.xlu0 %331, %v289
      %v333 = vpop.permute.xlu0 %332
      %v336 = vunpack.c.l.s4 839922192
      %v337 = vunpack.c.0.s8 %v336
      %v338 = vlaneseq
      %v339 = vshrl.u32 %v338, 7
      %v340 = vsub.s32 %v337, %v339
      %v341 = vrot.slane %v333, %v340
      %343 = vset.pattern.permute.xlu0 0
      %344 = vperm.xlu0 %343, %v290
      %v345 = vpop.permute.xlu0 %344
      %v348 = vunpack.c.l.s4 839922192
      %v349 = vunpack.c.0.s8 %v348
      %v350 = vlaneseq
      %v351 = vshrl.u32 %v350, 7
      %v352 = vsub.s32 %v349, %v351
      %v353 = vrot.slane %v345, %v352
      %355 = vset.pattern.permute.xlu0 0
      %356 = vperm.xlu0 %355, %v291
      %v357 = vpop.permute.xlu0 %356
      %v360 = vunpack.c.l.s4 839922192
      %v361 = vunpack.c.0.s8 %v360
      %v362 = vlaneseq
      %v363 = vshrl.u32 %v362, 7
      %v364 = vsub.s32 %v361, %v363
      %v365 = vrot.slane %v357, %v364
      %367 = vset.pattern.permute.xlu0 0
      %368 = vperm.xlu0 %367, %v292
      %v369 = vpop.permute.xlu0 %368
      %v372 = vunpack.c.l.s4 839922192
      %v373 = vunpack.c.0.s8 %v372
      %v374 = vlaneseq
      %v375 = vshrl.u32 %v374, 7
      %v376 = vsub.s32 %v373, %v375
      %v377 = vrot.slane %v369, %v376
      %379 = vset.pattern.permute.xlu0 0
      %380 = vperm.xlu0 %379, %v293
      %v381 = vpop.permute.xlu0 %380
      %v384 = vunpack.c.l.s4 839922192
      %v385 = vunpack.c.0.s8 %v384
      %v386 = vlaneseq
      %v387 = vshrl.u32 %v386, 7
      %v388 = vsub.s32 %v385, %v387
      %v389 = vrot.slane %v381, %v388
      %v390 = vmul.bf16 %v278, %v305
      %v391 = vmul.bf16 %v279, %v317
      %v392 = vmul.bf16 %v280, %v329
      %v393 = vmul.bf16 %v281, %v341
      %v394 = vmul.bf16 %v282, %v353
      %v395 = vmul.bf16 %v283, %v365
      %v396 = vmul.bf16 %v284, %v377
      %v397 = vmul.bf16 %v285, %v389
      %398 = vset.pattern.permute.xlu0 1
      %399 = vperm.xlu0 %398, %v286
      %v400 = vpop.permute.xlu0 %399
      %v403 = vunpack.c.l.s4 839922192
      %v404 = vunpack.c.0.s8 %v403
      %v405 = vlaneseq
      %v406 = vshrl.u32 %v405, 7
      %v407 = vsub.s32 %v404, %v406
      %v408 = vrot.slane %v400, %v407
      %409 = vset.pattern.permute.xlu0 1
      %410 = vperm.xlu0 %409, %v287
      %v411 = vpop.permute.xlu0 %410
      %v414 = vunpack.c.l.s4 839922192
      %v415 = vunpack.c.0.s8 %v414
      %v416 = vlaneseq
      %v417 = vshrl.u32 %v416, 7
      %v418 = vsub.s32 %v415, %v417
      %v419 = vrot.slane %v411, %v418
      %420 = vset.pattern.permute.xlu0 1
      %421 = vperm.xlu0 %420, %v288
      %v422 = vpop.permute.xlu0 %421
      %v425 = vunpack.c.l.s4 839922192
      %v426 = vunpack.c.0.s8 %v425
      %v427 = vlaneseq
      %v428 = vshrl.u32 %v427, 7
      %v429 = vsub.s32 %v426, %v428
      %v430 = vrot.slane %v422, %v429
      %431 = vset.pattern.permute.xlu0 1
      %432 = vperm.xlu0 %431, %v289
      %v433 = vpop.permute.xlu0 %432
      %v436 = vunpack.c.l.s4 839922192
      %v437 = vunpack.c.0.s8 %v436
      %v438 = vlaneseq
      %v439 = vshrl.u32 %v438, 7
      %v440 = vsub.s32 %v437, %v439
      %v441 = vrot.slane %v433, %v440
      %442 = vset.pattern.permute.xlu0 1
      %443 = vperm.xlu0 %442, %v290
      %v444 = vpop.permute.xlu0 %443
      %v447 = vunpack.c.l.s4 839922192
      %v448 = vunpack.c.0.s8 %v447
      %v449 = vlaneseq
      %v450 = vshrl.u32 %v449, 7
      %v451 = vsub.s32 %v448, %v450
      %v452 = vrot.slane %v444, %v451
      %453 = vset.pattern.permute.xlu0 1
      %454 = vperm.xlu0 %453, %v291
      %v455 = vpop.permute.xlu0 %454
      %v458 = vunpack.c.l.s4 839922192
      %v459 = vunpack.c.0.s8 %v458
      %v460 = vlaneseq
      %v461 = vshrl.u32 %v460, 7
      %v462 = vsub.s32 %v459, %v461
      %v463 = vrot.slane %v455, %v462
      %464 = vset.pattern.permute.xlu0 1
      %465 = vperm.xlu0 %464, %v292
      %v466 = vpop.permute.xlu0 %465
      %v469 = vunpack.c.l.s4 839922192
      %v470 = vunpack.c.0.s8 %v469
      %v471 = vlaneseq
      %v472 = vshrl.u32 %v471, 7
      %v473 = vsub.s32 %v470, %v472
      %v474 = vrot.slane %v466, %v473
      %475 = vset.pattern.permute.xlu0 1
      %476 = vperm.xlu0 %475, %v293
      %v477 = vpop.permute.xlu0 %476
      %v480 = vunpack.c.l.s4 839922192
      %v481 = vunpack.c.0.s8 %v480
      %v482 = vlaneseq
      %v483 = vshrl.u32 %v482, 7
      %v484 = vsub.s32 %v481, %v483
      %v485 = vrot.slane %v477, %v484
      %v486 = vmul.bf16 %v278, %v408
      %v487 = vmul.bf16 %v279, %v419
      %v488 = vmul.bf16 %v280, %v430
      %v489 = vmul.bf16 %v281, %v441
      %v490 = vmul.bf16 %v282, %v452
      %v491 = vmul.bf16 %v283, %v463
      %v492 = vmul.bf16 %v284, %v474
      %v493 = vmul.bf16 %v285, %v485
      %494 = vset.pattern.permute.xlu0 2
      %495 = vperm.xlu0 %494, %v286
      %v496 = vpop.permute.xlu0 %495
      %v499 = vunpack.c.l.s4 839922192
      %v500 = vunpack.c.0.s8 %v499
      %v501 = vlaneseq
      %v502 = vshrl.u32 %v501, 7
      %v503 = vsub.s32 %v500, %v502
      %v504 = vrot.slane %v496, %v503
      %505 = vset.pattern.permute.xlu0 2
      %506 = vperm.xlu0 %505, %v287
      %v507 = vpop.permute.xlu0 %506
      %v510 = vunpack.c.l.s4 839922192
      %v511 = vunpack.c.0.s8 %v510
      %v512 = vlaneseq
      %v513 = vshrl.u32 %v512, 7
      %v514 = vsub.s32 %v511, %v513
      %v515 = vrot.slane %v507, %v514
      %516 = vset.pattern.permute.xlu0 2
      %517 = vperm.xlu0 %516, %v288
      %v518 = vpop.permute.xlu0 %517
      %v521 = vunpack.c.l.s4 839922192
      %v522 = vunpack.c.0.s8 %v521
      %v523 = vlaneseq
      %v524 = vshrl.u32 %v523, 7
      %v525 = vsub.s32 %v522, %v524
      %v526 = vrot.slane %v518, %v525
      %527 = vset.pattern.permute.xlu0 2
      %528 = vperm.xlu0 %527, %v289
      %v529 = vpop.permute.xlu0 %528
      %v532 = vunpack.c.l.s4 839922192
      %v533 = vunpack.c.0.s8 %v532
      %v534 = vlaneseq
      %v535 = vshrl.u32 %v534, 7
      %v536 = vsub.s32 %v533, %v535
      %v537 = vrot.slane %v529, %v536
      %538 = vset.pattern.permute.xlu0 2
      %539 = vperm.xlu0 %538, %v290
      %v540 = vpop.permute.xlu0 %539
      %v543 = vunpack.c.l.s4 839922192
      %v544 = vunpack.c.0.s8 %v543
      %v545 = vlaneseq
      %v546 = vshrl.u32 %v545, 7
      %v547 = vsub.s32 %v544, %v546
      %v548 = vrot.slane %v540, %v547
      %549 = vset.pattern.permute.xlu0 2
      %550 = vperm.xlu0 %549, %v291
      %v551 = vpop.permute.xlu0 %550
      %v554 = vunpack.c.l.s4 839922192
      %v555 = vunpack.c.0.s8 %v554
      %v556 = vlaneseq
      %v557 = vshrl.u32 %v556, 7
      %v558 = vsub.s32 %v555, %v557
      %v559 = vrot.slane %v551, %v558
      %560 = vset.pattern.permute.xlu0 2
      %561 = vperm.xlu0 %560, %v292
      %v562 = vpop.permute.xlu0 %561
      %v565 = vunpack.c.l.s4 839922192
      %v566 = vunpack.c.0.s8 %v565
      %v567 = vlaneseq
      %v568 = vshrl.u32 %v567, 7
      %v569 = vsub.s32 %v566, %v568
      %v570 = vrot.slane %v562, %v569
      %571 = vset.pattern.permute.xlu0 2
      %572 = vperm.xlu0 %571, %v293
      %v573 = vpop.permute.xlu0 %572
      %v576 = vunpack.c.l.s4 839922192
      %v577 = vunpack.c.0.s8 %v576
      %v578 = vlaneseq
      %v579 = vshrl.u32 %v578, 7
      %v580 = vsub.s32 %v577, %v579
      %v581 = vrot.slane %v573, %v580
      %v582 = vmul.bf16 %v278, %v504
      %v583 = vmul.bf16 %v279, %v515
      %v584 = vmul.bf16 %v280, %v526
      %v585 = vmul.bf16 %v281, %v537
      %v586 = vmul.bf16 %v282, %v548
      %v587 = vmul.bf16 %v283, %v559
      %v588 = vmul.bf16 %v284, %v570
      %v589 = vmul.bf16 %v285, %v581
      %590 = vset.pattern.permute.xlu0 3
      %591 = vperm.xlu0 %590, %v286
      %v592 = vpop.permute.xlu0 %591
      %v595 = vunpack.c.l.s4 839922192
      %v596 = vunpack.c.0.s8 %v595
      %v597 = vlaneseq
      %v598 = vshrl.u32 %v597, 7
      %v599 = vsub.s32 %v596, %v598
      %v600 = vrot.slane %v592, %v599
      %601 = vset.pattern.permute.xlu0 3
      %602 = vperm.xlu0 %601, %v287
      %v603 = vpop.permute.xlu0 %602
      %v606 = vunpack.c.l.s4 839922192
      %v607 = vunpack.c.0.s8 %v606
      %v608 = vlaneseq
      %v609 = vshrl.u32 %v608, 7
      %v610 = vsub.s32 %v607, %v609
      %v611 = vrot.slane %v603, %v610
      %612 = vset.pattern.permute.xlu0 3
      %613 = vperm.xlu0 %612, %v288
      %v614 = vpop.permute.xlu0 %613
      %v617 = vunpack.c.l.s4 839922192
      %v618 = vunpack.c.0.s8 %v617
      %v619 = vlaneseq
      %v620 = vshrl.u32 %v619, 7
      %v621 = vsub.s32 %v618, %v620
      %v622 = vrot.slane %v614, %v621
      %623 = vset.pattern.permute.xlu0 3
      %624 = vperm.xlu0 %623, %v289
      %v625 = vpop.permute.xlu0 %624
      %v628 = vunpack.c.l.s4 839922192
      %v629 = vunpack.c.0.s8 %v628
      %v630 = vlaneseq
      %v631 = vshrl.u32 %v630, 7
      %v632 = vsub.s32 %v629, %v631
      %v633 = vrot.slane %v625, %v632
      %634 = vset.pattern.permute.xlu0 3
      %635 = vperm.xlu0 %634, %v290
      %v636 = vpop.permute.xlu0 %635
      %v639 = vunpack.c.l.s4 839922192
      %v640 = vunpack.c.0.s8 %v639
      %v641 = vlaneseq
      %v642 = vshrl.u32 %v641, 7
      %v643 = vsub.s32 %v640, %v642
      %v644 = vrot.slane %v636, %v643
      %645 = vset.pattern.permute.xlu0 3
      %646 = vperm.xlu0 %645, %v291
      %v647 = vpop.permute.xlu0 %646
      %v650 = vunpack.c.l.s4 839922192
      %v651 = vunpack.c.0.s8 %v650
      %v652 = vlaneseq
      %v653 = vshrl.u32 %v652, 7
      %v654 = vsub.s32 %v651, %v653
      %v655 = vrot.slane %v647, %v654
      %656 = vset.pattern.permute.xlu0 3
      %657 = vperm.xlu0 %656, %v292
      %v658 = vpop.permute.xlu0 %657
      %v661 = vunpack.c.l.s4 839922192
      %v662 = vunpack.c.0.s8 %v661
      %v663 = vlaneseq
      %v664 = vshrl.u32 %v663, 7
      %v665 = vsub.s32 %v662, %v664
      %v666 = vrot.slane %v658, %v665
      %667 = vset.pattern.permute.xlu0 3
      %668 = vperm.xlu0 %667, %v293
      %v669 = vpop.permute.xlu0 %668
      %v672 = vunpack.c.l.s4 839922192
      %v673 = vunpack.c.0.s8 %v672
      %v674 = vlaneseq
      %v675 = vshrl.u32 %v674, 7
      %v676 = vsub.s32 %v673, %v675
      %v677 = vrot.slane %v669, %v676
      %v678 = vmul.bf16 %v278, %v600
      %v679 = vmul.bf16 %v279, %v611
      %v680 = vmul.bf16 %v280, %v622
      %v681 = vmul.bf16 %v281, %v633
      %v682 = vmul.bf16 %v282, %v644
      %v683 = vmul.bf16 %v283, %v655
      %v684 = vmul.bf16 %v284, %v666
      %v685 = vmul.bf16 %v285, %v677
      %686 = vset.pattern.permute.xlu0 4
      %687 = vperm.xlu0 %686, %v286
      %v688 = vpop.permute.xlu0 %687
      %v691 = vunpack.c.l.s4 839922192
      %v692 = vunpack.c.0.s8 %v691
      %v693 = vlaneseq
      %v694 = vshrl.u32 %v693, 7
      %v695 = vsub.s32 %v692, %v694
      %v696 = vrot.slane %v688, %v695
      %697 = vset.pattern.permute.xlu0 4
      %698 = vperm.xlu0 %697, %v287
      %v699 = vpop.permute.xlu0 %698
      %v702 = vunpack.c.l.s4 839922192
      %v703 = vunpack.c.0.s8 %v702
      %v704 = vlaneseq
      %v705 = vshrl.u32 %v704, 7
      %v706 = vsub.s32 %v703, %v705
      %v707 = vrot.slane %v699, %v706
      %708 = vset.pattern.permute.xlu0 4
      %709 = vperm.xlu0 %708, %v288
      %v710 = vpop.permute.xlu0 %709
      %v713 = vunpack.c.l.s4 839922192
      %v714 = vunpack.c.0.s8 %v713
      %v715 = vlaneseq
      %v716 = vshrl.u32 %v715, 7
      %v717 = vsub.s32 %v714, %v716
      %v718 = vrot.slane %v710, %v717
      %719 = vset.pattern.permute.xlu0 4
      %720 = vperm.xlu0 %719, %v289
      %v721 = vpop.permute.xlu0 %720
      %v724 = vunpack.c.l.s4 839922192
      %v725 = vunpack.c.0.s8 %v724
      %v726 = vlaneseq
      %v727 = vshrl.u32 %v726, 7
      %v728 = vsub.s32 %v725, %v727
      %v729 = vrot.slane %v721, %v728
      %730 = vset.pattern.permute.xlu0 4
      %731 = vperm.xlu0 %730, %v290
      %v732 = vpop.permute.xlu0 %731
      %v735 = vunpack.c.l.s4 839922192
      %v736 = vunpack.c.0.s8 %v735
      %v737 = vlaneseq
      %v738 = vshrl.u32 %v737, 7
      %v739 = vsub.s32 %v736, %v738
      %v740 = vrot.slane %v732, %v739
      %741 = vset.pattern.permute.xlu0 4
      %742 = vperm.xlu0 %741, %v291
      %v743 = vpop.permute.xlu0 %742
      %v746 = vunpack.c.l.s4 839922192
      %v747 = vunpack.c.0.s8 %v746
      %v748 = vlaneseq
      %v749 = vshrl.u32 %v748, 7
      %v750 = vsub.s32 %v747, %v749
      %v751 = vrot.slane %v743, %v750
      %752 = vset.pattern.permute.xlu0 4
      %753 = vperm.xlu0 %752, %v292
      %v754 = vpop.permute.xlu0 %753
      %v757 = vunpack.c.l.s4 839922192
      %v758 = vunpack.c.0.s8 %v757
      %v759 = vlaneseq
      %v760 = vshrl.u32 %v759, 7
      %v761 = vsub.s32 %v758, %v760
      %v762 = vrot.slane %v754, %v761
      %763 = vset.pattern.permute.xlu0 4
      %764 = vperm.xlu0 %763, %v293
      %v765 = vpop.permute.xlu0 %764
      %v768 = vunpack.c.l.s4 839922192
      %v769 = vunpack.c.0.s8 %v768
      %v770 = vlaneseq
      %v771 = vshrl.u32 %v770, 7
      %v772 = vsub.s32 %v769, %v771
      %v773 = vrot.slane %v765, %v772
      %v774 = vmul.bf16 %v278, %v696
      %v775 = vmul.bf16 %v279, %v707
      %v776 = vmul.bf16 %v280, %v718
      %v777 = vmul.bf16 %v281, %v729
      %v778 = vmul.bf16 %v282, %v740
      %v779 = vmul.bf16 %v283, %v751
      %v780 = vmul.bf16 %v284, %v762
      %v781 = vmul.bf16 %v285, %v773
      %782 = vset.pattern.permute.xlu0 5
      %783 = vperm.xlu0 %782, %v286
      %v784 = vpop.permute.xlu0 %783
      %v787 = vunpack.c.l.s4 839922192
      %v788 = vunpack.c.0.s8 %v787
      %v789 = vlaneseq
      %v790 = vshrl.u32 %v789, 7
      %v791 = vsub.s32 %v788, %v790
      %v792 = vrot.slane %v784, %v791
      %793 = vset.pattern.permute.xlu0 5
      %794 = vperm.xlu0 %793, %v287
      %v795 = vpop.permute.xlu0 %794
      %v798 = vunpack.c.l.s4 839922192
      %v799 = vunpack.c.0.s8 %v798
      %v800 = vlaneseq
      %v801 = vshrl.u32 %v800, 7
      %v802 = vsub.s32 %v799, %v801
      %v803 = vrot.slane %v795, %v802
      %804 = vset.pattern.permute.xlu0 5
      %805 = vperm.xlu0 %804, %v288
      %v806 = vpop.permute.xlu0 %805
      %v809 = vunpack.c.l.s4 839922192
      %v810 = vunpack.c.0.s8 %v809
      %v811 = vlaneseq
      %v812 = vshrl.u32 %v811, 7
      %v813 = vsub.s32 %v810, %v812
      %v814 = vrot.slane %v806, %v813
      %815 = vset.pattern.permute.xlu0 5
      %816 = vperm.xlu0 %815, %v289
      %v817 = vpop.permute.xlu0 %816
      %v820 = vunpack.c.l.s4 839922192
      %v821 = vunpack.c.0.s8 %v820
      %v822 = vlaneseq
      %v823 = vshrl.u32 %v822, 7
      %v824 = vsub.s32 %v821, %v823
      %v825 = vrot.slane %v817, %v824
      %826 = vset.pattern.permute.xlu0 5
      %827 = vperm.xlu0 %826, %v290
      %v828 = vpop.permute.xlu0 %827
      %v831 = vunpack.c.l.s4 839922192
      %v832 = vunpack.c.0.s8 %v831
      %v833 = vlaneseq
      %v834 = vshrl.u32 %v833, 7
      %v835 = vsub.s32 %v832, %v834
      %v836 = vrot.slane %v828, %v835
      %837 = vset.pattern.permute.xlu0 5
      %838 = vperm.xlu0 %837, %v291
      %v839 = vpop.permute.xlu0 %838
      %v842 = vunpack.c.l.s4 839922192
      %v843 = vunpack.c.0.s8 %v842
      %v844 = vlaneseq
      %v845 = vshrl.u32 %v844, 7
      %v846 = vsub.s32 %v843, %v845
      %v847 = vrot.slane %v839, %v846
      %848 = vset.pattern.permute.xlu0 5
      %849 = vperm.xlu0 %848, %v292
      %v850 = vpop.permute.xlu0 %849
      %v853 = vunpack.c.l.s4 839922192
      %v854 = vunpack.c.0.s8 %v853
      %v855 = vlaneseq
      %v856 = vshrl.u32 %v855, 7
      %v857 = vsub.s32 %v854, %v856
      %v858 = vrot.slane %v850, %v857
      %859 = vset.pattern.permute.xlu0 5
      %860 = vperm.xlu0 %859, %v293
      %v861 = vpop.permute.xlu0 %860
      %v864 = vunpack.c.l.s4 839922192
      %v865 = vunpack.c.0.s8 %v864
      %v866 = vlaneseq
      %v867 = vshrl.u32 %v866, 7
      %v868 = vsub.s32 %v865, %v867
      %v869 = vrot.slane %v861, %v868
      %v870 = vmul.bf16 %v278, %v792
      %v871 = vmul.bf16 %v279, %v803
      %v872 = vmul.bf16 %v280, %v814
      %v873 = vmul.bf16 %v281, %v825
      %v874 = vmul.bf16 %v282, %v836
      %v875 = vmul.bf16 %v283, %v847
      %v876 = vmul.bf16 %v284, %v858
      %v877 = vmul.bf16 %v285, %v869
      %878 = vset.pattern.permute.xlu0 6
      %879 = vperm.xlu0 %878, %v286
      %v880 = vpop.permute.xlu0 %879
      %v883 = vunpack.c.l.s4 839922192
      %v884 = vunpack.c.0.s8 %v883
      %v885 = vlaneseq
      %v886 = vshrl.u32 %v885, 7
      %v887 = vsub.s32 %v884, %v886
      %v888 = vrot.slane %v880, %v887
      %889 = vset.pattern.permute.xlu0 6
      %890 = vperm.xlu0 %889, %v287
      %v891 = vpop.permute.xlu0 %890
      %v894 = vunpack.c.l.s4 839922192
      %v895 = vunpack.c.0.s8 %v894
      %v896 = vlaneseq
      %v897 = vshrl.u32 %v896, 7
      %v898 = vsub.s32 %v895, %v897
      %v899 = vrot.slane %v891, %v898
      %900 = vset.pattern.permute.xlu0 6
      %901 = vperm.xlu0 %900, %v288
      %v902 = vpop.permute.xlu0 %901
      %v905 = vunpack.c.l.s4 839922192
      %v906 = vunpack.c.0.s8 %v905
      %v907 = vlaneseq
      %v908 = vshrl.u32 %v907, 7
      %v909 = vsub.s32 %v906, %v908
      %v910 = vrot.slane %v902, %v909
      %911 = vset.pattern.permute.xlu0 6
      %912 = vperm.xlu0 %911, %v289
      %v913 = vpop.permute.xlu0 %912
      %v916 = vunpack.c.l.s4 839922192
      %v917 = vunpack.c.0.s8 %v916
      %v918 = vlaneseq
      %v919 = vshrl.u32 %v918, 7
      %v920 = vsub.s32 %v917, %v919
      %v921 = vrot.slane %v913, %v920
      %922 = vset.pattern.permute.xlu0 6
      %923 = vperm.xlu0 %922, %v290
      %v924 = vpop.permute.xlu0 %923
      %v927 = vunpack.c.l.s4 839922192
      %v928 = vunpack.c.0.s8 %v927
      %v929 = vlaneseq
      %v930 = vshrl.u32 %v929, 7
      %v931 = vsub.s32 %v928, %v930
      %v932 = vrot.slane %v924, %v931
      %933 = vset.pattern.permute.xlu0 6
      %934 = vperm.xlu0 %933, %v291
      %v935 = vpop.permute.xlu0 %934
      %v938 = vunpack.c.l.s4 839922192
      %v939 = vunpack.c.0.s8 %v938
      %v940 = vlaneseq
      %v941 = vshrl.u32 %v940, 7
      %v942 = vsub.s32 %v939, %v941
      %v943 = vrot.slane %v935, %v942
      %944 = vset.pattern.permute.xlu0 6
      %945 = vperm.xlu0 %944, %v292
      %v946 = vpop.permute.xlu0 %945
      %v949 = vunpack.c.l.s4 839922192
      %v950 = vunpack.c.0.s8 %v949
      %v951 = vlaneseq
      %v952 = vshrl.u32 %v951, 7
      %v953 = vsub.s32 %v950, %v952
      %v954 = vrot.slane %v946, %v953
      %955 = vset.pattern.permute.xlu0 6
      %956 = vperm.xlu0 %955, %v293
      %v957 = vpop.permute.xlu0 %956
      %v960 = vunpack.c.l.s4 839922192
      %v961 = vunpack.c.0.s8 %v960
      %v962 = vlaneseq
      %v963 = vshrl.u32 %v962, 7
      %v964 = vsub.s32 %v961, %v963
      %v965 = vrot.slane %v957, %v964
      %v966 = vmul.bf16 %v278, %v888
      %v967 = vmul.bf16 %v279, %v899
      %v968 = vmul.bf16 %v280, %v910
      %v969 = vmul.bf16 %v281, %v921
      %v970 = vmul.bf16 %v282, %v932
      %v971 = vmul.bf16 %v283, %v943
      %v972 = vmul.bf16 %v284, %v954
      %v973 = vmul.bf16 %v285, %v965
      %974 = vset.pattern.permute.xlu0 7
      %975 = vperm.xlu0 %974, %v286
      %v976 = vpop.permute.xlu0 %975
      %v979 = vunpack.c.l.s4 839922192
      %v980 = vunpack.c.0.s8 %v979
      %v981 = vlaneseq
      %v982 = vshrl.u32 %v981, 7
      %v983 = vsub.s32 %v980, %v982
      %v984 = vrot.slane %v976, %v983
      %985 = vset.pattern.permute.xlu0 7
      %986 = vperm.xlu0 %985, %v287
      %v987 = vpop.permute.xlu0 %986
      %v990 = vunpack.c.l.s4 839922192
      %v991 = vunpack.c.0.s8 %v990
      %v992 = vlaneseq
      %v993 = vshrl.u32 %v992, 7
      %v994 = vsub.s32 %v991, %v993
      %v995 = vrot.slane %v987, %v994
      %996 = vset.pattern.permute.xlu0 7
      %997 = vperm.xlu0 %996, %v288
      %v998 = vpop.permute.xlu0 %997
      %v1001 = vunpack.c.l.s4 839922192
      %v1002 = vunpack.c.0.s8 %v1001
      %v1003 = vlaneseq
      %v1004 = vshrl.u32 %v1003, 7
      %v1005 = vsub.s32 %v1002, %v1004
      %v1006 = vrot.slane %v998, %v1005
      %1007 = vset.pattern.permute.xlu0 7
      %1008 = vperm.xlu0 %1007, %v289
      %v1009 = vpop.permute.xlu0 %1008
      %v1012 = vunpack.c.l.s4 839922192
      %v1013 = vunpack.c.0.s8 %v1012
      %v1014 = vlaneseq
      %v1015 = vshrl.u32 %v1014, 7
      %v1016 = vsub.s32 %v1013, %v1015
      %v1017 = vrot.slane %v1009, %v1016
      %1018 = vset.pattern.permute.xlu0 7
      %1019 = vperm.xlu0 %1018, %v290
      %v1020 = vpop.permute.xlu0 %1019
      %v1023 = vunpack.c.l.s4 839922192
      %v1024 = vunpack.c.0.s8 %v1023
      %v1025 = vlaneseq
      %v1026 = vshrl.u32 %v1025, 7
      %v1027 = vsub.s32 %v1024, %v1026
      %v1028 = vrot.slane %v1020, %v1027
      %1029 = vset.pattern.permute.xlu0 7
      %1030 = vperm.xlu0 %1029, %v291
      %v1031 = vpop.permute.xlu0 %1030
      %v1034 = vunpack.c.l.s4 839922192
      %v1035 = vunpack.c.0.s8 %v1034
      %v1036 = vlaneseq
      %v1037 = vshrl.u32 %v1036, 7
      %v1038 = vsub.s32 %v1035, %v1037
      %v1039 = vrot.slane %v1031, %v1038
      %1040 = vset.pattern.permute.xlu0 7
      %1041 = vperm.xlu0 %1040, %v292
      %v1042 = vpop.permute.xlu0 %1041
      %v1045 = vunpack.c.l.s4 839922192
      %v1046 = vunpack.c.0.s8 %v1045
      %v1047 = vlaneseq
      %v1048 = vshrl.u32 %v1047, 7
      %v1049 = vsub.s32 %v1046, %v1048
      %v1050 = vrot.slane %v1042, %v1049
      %1051 = vset.pattern.permute.xlu0 7
      %1052 = vperm.xlu0 %1051, %v293
      %v1053 = vpop.permute.xlu0 %1052
      %v1056 = vunpack.c.l.s4 839922192
      %v1057 = vunpack.c.0.s8 %v1056
      %v1058 = vlaneseq
      %v1059 = vshrl.u32 %v1058, 7
      %v1060 = vsub.s32 %v1057, %v1059
      %v1061 = vrot.slane %v1053, %v1060
      %v1062 = vmul.bf16 %v278, %v984
      %v1063 = vmul.bf16 %v279, %v995
      %v1064 = vmul.bf16 %v280, %v1006
      %v1065 = vmul.bf16 %v281, %v1017
      %v1066 = vmul.bf16 %v282, %v1028
      %v1067 = vmul.bf16 %v283, %v1039
      %v1068 = vmul.bf16 %v284, %v1050
      %v1069 = vmul.bf16 %v285, %v1061
      %1070 = vset.pattern.permute.xlu0 8
      %1071 = vperm.xlu0 %1070, %v286
      %v1072 = vpop.permute.xlu0 %1071
      %v1075 = vunpack.c.l.s4 839922192
      %v1076 = vunpack.c.0.s8 %v1075
      %v1077 = vlaneseq
      %v1078 = vshrl.u32 %v1077, 7
      %v1079 = vsub.s32 %v1076, %v1078
      %v1080 = vrot.slane %v1072, %v1079
      %1081 = vset.pattern.permute.xlu0 8
      %1082 = vperm.xlu0 %1081, %v287
      %v1083 = vpop.permute.xlu0 %1082
      %v1086 = vunpack.c.l.s4 839922192
      %v1087 = vunpack.c.0.s8 %v1086
      %v1088 = vlaneseq
      %v1089 = vshrl.u32 %v1088, 7
      %v1090 = vsub.s32 %v1087, %v1089
      %v1091 = vrot.slane %v1083, %v1090
      %1092 = vset.pattern.permute.xlu0 8
      %1093 = vperm.xlu0 %1092, %v288
      %v1094 = vpop.permute.xlu0 %1093
      %v1097 = vunpack.c.l.s4 839922192
      %v1098 = vunpack.c.0.s8 %v1097
      %v1099 = vlaneseq
      %v1100 = vshrl.u32 %v1099, 7
      %v1101 = vsub.s32 %v1098, %v1100
      %v1102 = vrot.slane %v1094, %v1101
      %1103 = vset.pattern.permute.xlu0 8
      %1104 = vperm.xlu0 %1103, %v289
      %v1105 = vpop.permute.xlu0 %1104
      %v1108 = vunpack.c.l.s4 839922192
      %v1109 = vunpack.c.0.s8 %v1108
      %v1110 = vlaneseq
      %v1111 = vshrl.u32 %v1110, 7
      %v1112 = vsub.s32 %v1109, %v1111
      %v1113 = vrot.slane %v1105, %v1112
      %1114 = vset.pattern.permute.xlu0 8
      %1115 = vperm.xlu0 %1114, %v290
      %v1116 = vpop.permute.xlu0 %1115
      %v1119 = vunpack.c.l.s4 839922192
      %v1120 = vunpack.c.0.s8 %v1119
      %v1121 = vlaneseq
      %v1122 = vshrl.u32 %v1121, 7
      %v1123 = vsub.s32 %v1120, %v1122
      %v1124 = vrot.slane %v1116, %v1123
      %1125 = vset.pattern.permute.xlu0 8
      %1126 = vperm.xlu0 %1125, %v291
      %v1127 = vpop.permute.xlu0 %1126
      %v1130 = vunpack.c.l.s4 839922192
      %v1131 = vunpack.c.0.s8 %v1130
      %v1132 = vlaneseq
      %v1133 = vshrl.u32 %v1132, 7
      %v1134 = vsub.s32 %v1131, %v1133
      %v1135 = vrot.slane %v1127, %v1134
      %1136 = vset.pattern.permute.xlu0 8
      %1137 = vperm.xlu0 %1136, %v292
      %v1138 = vpop.permute.xlu0 %1137
      %v1141 = vunpack.c.l.s4 839922192
      %v1142 = vunpack.c.0.s8 %v1141
      %v1143 = vlaneseq
      %v1144 = vshrl.u32 %v1143, 7
      %v1145 = vsub.s32 %v1142, %v1144
      %v1146 = vrot.slane %v1138, %v1145
      %1147 = vset.pattern.permute.xlu0 8
      %1148 = vperm.xlu0 %1147, %v293
      %v1149 = vpop.permute.xlu0 %1148
      %v1152 = vunpack.c.l.s4 839922192
      %v1153 = vunpack.c.0.s8 %v1152
      %v1154 = vlaneseq
      %v1155 = vshrl.u32 %v1154, 7
      %v1156 = vsub.s32 %v1153, %v1155
      %v1157 = vrot.slane %v1149, %v1156
      %v1158 = vmul.bf16 %v278, %v1080
      %v1159 = vmul.bf16 %v279, %v1091
      %v1160 = vmul.bf16 %v280, %v1102
      %v1161 = vmul.bf16 %v281, %v1113
      %v1162 = vmul.bf16 %v282, %v1124
      %v1163 = vmul.bf16 %v283, %v1135
      %v1164 = vmul.bf16 %v284, %v1146
      %v1165 = vmul.bf16 %v285, %v1157
      %1166 = vset.pattern.permute.xlu0 9
      %1167 = vperm.xlu0 %1166, %v286
      %v1168 = vpop.permute.xlu0 %1167
      %v1171 = vunpack.c.l.s4 839922192
      %v1172 = vunpack.c.0.s8 %v1171
      %v1173 = vlaneseq
      %v1174 = vshrl.u32 %v1173, 7
      %v1175 = vsub.s32 %v1172, %v1174
      %v1176 = vrot.slane %v1168, %v1175
      %1177 = vset.pattern.permute.xlu0 9
      %1178 = vperm.xlu0 %1177, %v287
      %v1179 = vpop.permute.xlu0 %1178
      %v1182 = vunpack.c.l.s4 839922192
      %v1183 = vunpack.c.0.s8 %v1182
      %v1184 = vlaneseq
      %v1185 = vshrl.u32 %v1184, 7
      %v1186 = vsub.s32 %v1183, %v1185
      %v1187 = vrot.slane %v1179, %v1186
      %1188 = vset.pattern.permute.xlu0 9
      %1189 = vperm.xlu0 %1188, %v288
      %v1190 = vpop.permute.xlu0 %1189
      %v1193 = vunpack.c.l.s4 839922192
      %v1194 = vunpack.c.0.s8 %v1193
      %v1195 = vlaneseq
      %v1196 = vshrl.u32 %v1195, 7
      %v1197 = vsub.s32 %v1194, %v1196
      %v1198 = vrot.slane %v1190, %v1197
      %1199 = vset.pattern.permute.xlu0 9
      %1200 = vperm.xlu0 %1199, %v289
      %v1201 = vpop.permute.xlu0 %1200
      %v1204 = vunpack.c.l.s4 839922192
      %v1205 = vunpack.c.0.s8 %v1204
      %v1206 = vlaneseq
      %v1207 = vshrl.u32 %v1206, 7
      %v1208 = vsub.s32 %v1205, %v1207
      %v1209 = vrot.slane %v1201, %v1208
      %1210 = vset.pattern.permute.xlu0 9
      %1211 = vperm.xlu0 %1210, %v290
      %v1212 = vpop.permute.xlu0 %1211
      %v1215 = vunpack.c.l.s4 839922192
      %v1216 = vunpack.c.0.s8 %v1215
      %v1217 = vlaneseq
      %v1218 = vshrl.u32 %v1217, 7
      %v1219 = vsub.s32 %v1216, %v1218
      %v1220 = vrot.slane %v1212, %v1219
      %1221 = vset.pattern.permute.xlu0 9
      %1222 = vperm.xlu0 %1221, %v291
      %v1223 = vpop.permute.xlu0 %1222
      %v1226 = vunpack.c.l.s4 839922192
      %v1227 = vunpack.c.0.s8 %v1226
      %v1228 = vlaneseq
      %v1229 = vshrl.u32 %v1228, 7
      %v1230 = vsub.s32 %v1227, %v1229
      %v1231 = vrot.slane %v1223, %v1230
      %1232 = vset.pattern.permute.xlu0 9
      %1233 = vperm.xlu0 %1232, %v292
      %v1234 = vpop.permute.xlu0 %1233
      %v1237 = vunpack.c.l.s4 839922192
      %v1238 = vunpack.c.0.s8 %v1237
      %v1239 = vlaneseq
      %v1240 = vshrl.u32 %v1239, 7
      %v1241 = vsub.s32 %v1238, %v1240
      %v1242 = vrot.slane %v1234, %v1241
      %1243 = vset.pattern.permute.xlu0 9
      %1244 = vperm.xlu0 %1243, %v293
      %v1245 = vpop.permute.xlu0 %1244
      %v1248 = vunpack.c.l.s4 839922192
      %v1249 = vunpack.c.0.s8 %v1248
      %v1250 = vlaneseq
      %v1251 = vshrl.u32 %v1250, 7
      %v1252 = vsub.s32 %v1249, %v1251
      %v1253 = vrot.slane %v1245, %v1252
      %v1254 = vmul.bf16 %v278, %v1176
      %v1255 = vmul.bf16 %v279, %v1187
      %v1256 = vmul.bf16 %v280, %v1198
      %v1257 = vmul.bf16 %v281, %v1209
      %v1258 = vmul.bf16 %v282, %v1220
      %v1259 = vmul.bf16 %v283, %v1231
      %v1260 = vmul.bf16 %v284, %v1242
      %v1261 = vmul.bf16 %v285, %v1253
      %1262 = vset.pattern.permute.xlu0 10
      %1263 = vperm.xlu0 %1262, %v286
      %v1264 = vpop.permute.xlu0 %1263
      %v1267 = vunpack.c.l.s4 839922192
      %v1268 = vunpack.c.0.s8 %v1267
      %v1269 = vlaneseq
      %v1270 = vshrl.u32 %v1269, 7
      %v1271 = vsub.s32 %v1268, %v1270
      %v1272 = vrot.slane %v1264, %v1271
      %1273 = vset.pattern.permute.xlu0 10
      %1274 = vperm.xlu0 %1273, %v287
      %v1275 = vpop.permute.xlu0 %1274
      %v1278 = vunpack.c.l.s4 839922192
      %v1279 = vunpack.c.0.s8 %v1278
      %v1280 = vlaneseq
      %v1281 = vshrl.u32 %v1280, 7
      %v1282 = vsub.s32 %v1279, %v1281
      %v1283 = vrot.slane %v1275, %v1282
      %1284 = vset.pattern.permute.xlu0 10
      %1285 = vperm.xlu0 %1284, %v288
      %v1286 = vpop.permute.xlu0 %1285
      %v1289 = vunpack.c.l.s4 839922192
      %v1290 = vunpack.c.0.s8 %v1289
      %v1291 = vlaneseq
      %v1292 = vshrl.u32 %v1291, 7
      %v1293 = vsub.s32 %v1290, %v1292
      %v1294 = vrot.slane %v1286, %v1293
      %1295 = vset.pattern.permute.xlu0 10
      %1296 = vperm.xlu0 %1295, %v289
      %v1297 = vpop.permute.xlu0 %1296
      %v1300 = vunpack.c.l.s4 839922192
      %v1301 = vunpack.c.0.s8 %v1300
      %v1302 = vlaneseq
      %v1303 = vshrl.u32 %v1302, 7
      %v1304 = vsub.s32 %v1301, %v1303
      %v1305 = vrot.slane %v1297, %v1304
      %1306 = vset.pattern.permute.xlu0 10
      %1307 = vperm.xlu0 %1306, %v290
      %v1308 = vpop.permute.xlu0 %1307
      %v1311 = vunpack.c.l.s4 839922192
      %v1312 = vunpack.c.0.s8 %v1311
      %v1313 = vlaneseq
      %v1314 = vshrl.u32 %v1313, 7
      %v1315 = vsub.s32 %v1312, %v1314
      %v1316 = vrot.slane %v1308, %v1315
      %1317 = vset.pattern.permute.xlu0 10
      %1318 = vperm.xlu0 %1317, %v291
      %v1319 = vpop.permute.xlu0 %1318
      %v1322 = vunpack.c.l.s4 839922192
      %v1323 = vunpack.c.0.s8 %v1322
      %v1324 = vlaneseq
      %v1325 = vshrl.u32 %v1324, 7
      %v1326 = vsub.s32 %v1323, %v1325
      %v1327 = vrot.slane %v1319, %v1326
      %1328 = vset.pattern.permute.xlu0 10
      %1329 = vperm.xlu0 %1328, %v292
      %v1330 = vpop.permute.xlu0 %1329
      %v1333 = vunpack.c.l.s4 839922192
      %v1334 = vunpack.c.0.s8 %v1333
      %v1335 = vlaneseq
      %v1336 = vshrl.u32 %v1335, 7
      %v1337 = vsub.s32 %v1334, %v1336
      %v1338 = vrot.slane %v1330, %v1337
      %1339 = vset.pattern.permute.xlu0 10
      %1340 = vperm.xlu0 %1339, %v293
      %v1341 = vpop.permute.xlu0 %1340
      %v1344 = vunpack.c.l.s4 839922192
      %v1345 = vunpack.c.0.s8 %v1344
      %v1346 = vlaneseq
      %v1347 = vshrl.u32 %v1346, 7
      %v1348 = vsub.s32 %v1345, %v1347
      %v1349 = vrot.slane %v1341, %v1348
      %v1350 = vmul.bf16 %v278, %v1272
      %v1351 = vmul.bf16 %v279, %v1283
      %v1352 = vmul.bf16 %v280, %v1294
      %v1353 = vmul.bf16 %v281, %v1305
      %v1354 = vmul.bf16 %v282, %v1316
      %v1355 = vmul.bf16 %v283, %v1327
      %v1356 = vmul.bf16 %v284, %v1338
      %v1357 = vmul.bf16 %v285, %v1349
      %1358 = vset.pattern.permute.xlu0 11
      %1359 = vperm.xlu0 %1358, %v286
      %v1360 = vpop.permute.xlu0 %1359
      %v1363 = vunpack.c.l.s4 839922192
      %v1364 = vunpack.c.0.s8 %v1363
      %v1365 = vlaneseq
      %v1366 = vshrl.u32 %v1365, 7
      %v1367 = vsub.s32 %v1364, %v1366
      %v1368 = vrot.slane %v1360, %v1367
      %1369 = vset.pattern.permute.xlu0 11
      %1370 = vperm.xlu0 %1369, %v287
      %v1371 = vpop.permute.xlu0 %1370
      %v1374 = vunpack.c.l.s4 839922192
      %v1375 = vunpack.c.0.s8 %v1374
      %v1376 = vlaneseq
      %v1377 = vshrl.u32 %v1376, 7
      %v1378 = vsub.s32 %v1375, %v1377
      %v1379 = vrot.slane %v1371, %v1378
      %1380 = vset.pattern.permute.xlu0 11
      %1381 = vperm.xlu0 %1380, %v288
      %v1382 = vpop.permute.xlu0 %1381
      %v1385 = vunpack.c.l.s4 839922192
      %v1386 = vunpack.c.0.s8 %v1385
      %v1387 = vlaneseq
      %v1388 = vshrl.u32 %v1387, 7
      %v1389 = vsub.s32 %v1386, %v1388
      %v1390 = vrot.slane %v1382, %v1389
      %1391 = vset.pattern.permute.xlu0 11
      %1392 = vperm.xlu0 %1391, %v289
      %v1393 = vpop.permute.xlu0 %1392
      %v1396 = vunpack.c.l.s4 839922192
      %v1397 = vunpack.c.0.s8 %v1396
      %v1398 = vlaneseq
      %v1399 = vshrl.u32 %v1398, 7
      %v1400 = vsub.s32 %v1397, %v1399
      %v1401 = vrot.slane %v1393, %v1400
      %1402 = vset.pattern.permute.xlu0 11
      %1403 = vperm.xlu0 %1402, %v290
      %v1404 = vpop.permute.xlu0 %1403
      %v1407 = vunpack.c.l.s4 839922192
      %v1408 = vunpack.c.0.s8 %v1407
      %v1409 = vlaneseq
      %v1410 = vshrl.u32 %v1409, 7
      %v1411 = vsub.s32 %v1408, %v1410
      %v1412 = vrot.slane %v1404, %v1411
      %1413 = vset.pattern.permute.xlu0 11
      %1414 = vperm.xlu0 %1413, %v291
      %v1415 = vpop.permute.xlu0 %1414
      %v1418 = vunpack.c.l.s4 839922192
      %v1419 = vunpack.c.0.s8 %v1418
      %v1420 = vlaneseq
      %v1421 = vshrl.u32 %v1420, 7
      %v1422 = vsub.s32 %v1419, %v1421
      %v1423 = vrot.slane %v1415, %v1422
      %1424 = vset.pattern.permute.xlu0 11
      %1425 = vperm.xlu0 %1424, %v292
      %v1426 = vpop.permute.xlu0 %1425
      %v1429 = vunpack.c.l.s4 839922192
      %v1430 = vunpack.c.0.s8 %v1429
      %v1431 = vlaneseq
      %v1432 = vshrl.u32 %v1431, 7
      %v1433 = vsub.s32 %v1430, %v1432
      %v1434 = vrot.slane %v1426, %v1433
      %1435 = vset.pattern.permute.xlu0 11
      %1436 = vperm.xlu0 %1435, %v293
      %v1437 = vpop.permute.xlu0 %1436
      %v1440 = vunpack.c.l.s4 839922192
      %v1441 = vunpack.c.0.s8 %v1440
      %v1442 = vlaneseq
      %v1443 = vshrl.u32 %v1442, 7
      %v1444 = vsub.s32 %v1441, %v1443
      %v1445 = vrot.slane %v1437, %v1444
      %v1446 = vmul.bf16 %v278, %v1368
      %v1447 = vmul.bf16 %v279, %v1379
      %v1448 = vmul.bf16 %v280, %v1390
      %v1449 = vmul.bf16 %v281, %v1401
      %v1450 = vmul.bf16 %v282, %v1412
      %v1451 = vmul.bf16 %v283, %v1423
      %v1452 = vmul.bf16 %v284, %v1434
      %v1453 = vmul.bf16 %v285, %v1445
      %1454 = vset.pattern.permute.xlu0 12
      %1455 = vperm.xlu0 %1454, %v286
      %v1456 = vpop.permute.xlu0 %1455
      %v1459 = vunpack.c.l.s4 839922192
      %v1460 = vunpack.c.0.s8 %v1459
      %v1461 = vlaneseq
      %v1462 = vshrl.u32 %v1461, 7
      %v1463 = vsub.s32 %v1460, %v1462
      %v1464 = vrot.slane %v1456, %v1463
      %1465 = vset.pattern.permute.xlu0 12
      %1466 = vperm.xlu0 %1465, %v287
      %v1467 = vpop.permute.xlu0 %1466
      %v1470 = vunpack.c.l.s4 839922192
      %v1471 = vunpack.c.0.s8 %v1470
      %v1472 = vlaneseq
      %v1473 = vshrl.u32 %v1472, 7
      %v1474 = vsub.s32 %v1471, %v1473
      %v1475 = vrot.slane %v1467, %v1474
      %1476 = vset.pattern.permute.xlu0 12
      %1477 = vperm.xlu0 %1476, %v288
      %v1478 = vpop.permute.xlu0 %1477
      %v1481 = vunpack.c.l.s4 839922192
      %v1482 = vunpack.c.0.s8 %v1481
      %v1483 = vlaneseq
      %v1484 = vshrl.u32 %v1483, 7
      %v1485 = vsub.s32 %v1482, %v1484
      %v1486 = vrot.slane %v1478, %v1485
      %1487 = vset.pattern.permute.xlu0 12
      %1488 = vperm.xlu0 %1487, %v289
      %v1489 = vpop.permute.xlu0 %1488
      %v1492 = vunpack.c.l.s4 839922192
      %v1493 = vunpack.c.0.s8 %v1492
      %v1494 = vlaneseq
      %v1495 = vshrl.u32 %v1494, 7
      %v1496 = vsub.s32 %v1493, %v1495
      %v1497 = vrot.slane %v1489, %v1496
      %1498 = vset.pattern.permute.xlu0 12
      %1499 = vperm.xlu0 %1498, %v290
      %v1500 = vpop.permute.xlu0 %1499
      %v1503 = vunpack.c.l.s4 839922192
      %v1504 = vunpack.c.0.s8 %v1503
      %v1505 = vlaneseq
      %v1506 = vshrl.u32 %v1505, 7
      %v1507 = vsub.s32 %v1504, %v1506
      %v1508 = vrot.slane %v1500, %v1507
      %1509 = vset.pattern.permute.xlu0 12
      %1510 = vperm.xlu0 %1509, %v291
      %v1511 = vpop.permute.xlu0 %1510
      %v1514 = vunpack.c.l.s4 839922192
      %v1515 = vunpack.c.0.s8 %v1514
      %v1516 = vlaneseq
      %v1517 = vshrl.u32 %v1516, 7
      %v1518 = vsub.s32 %v1515, %v1517
      %v1519 = vrot.slane %v1511, %v1518
      %1520 = vset.pattern.permute.xlu0 12
      %1521 = vperm.xlu0 %1520, %v292
      %v1522 = vpop.permute.xlu0 %1521
      %v1525 = vunpack.c.l.s4 839922192
      %v1526 = vunpack.c.0.s8 %v1525
      %v1527 = vlaneseq
      %v1528 = vshrl.u32 %v1527, 7
      %v1529 = vsub.s32 %v1526, %v1528
      %v1530 = vrot.slane %v1522, %v1529
      %1531 = vset.pattern.permute.xlu0 12
      %1532 = vperm.xlu0 %1531, %v293
      %v1533 = vpop.permute.xlu0 %1532
      %v1536 = vunpack.c.l.s4 839922192
      %v1537 = vunpack.c.0.s8 %v1536
      %v1538 = vlaneseq
      %v1539 = vshrl.u32 %v1538, 7
      %v1540 = vsub.s32 %v1537, %v1539
      %v1541 = vrot.slane %v1533, %v1540
      %v1542 = vmul.bf16 %v278, %v1464
      %v1543 = vmul.bf16 %v279, %v1475
      %v1544 = vmul.bf16 %v280, %v1486
      %v1545 = vmul.bf16 %v281, %v1497
      %v1546 = vmul.bf16 %v282, %v1508
      %v1547 = vmul.bf16 %v283, %v1519
      %v1548 = vmul.bf16 %v284, %v1530
      %v1549 = vmul.bf16 %v285, %v1541
      %1550 = vset.pattern.permute.xlu0 13
      %1551 = vperm.xlu0 %1550, %v286
      %v1552 = vpop.permute.xlu0 %1551
      %v1555 = vunpack.c.l.s4 839922192
      %v1556 = vunpack.c.0.s8 %v1555
      %v1557 = vlaneseq
      %v1558 = vshrl.u32 %v1557, 7
      %v1559 = vsub.s32 %v1556, %v1558
      %v1560 = vrot.slane %v1552, %v1559
      %1561 = vset.pattern.permute.xlu0 13
      %1562 = vperm.xlu0 %1561, %v287
      %v1563 = vpop.permute.xlu0 %1562
      %v1566 = vunpack.c.l.s4 839922192
      %v1567 = vunpack.c.0.s8 %v1566
      %v1568 = vlaneseq
      %v1569 = vshrl.u32 %v1568, 7
      %v1570 = vsub.s32 %v1567, %v1569
      %v1571 = vrot.slane %v1563, %v1570
      %1572 = vset.pattern.permute.xlu0 13
      %1573 = vperm.xlu0 %1572, %v288
      %v1574 = vpop.permute.xlu0 %1573
      %v1577 = vunpack.c.l.s4 839922192
      %v1578 = vunpack.c.0.s8 %v1577
      %v1579 = vlaneseq
      %v1580 = vshrl.u32 %v1579, 7
      %v1581 = vsub.s32 %v1578, %v1580
      %v1582 = vrot.slane %v1574, %v1581
      %1583 = vset.pattern.permute.xlu0 13
      %1584 = vperm.xlu0 %1583, %v289
      %v1585 = vpop.permute.xlu0 %1584
      %v1588 = vunpack.c.l.s4 839922192
      %v1589 = vunpack.c.0.s8 %v1588
      %v1590 = vlaneseq
      %v1591 = vshrl.u32 %v1590, 7
      %v1592 = vsub.s32 %v1589, %v1591
      %v1593 = vrot.slane %v1585, %v1592
      %1594 = vset.pattern.permute.xlu0 13
      %1595 = vperm.xlu0 %1594, %v290
      %v1596 = vpop.permute.xlu0 %1595
      %v1599 = vunpack.c.l.s4 839922192
      %v1600 = vunpack.c.0.s8 %v1599
      %v1601 = vlaneseq
      %v1602 = vshrl.u32 %v1601, 7
      %v1603 = vsub.s32 %v1600, %v1602
      %v1604 = vrot.slane %v1596, %v1603
      %1605 = vset.pattern.permute.xlu0 13
      %1606 = vperm.xlu0 %1605, %v291
      %v1607 = vpop.permute.xlu0 %1606
      %v1610 = vunpack.c.l.s4 839922192
      %v1611 = vunpack.c.0.s8 %v1610
      %v1612 = vlaneseq
      %v1613 = vshrl.u32 %v1612, 7
      %v1614 = vsub.s32 %v1611, %v1613
      %v1615 = vrot.slane %v1607, %v1614
      %1616 = vset.pattern.permute.xlu0 13
      %1617 = vperm.xlu0 %1616, %v292
      %v1618 = vpop.permute.xlu0 %1617
      %v1621 = vunpack.c.l.s4 839922192
      %v1622 = vunpack.c.0.s8 %v1621
      %v1623 = vlaneseq
      %v1624 = vshrl.u32 %v1623, 7
      %v1625 = vsub.s32 %v1622, %v1624
      %v1626 = vrot.slane %v1618, %v1625
      %1627 = vset.pattern.permute.xlu0 13
      %1628 = vperm.xlu0 %1627, %v293
      %v1629 = vpop.permute.xlu0 %1628
      %v1632 = vunpack.c.l.s4 839922192
      %v1633 = vunpack.c.0.s8 %v1632
      %v1634 = vlaneseq
      %v1635 = vshrl.u32 %v1634, 7
      %v1636 = vsub.s32 %v1633, %v1635
      %v1637 = vrot.slane %v1629, %v1636
      %v1638 = vmul.bf16 %v278, %v1560
      %v1639 = vmul.bf16 %v279, %v1571
      %v1640 = vmul.bf16 %v280, %v1582
      %v1641 = vmul.bf16 %v281, %v1593
      %v1642 = vmul.bf16 %v282, %v1604
      %v1643 = vmul.bf16 %v283, %v1615
      %v1644 = vmul.bf16 %v284, %v1626
      %v1645 = vmul.bf16 %v285, %v1637
      %1646 = vset.pattern.permute.xlu0 14
      %1647 = vperm.xlu0 %1646, %v286
      %v1648 = vpop.permute.xlu0 %1647
      %v1651 = vunpack.c.l.s4 839922192
      %v1652 = vunpack.c.0.s8 %v1651
      %v1653 = vlaneseq
      %v1654 = vshrl.u32 %v1653, 7
      %v1655 = vsub.s32 %v1652, %v1654
      %v1656 = vrot.slane %v1648, %v1655
      %1657 = vset.pattern.permute.xlu0 14
      %1658 = vperm.xlu0 %1657, %v287
      %v1659 = vpop.permute.xlu0 %1658
      %v1662 = vunpack.c.l.s4 839922192
      %v1663 = vunpack.c.0.s8 %v1662
      %v1664 = vlaneseq
      %v1665 = vshrl.u32 %v1664, 7
      %v1666 = vsub.s32 %v1663, %v1665
      %v1667 = vrot.slane %v1659, %v1666
      %1668 = vset.pattern.permute.xlu0 14
      %1669 = vperm.xlu0 %1668, %v288
      %v1670 = vpop.permute.xlu0 %1669
      %v1673 = vunpack.c.l.s4 839922192
      %v1674 = vunpack.c.0.s8 %v1673
      %v1675 = vlaneseq
      %v1676 = vshrl.u32 %v1675, 7
      %v1677 = vsub.s32 %v1674, %v1676
      %v1678 = vrot.slane %v1670, %v1677
      %1679 = vset.pattern.permute.xlu0 14
      %1680 = vperm.xlu0 %1679, %v289
      %v1681 = vpop.permute.xlu0 %1680
      %v1684 = vunpack.c.l.s4 839922192
      %v1685 = vunpack.c.0.s8 %v1684
      %v1686 = vlaneseq
      %v1687 = vshrl.u32 %v1686, 7
      %v1688 = vsub.s32 %v1685, %v1687
      %v1689 = vrot.slane %v1681, %v1688
      %1690 = vset.pattern.permute.xlu0 14
      %1691 = vperm.xlu0 %1690, %v290
      %v1692 = vpop.permute.xlu0 %1691
      %v1695 = vunpack.c.l.s4 839922192
      %v1696 = vunpack.c.0.s8 %v1695
      %v1697 = vlaneseq
      %v1698 = vshrl.u32 %v1697, 7
      %v1699 = vsub.s32 %v1696, %v1698
      %v1700 = vrot.slane %v1692, %v1699
      %1701 = vset.pattern.permute.xlu0 14
      %1702 = vperm.xlu0 %1701, %v291
      %v1703 = vpop.permute.xlu0 %1702
      %v1706 = vunpack.c.l.s4 839922192
      %v1707 = vunpack.c.0.s8 %v1706
      %v1708 = vlaneseq
      %v1709 = vshrl.u32 %v1708, 7
      %v1710 = vsub.s32 %v1707, %v1709
      %v1711 = vrot.slane %v1703, %v1710
      %1712 = vset.pattern.permute.xlu0 14
      %1713 = vperm.xlu0 %1712, %v292
      %v1714 = vpop.permute.xlu0 %1713
      %v1717 = vunpack.c.l.s4 839922192
      %v1718 = vunpack.c.0.s8 %v1717
      %v1719 = vlaneseq
      %v1720 = vshrl.u32 %v1719, 7
      %v1721 = vsub.s32 %v1718, %v1720
      %v1722 = vrot.slane %v1714, %v1721
      %1723 = vset.pattern.permute.xlu0 14
      %1724 = vperm.xlu0 %1723, %v293
      %v1725 = vpop.permute.xlu0 %1724
      %v1728 = vunpack.c.l.s4 839922192
      %v1729 = vunpack.c.0.s8 %v1728
      %v1730 = vlaneseq
      %v1731 = vshrl.u32 %v1730, 7
      %v1732 = vsub.s32 %v1729, %v1731
      %v1733 = vrot.slane %v1725, %v1732
      %v1734 = vmul.bf16 %v278, %v1656
      %v1735 = vmul.bf16 %v279, %v1667
      %v1736 = vmul.bf16 %v280, %v1678
      %v1737 = vmul.bf16 %v281, %v1689
      %v1738 = vmul.bf16 %v282, %v1700
      %v1739 = vmul.bf16 %v283, %v1711
      %v1740 = vmul.bf16 %v284, %v1722
      %v1741 = vmul.bf16 %v285, %v1733
      %1742 = vset.pattern.permute.xlu0 15
      %1743 = vperm.xlu0 %1742, %v286
      %v1744 = vpop.permute.xlu0 %1743
      %v1747 = vunpack.c.l.s4 839922192
      %v1748 = vunpack.c.0.s8 %v1747
      %v1749 = vlaneseq
      %v1750 = vshrl.u32 %v1749, 7
      %v1751 = vsub.s32 %v1748, %v1750
      %v1752 = vrot.slane %v1744, %v1751
      %1753 = vset.pattern.permute.xlu0 15
      %1754 = vperm.xlu0 %1753, %v287
      %v1755 = vpop.permute.xlu0 %1754
      %v1758 = vunpack.c.l.s4 839922192
      %v1759 = vunpack.c.0.s8 %v1758
      %v1760 = vlaneseq
      %v1761 = vshrl.u32 %v1760, 7
      %v1762 = vsub.s32 %v1759, %v1761
      %v1763 = vrot.slane %v1755, %v1762
      %1764 = vset.pattern.permute.xlu0 15
      %1765 = vperm.xlu0 %1764, %v288
      %v1766 = vpop.permute.xlu0 %1765
      %v1769 = vunpack.c.l.s4 839922192
      %v1770 = vunpack.c.0.s8 %v1769
      %v1771 = vlaneseq
      %v1772 = vshrl.u32 %v1771, 7
      %v1773 = vsub.s32 %v1770, %v1772
      %v1774 = vrot.slane %v1766, %v1773
      %1775 = vset.pattern.permute.xlu0 15
      %1776 = vperm.xlu0 %1775, %v289
      %v1777 = vpop.permute.xlu0 %1776
      %v1780 = vunpack.c.l.s4 839922192
      %v1781 = vunpack.c.0.s8 %v1780
      %v1782 = vlaneseq
      %v1783 = vshrl.u32 %v1782, 7
      %v1784 = vsub.s32 %v1781, %v1783
      %v1785 = vrot.slane %v1777, %v1784
      %1786 = vset.pattern.permute.xlu0 15
      %1787 = vperm.xlu0 %1786, %v290
      %v1788 = vpop.permute.xlu0 %1787
      %v1791 = vunpack.c.l.s4 839922192
      %v1792 = vunpack.c.0.s8 %v1791
      %v1793 = vlaneseq
      %v1794 = vshrl.u32 %v1793, 7
      %v1795 = vsub.s32 %v1792, %v1794
      %v1796 = vrot.slane %v1788, %v1795
      %1797 = vset.pattern.permute.xlu0 15
      %1798 = vperm.xlu0 %1797, %v291
      %v1799 = vpop.permute.xlu0 %1798
      %v1802 = vunpack.c.l.s4 839922192
      %v1803 = vunpack.c.0.s8 %v1802
      %v1804 = vlaneseq
      %v1805 = vshrl.u32 %v1804, 7
      %v1806 = vsub.s32 %v1803, %v1805
      %v1807 = vrot.slane %v1799, %v1806
      %1808 = vset.pattern.permute.xlu0 15
      %1809 = vperm.xlu0 %1808, %v292
      %v1810 = vpop.permute.xlu0 %1809
      %v1813 = vunpack.c.l.s4 839922192
      %v1814 = vunpack.c.0.s8 %v1813
      %v1815 = vlaneseq
      %v1816 = vshrl.u32 %v1815, 7
      %v1817 = vsub.s32 %v1814, %v1816
      %v1818 = vrot.slane %v1810, %v1817
      %1819 = vset.pattern.permute.xlu0 15
      %1820 = vperm.xlu0 %1819, %v293
      %v1821 = vpop.permute.xlu0 %1820
      %v1824 = vunpack.c.l.s4 839922192
      %v1825 = vunpack.c.0.s8 %v1824
      %v1826 = vlaneseq
      %v1827 = vshrl.u32 %v1826, 7
      %v1828 = vsub.s32 %v1825, %v1827
      %v1829 = vrot.slane %v1821, %v1828
      %v1830 = vmul.bf16 %v278, %v1752
      %v1831 = vmul.bf16 %v279, %v1763
      %v1832 = vmul.bf16 %v280, %v1774
      %v1833 = vmul.bf16 %v281, %v1785
      %v1834 = vmul.bf16 %v282, %v1796
      %v1835 = vmul.bf16 %v283, %v1807
      %v1836 = vmul.bf16 %v284, %v1818
      %v1837 = vmul.bf16 %v285, %v1829
      %1838 = vset.pattern.permute.xlu0 16
      %1839 = vperm.xlu0 %1838, %v286
      %v1840 = vpop.permute.xlu0 %1839
      %v1843 = vunpack.c.l.s4 839922192
      %v1844 = vunpack.c.0.s8 %v1843
      %v1845 = vlaneseq
      %v1846 = vshrl.u32 %v1845, 7
      %v1847 = vsub.s32 %v1844, %v1846
      %v1848 = vrot.slane %v1840, %v1847
      %1849 = vset.pattern.permute.xlu0 16
      %1850 = vperm.xlu0 %1849, %v287
      %v1851 = vpop.permute.xlu0 %1850
      %v1854 = vunpack.c.l.s4 839922192
      %v1855 = vunpack.c.0.s8 %v1854
      %v1856 = vlaneseq
      %v1857 = vshrl.u32 %v1856, 7
      %v1858 = vsub.s32 %v1855, %v1857
      %v1859 = vrot.slane %v1851, %v1858
      %1860 = vset.pattern.permute.xlu0 16
      %1861 = vperm.xlu0 %1860, %v288
      %v1862 = vpop.permute.xlu0 %1861
      %v1865 = vunpack.c.l.s4 839922192
      %v1866 = vunpack.c.0.s8 %v1865
      %v1867 = vlaneseq
      %v1868 = vshrl.u32 %v1867, 7
      %v1869 = vsub.s32 %v1866, %v1868
      %v1870 = vrot.slane %v1862, %v1869
      %1871 = vset.pattern.permute.xlu0 16
      %1872 = vperm.xlu0 %1871, %v289
      %v1873 = vpop.permute.xlu0 %1872
      %v1876 = vunpack.c.l.s4 839922192
      %v1877 = vunpack.c.0.s8 %v1876
      %v1878 = vlaneseq
      %v1879 = vshrl.u32 %v1878, 7
      %v1880 = vsub.s32 %v1877, %v1879
      %v1881 = vrot.slane %v1873, %v1880
      %1882 = vset.pattern.permute.xlu0 16
      %1883 = vperm.xlu0 %1882, %v290
      %v1884 = vpop.permute.xlu0 %1883
      %v1887 = vunpack.c.l.s4 839922192
      %v1888 = vunpack.c.0.s8 %v1887
      %v1889 = vlaneseq
      %v1890 = vshrl.u32 %v1889, 7
      %v1891 = vsub.s32 %v1888, %v1890
      %v1892 = vrot.slane %v1884, %v1891
      %1893 = vset.pattern.permute.xlu0 16
      %1894 = vperm.xlu0 %1893, %v291
      %v1895 = vpop.permute.xlu0 %1894
      %v1898 = vunpack.c.l.s4 839922192
      %v1899 = vunpack.c.0.s8 %v1898
      %v1900 = vlaneseq
      %v1901 = vshrl.u32 %v1900, 7
      %v1902 = vsub.s32 %v1899, %v1901
      %v1903 = vrot.slane %v1895, %v1902
      %1904 = vset.pattern.permute.xlu0 16
      %1905 = vperm.xlu0 %1904, %v292
      %v1906 = vpop.permute.xlu0 %1905
      %v1909 = vunpack.c.l.s4 839922192
      %v1910 = vunpack.c.0.s8 %v1909
      %v1911 = vlaneseq
      %v1912 = vshrl.u32 %v1911, 7
      %v1913 = vsub.s32 %v1910, %v1912
      %v1914 = vrot.slane %v1906, %v1913
      %1915 = vset.pattern.permute.xlu0 16
      %1916 = vperm.xlu0 %1915, %v293
      %v1917 = vpop.permute.xlu0 %1916
      %v1920 = vunpack.c.l.s4 839922192
      %v1921 = vunpack.c.0.s8 %v1920
      %v1922 = vlaneseq
      %v1923 = vshrl.u32 %v1922, 7
      %v1924 = vsub.s32 %v1921, %v1923
      %v1925 = vrot.slane %v1917, %v1924
      %v1926 = vmul.bf16 %v278, %v1848
      %v1927 = vmul.bf16 %v279, %v1859
      %v1928 = vmul.bf16 %v280, %v1870
      %v1929 = vmul.bf16 %v281, %v1881
      %v1930 = vmul.bf16 %v282, %v1892
      %v1931 = vmul.bf16 %v283, %v1903
      %v1932 = vmul.bf16 %v284, %v1914
      %v1933 = vmul.bf16 %v285, %v1925
      %1934 = vset.pattern.permute.xlu0 17
      %1935 = vperm.xlu0 %1934, %v286
      %v1936 = vpop.permute.xlu0 %1935
      %v1939 = vunpack.c.l.s4 839922192
      %v1940 = vunpack.c.0.s8 %v1939
      %v1941 = vlaneseq
      %v1942 = vshrl.u32 %v1941, 7
      %v1943 = vsub.s32 %v1940, %v1942
      %v1944 = vrot.slane %v1936, %v1943
      %1945 = vset.pattern.permute.xlu0 17
      %1946 = vperm.xlu0 %1945, %v287
      %v1947 = vpop.permute.xlu0 %1946
      %v1950 = vunpack.c.l.s4 839922192
      %v1951 = vunpack.c.0.s8 %v1950
      %v1952 = vlaneseq
      %v1953 = vshrl.u32 %v1952, 7
      %v1954 = vsub.s32 %v1951, %v1953
      %v1955 = vrot.slane %v1947, %v1954
      %1956 = vset.pattern.permute.xlu0 17
      %1957 = vperm.xlu0 %1956, %v288
      %v1958 = vpop.permute.xlu0 %1957
      %v1961 = vunpack.c.l.s4 839922192
      %v1962 = vunpack.c.0.s8 %v1961
      %v1963 = vlaneseq
      %v1964 = vshrl.u32 %v1963, 7
      %v1965 = vsub.s32 %v1962, %v1964
      %v1966 = vrot.slane %v1958, %v1965
      %1967 = vset.pattern.permute.xlu0 17
      %1968 = vperm.xlu0 %1967, %v289
      %v1969 = vpop.permute.xlu0 %1968
      %v1972 = vunpack.c.l.s4 839922192
      %v1973 = vunpack.c.0.s8 %v1972
      %v1974 = vlaneseq
      %v1975 = vshrl.u32 %v1974, 7
      %v1976 = vsub.s32 %v1973, %v1975
      %v1977 = vrot.slane %v1969, %v1976
      %1978 = vset.pattern.permute.xlu0 17
      %1979 = vperm.xlu0 %1978, %v290
      %v1980 = vpop.permute.xlu0 %1979
      %v1983 = vunpack.c.l.s4 839922192
      %v1984 = vunpack.c.0.s8 %v1983
      %v1985 = vlaneseq
      %v1986 = vshrl.u32 %v1985, 7
      %v1987 = vsub.s32 %v1984, %v1986
      %v1988 = vrot.slane %v1980, %v1987
      %1989 = vset.pattern.permute.xlu0 17
      %1990 = vperm.xlu0 %1989, %v291
      %v1991 = vpop.permute.xlu0 %1990
      %v1994 = vunpack.c.l.s4 839922192
      %v1995 = vunpack.c.0.s8 %v1994
      %v1996 = vlaneseq
      %v1997 = vshrl.u32 %v1996, 7
      %v1998 = vsub.s32 %v1995, %v1997
      %v1999 = vrot.slane %v1991, %v1998
      %2000 = vset.pattern.permute.xlu0 17
      %2001 = vperm.xlu0 %2000, %v292
      %v2002 = vpop.permute.xlu0 %2001
      %v2005 = vunpack.c.l.s4 839922192
      %v2006 = vunpack.c.0.s8 %v2005
      %v2007 = vlaneseq
      %v2008 = vshrl.u32 %v2007, 7
      %v2009 = vsub.s32 %v2006, %v2008
      %v2010 = vrot.slane %v2002, %v2009
      %2011 = vset.pattern.permute.xlu0 17
      %2012 = vperm.xlu0 %2011, %v293
      %v2013 = vpop.permute.xlu0 %2012
      %v2016 = vunpack.c.l.s4 839922192
      %v2017 = vunpack.c.0.s8 %v2016
      %v2018 = vlaneseq
      %v2019 = vshrl.u32 %v2018, 7
      %v2020 = vsub.s32 %v2017, %v2019
      %v2021 = vrot.slane %v2013, %v2020
      %v2022 = vmul.bf16 %v278, %v1944
      %v2023 = vmul.bf16 %v279, %v1955
      %v2024 = vmul.bf16 %v280, %v1966
      %v2025 = vmul.bf16 %v281, %v1977
      %v2026 = vmul.bf16 %v282, %v1988
      %v2027 = vmul.bf16 %v283, %v1999
      %v2028 = vmul.bf16 %v284, %v2010
      %v2029 = vmul.bf16 %v285, %v2021
      %2030 = vset.pattern.permute.xlu0 18
      %2031 = vperm.xlu0 %2030, %v286
      %v2032 = vpop.permute.xlu0 %2031
      %v2035 = vunpack.c.l.s4 839922192
      %v2036 = vunpack.c.0.s8 %v2035
      %v2037 = vlaneseq
      %v2038 = vshrl.u32 %v2037, 7
      %v2039 = vsub.s32 %v2036, %v2038
      %v2040 = vrot.slane %v2032, %v2039
      %2041 = vset.pattern.permute.xlu0 18
      %2042 = vperm.xlu0 %2041, %v287
      %v2043 = vpop.permute.xlu0 %2042
      %v2046 = vunpack.c.l.s4 839922192
      %v2047 = vunpack.c.0.s8 %v2046
      %v2048 = vlaneseq
      %v2049 = vshrl.u32 %v2048, 7
      %v2050 = vsub.s32 %v2047, %v2049
      %v2051 = vrot.slane %v2043, %v2050
      %2052 = vset.pattern.permute.xlu0 18
      %2053 = vperm.xlu0 %2052, %v288
      %v2054 = vpop.permute.xlu0 %2053
      %v2057 = vunpack.c.l.s4 839922192
      %v2058 = vunpack.c.0.s8 %v2057
      %v2059 = vlaneseq
      %v2060 = vshrl.u32 %v2059, 7
      %v2061 = vsub.s32 %v2058, %v2060
      %v2062 = vrot.slane %v2054, %v2061
      %2063 = vset.pattern.permute.xlu0 18
      %2064 = vperm.xlu0 %2063, %v289
      %v2065 = vpop.permute.xlu0 %2064
      %v2068 = vunpack.c.l.s4 839922192
      %v2069 = vunpack.c.0.s8 %v2068
      %v2070 = vlaneseq
      %v2071 = vshrl.u32 %v2070, 7
      %v2072 = vsub.s32 %v2069, %v2071
      %v2073 = vrot.slane %v2065, %v2072
      %2074 = vset.pattern.permute.xlu0 18
      %2075 = vperm.xlu0 %2074, %v290
      %v2076 = vpop.permute.xlu0 %2075
      %v2079 = vunpack.c.l.s4 839922192
      %v2080 = vunpack.c.0.s8 %v2079
      %v2081 = vlaneseq
      %v2082 = vshrl.u32 %v2081, 7
      %v2083 = vsub.s32 %v2080, %v2082
      %v2084 = vrot.slane %v2076, %v2083
      %2085 = vset.pattern.permute.xlu0 18
      %2086 = vperm.xlu0 %2085, %v291
      %v2087 = vpop.permute.xlu0 %2086
      %v2090 = vunpack.c.l.s4 839922192
      %v2091 = vunpack.c.0.s8 %v2090
      %v2092 = vlaneseq
      %v2093 = vshrl.u32 %v2092, 7
      %v2094 = vsub.s32 %v2091, %v2093
      %v2095 = vrot.slane %v2087, %v2094
      %2096 = vset.pattern.permute.xlu0 18
      %2097 = vperm.xlu0 %2096, %v292
      %v2098 = vpop.permute.xlu0 %2097
      %v2101 = vunpack.c.l.s4 839922192
      %v2102 = vunpack.c.0.s8 %v2101
      %v2103 = vlaneseq
      %v2104 = vshrl.u32 %v2103, 7
      %v2105 = vsub.s32 %v2102, %v2104
      %v2106 = vrot.slane %v2098, %v2105
      %2107 = vset.pattern.permute.xlu0 18
      %2108 = vperm.xlu0 %2107, %v293
      %v2109 = vpop.permute.xlu0 %2108
      %v2112 = vunpack.c.l.s4 839922192
      %v2113 = vunpack.c.0.s8 %v2112
      %v2114 = vlaneseq
      %v2115 = vshrl.u32 %v2114, 7
      %v2116 = vsub.s32 %v2113, %v2115
      %v2117 = vrot.slane %v2109, %v2116
      %v2118 = vmul.bf16 %v278, %v2040
      %v2119 = vmul.bf16 %v279, %v2051
      %v2120 = vmul.bf16 %v280, %v2062
      %v2121 = vmul.bf16 %v281, %v2073
      %v2122 = vmul.bf16 %v282, %v2084
      %v2123 = vmul.bf16 %v283, %v2095
      %v2124 = vmul.bf16 %v284, %v2106
      %v2125 = vmul.bf16 %v285, %v2117
      %2126 = vset.pattern.permute.xlu0 19
      %2127 = vperm.xlu0 %2126, %v286
      %v2128 = vpop.permute.xlu0 %2127
      %v2131 = vunpack.c.l.s4 839922192
      %v2132 = vunpack.c.0.s8 %v2131
      %v2133 = vlaneseq
      %v2134 = vshrl.u32 %v2133, 7
      %v2135 = vsub.s32 %v2132, %v2134
      %v2136 = vrot.slane %v2128, %v2135
      %2137 = vset.pattern.permute.xlu0 19
      %2138 = vperm.xlu0 %2137, %v287
      %v2139 = vpop.permute.xlu0 %2138
      %v2142 = vunpack.c.l.s4 839922192
      %v2143 = vunpack.c.0.s8 %v2142
      %v2144 = vlaneseq
      %v2145 = vshrl.u32 %v2144, 7
      %v2146 = vsub.s32 %v2143, %v2145
      %v2147 = vrot.slane %v2139, %v2146
      %2148 = vset.pattern.permute.xlu0 19
      %2149 = vperm.xlu0 %2148, %v288
      %v2150 = vpop.permute.xlu0 %2149
      %v2153 = vunpack.c.l.s4 839922192
      %v2154 = vunpack.c.0.s8 %v2153
      %v2155 = vlaneseq
      %v2156 = vshrl.u32 %v2155, 7
      %v2157 = vsub.s32 %v2154, %v2156
      %v2158 = vrot.slane %v2150, %v2157
      %2159 = vset.pattern.permute.xlu0 19
      %2160 = vperm.xlu0 %2159, %v289
      %v2161 = vpop.permute.xlu0 %2160
      %v2164 = vunpack.c.l.s4 839922192
      %v2165 = vunpack.c.0.s8 %v2164
      %v2166 = vlaneseq
      %v2167 = vshrl.u32 %v2166, 7
      %v2168 = vsub.s32 %v2165, %v2167
      %v2169 = vrot.slane %v2161, %v2168
      %2170 = vset.pattern.permute.xlu0 19
      %2171 = vperm.xlu0 %2170, %v290
      %v2172 = vpop.permute.xlu0 %2171
      %v2175 = vunpack.c.l.s4 839922192
      %v2176 = vunpack.c.0.s8 %v2175
      %v2177 = vlaneseq
      %v2178 = vshrl.u32 %v2177, 7
      %v2179 = vsub.s32 %v2176, %v2178
      %v2180 = vrot.slane %v2172, %v2179
      %2181 = vset.pattern.permute.xlu0 19
      %2182 = vperm.xlu0 %2181, %v291
      %v2183 = vpop.permute.xlu0 %2182
      %v2186 = vunpack.c.l.s4 839922192
      %v2187 = vunpack.c.0.s8 %v2186
      %v2188 = vlaneseq
      %v2189 = vshrl.u32 %v2188, 7
      %v2190 = vsub.s32 %v2187, %v2189
      %v2191 = vrot.slane %v2183, %v2190
      %2192 = vset.pattern.permute.xlu0 19
      %2193 = vperm.xlu0 %2192, %v292
      %v2194 = vpop.permute.xlu0 %2193
      %v2197 = vunpack.c.l.s4 839922192
      %v2198 = vunpack.c.0.s8 %v2197
      %v2199 = vlaneseq
      %v2200 = vshrl.u32 %v2199, 7
      %v2201 = vsub.s32 %v2198, %v2200
      %v2202 = vrot.slane %v2194, %v2201
      %2203 = vset.pattern.permute.xlu0 19
      %2204 = vperm.xlu0 %2203, %v293
      %v2205 = vpop.permute.xlu0 %2204
      %v2208 = vunpack.c.l.s4 839922192
      %v2209 = vunpack.c.0.s8 %v2208
      %v2210 = vlaneseq
      %v2211 = vshrl.u32 %v2210, 7
      %v2212 = vsub.s32 %v2209, %v2211
      %v2213 = vrot.slane %v2205, %v2212
      %v2214 = vmul.bf16 %v278, %v2136
      %v2215 = vmul.bf16 %v279, %v2147
      %v2216 = vmul.bf16 %v280, %v2158
      %v2217 = vmul.bf16 %v281, %v2169
      %v2218 = vmul.bf16 %v282, %v2180
      %v2219 = vmul.bf16 %v283, %v2191
      %v2220 = vmul.bf16 %v284, %v2202
      %v2221 = vmul.bf16 %v285, %v2213
      %2222 = vset.pattern.permute.xlu0 20
      %2223 = vperm.xlu0 %2222, %v286
      %v2224 = vpop.permute.xlu0 %2223
      %v2227 = vunpack.c.l.s4 839922192
      %v2228 = vunpack.c.0.s8 %v2227
      %v2229 = vlaneseq
      %v2230 = vshrl.u32 %v2229, 7
      %v2231 = vsub.s32 %v2228, %v2230
      %v2232 = vrot.slane %v2224, %v2231
      %2233 = vset.pattern.permute.xlu0 20
      %2234 = vperm.xlu0 %2233, %v287
      %v2235 = vpop.permute.xlu0 %2234
      %v2238 = vunpack.c.l.s4 839922192
      %v2239 = vunpack.c.0.s8 %v2238
      %v2240 = vlaneseq
      %v2241 = vshrl.u32 %v2240, 7
      %v2242 = vsub.s32 %v2239, %v2241
      %v2243 = vrot.slane %v2235, %v2242
      %2244 = vset.pattern.permute.xlu0 20
      %2245 = vperm.xlu0 %2244, %v288
      %v2246 = vpop.permute.xlu0 %2245
      %v2249 = vunpack.c.l.s4 839922192
      %v2250 = vunpack.c.0.s8 %v2249
      %v2251 = vlaneseq
      %v2252 = vshrl.u32 %v2251, 7
      %v2253 = vsub.s32 %v2250, %v2252
      %v2254 = vrot.slane %v2246, %v2253
      %2255 = vset.pattern.permute.xlu0 20
      %2256 = vperm.xlu0 %2255, %v289
      %v2257 = vpop.permute.xlu0 %2256
      %v2260 = vunpack.c.l.s4 839922192
      %v2261 = vunpack.c.0.s8 %v2260
      %v2262 = vlaneseq
      %v2263 = vshrl.u32 %v2262, 7
      %v2264 = vsub.s32 %v2261, %v2263
      %v2265 = vrot.slane %v2257, %v2264
      %2266 = vset.pattern.permute.xlu0 20
      %2267 = vperm.xlu0 %2266, %v290
      %v2268 = vpop.permute.xlu0 %2267
      %v2271 = vunpack.c.l.s4 839922192
      %v2272 = vunpack.c.0.s8 %v2271
      %v2273 = vlaneseq
      %v2274 = vshrl.u32 %v2273, 7
      %v2275 = vsub.s32 %v2272, %v2274
      %v2276 = vrot.slane %v2268, %v2275
      %2277 = vset.pattern.permute.xlu0 20
      %2278 = vperm.xlu0 %2277, %v291
      %v2279 = vpop.permute.xlu0 %2278
      %v2282 = vunpack.c.l.s4 839922192
      %v2283 = vunpack.c.0.s8 %v2282
      %v2284 = vlaneseq
      %v2285 = vshrl.u32 %v2284, 7
      %v2286 = vsub.s32 %v2283, %v2285
      %v2287 = vrot.slane %v2279, %v2286
      %2288 = vset.pattern.permute.xlu0 20
      %2289 = vperm.xlu0 %2288, %v292
      %v2290 = vpop.permute.xlu0 %2289
      %v2293 = vunpack.c.l.s4 839922192
      %v2294 = vunpack.c.0.s8 %v2293
      %v2295 = vlaneseq
      %v2296 = vshrl.u32 %v2295, 7
      %v2297 = vsub.s32 %v2294, %v2296
      %v2298 = vrot.slane %v2290, %v2297
      %2299 = vset.pattern.permute.xlu0 20
      %2300 = vperm.xlu0 %2299, %v293
      %v2301 = vpop.permute.xlu0 %2300
      %v2304 = vunpack.c.l.s4 839922192
      %v2305 = vunpack.c.0.s8 %v2304
      %v2306 = vlaneseq
      %v2307 = vshrl.u32 %v2306, 7
      %v2308 = vsub.s32 %v2305, %v2307
      %v2309 = vrot.slane %v2301, %v2308
      %v2310 = vmul.bf16 %v278, %v2232
      %v2311 = vmul.bf16 %v279, %v2243
      %v2312 = vmul.bf16 %v280, %v2254
      %v2313 = vmul.bf16 %v281, %v2265
      %v2314 = vmul.bf16 %v282, %v2276
      %v2315 = vmul.bf16 %v283, %v2287
      %v2316 = vmul.bf16 %v284, %v2298
      %v2317 = vmul.bf16 %v285, %v2309
      %2318 = vset.pattern.permute.xlu0 21
      %2319 = vperm.xlu0 %2318, %v286
      %v2320 = vpop.permute.xlu0 %2319
      %v2323 = vunpack.c.l.s4 839922192
      %v2324 = vunpack.c.0.s8 %v2323
      %v2325 = vlaneseq
      %v2326 = vshrl.u32 %v2325, 7
      %v2327 = vsub.s32 %v2324, %v2326
      %v2328 = vrot.slane %v2320, %v2327
      %2329 = vset.pattern.permute.xlu0 21
      %2330 = vperm.xlu0 %2329, %v287
      %v2331 = vpop.permute.xlu0 %2330
      %v2334 = vunpack.c.l.s4 839922192
      %v2335 = vunpack.c.0.s8 %v2334
      %v2336 = vlaneseq
      %v2337 = vshrl.u32 %v2336, 7
      %v2338 = vsub.s32 %v2335, %v2337
      %v2339 = vrot.slane %v2331, %v2338
      %2340 = vset.pattern.permute.xlu0 21
      %2341 = vperm.xlu0 %2340, %v288
      %v2342 = vpop.permute.xlu0 %2341
      %v2345 = vunpack.c.l.s4 839922192
      %v2346 = vunpack.c.0.s8 %v2345
      %v2347 = vlaneseq
      %v2348 = vshrl.u32 %v2347, 7
      %v2349 = vsub.s32 %v2346, %v2348
      %v2350 = vrot.slane %v2342, %v2349
      %2351 = vset.pattern.permute.xlu0 21
      %2352 = vperm.xlu0 %2351, %v289
      %v2353 = vpop.permute.xlu0 %2352
      %v2356 = vunpack.c.l.s4 839922192
      %v2357 = vunpack.c.0.s8 %v2356
      %v2358 = vlaneseq
      %v2359 = vshrl.u32 %v2358, 7
      %v2360 = vsub.s32 %v2357, %v2359
      %v2361 = vrot.slane %v2353, %v2360
      %2362 = vset.pattern.permute.xlu0 21
      %2363 = vperm.xlu0 %2362, %v290
      %v2364 = vpop.permute.xlu0 %2363
      %v2367 = vunpack.c.l.s4 839922192
      %v2368 = vunpack.c.0.s8 %v2367
      %v2369 = vlaneseq
      %v2370 = vshrl.u32 %v2369, 7
      %v2371 = vsub.s32 %v2368, %v2370
      %v2372 = vrot.slane %v2364, %v2371
      %2373 = vset.pattern.permute.xlu0 21
      %2374 = vperm.xlu0 %2373, %v291
      %v2375 = vpop.permute.xlu0 %2374
      %v2378 = vunpack.c.l.s4 839922192
      %v2379 = vunpack.c.0.s8 %v2378
      %v2380 = vlaneseq
      %v2381 = vshrl.u32 %v2380, 7
      %v2382 = vsub.s32 %v2379, %v2381
      %v2383 = vrot.slane %v2375, %v2382
      %2384 = vset.pattern.permute.xlu0 21
      %2385 = vperm.xlu0 %2384, %v292
      %v2386 = vpop.permute.xlu0 %2385
      %v2389 = vunpack.c.l.s4 839922192
      %v2390 = vunpack.c.0.s8 %v2389
      %v2391 = vlaneseq
      %v2392 = vshrl.u32 %v2391, 7
      %v2393 = vsub.s32 %v2390, %v2392
      %v2394 = vrot.slane %v2386, %v2393
      %2395 = vset.pattern.permute.xlu0 21
      %2396 = vperm.xlu0 %2395, %v293
      %v2397 = vpop.permute.xlu0 %2396
      %v2400 = vunpack.c.l.s4 839922192
      %v2401 = vunpack.c.0.s8 %v2400
      %v2402 = vlaneseq
      %v2403 = vshrl.u32 %v2402, 7
      %v2404 = vsub.s32 %v2401, %v2403
      %v2405 = vrot.slane %v2397, %v2404
      %v2406 = vmul.bf16 %v278, %v2328
      %v2407 = vmul.bf16 %v279, %v2339
      %v2408 = vmul.bf16 %v280, %v2350
      %v2409 = vmul.bf16 %v281, %v2361
      %v2410 = vmul.bf16 %v282, %v2372
      %v2411 = vmul.bf16 %v283, %v2383
      %v2412 = vmul.bf16 %v284, %v2394
      %v2413 = vmul.bf16 %v285, %v2405
      %2414 = vset.pattern.permute.xlu0 22
      %2415 = vperm.xlu0 %2414, %v286
      %v2416 = vpop.permute.xlu0 %2415
      %v2419 = vunpack.c.l.s4 839922192
      %v2420 = vunpack.c.0.s8 %v2419
      %v2421 = vlaneseq
      %v2422 = vshrl.u32 %v2421, 7
      %v2423 = vsub.s32 %v2420, %v2422
      %v2424 = vrot.slane %v2416, %v2423
      %2425 = vset.pattern.permute.xlu0 22
      %2426 = vperm.xlu0 %2425, %v287
      %v2427 = vpop.permute.xlu0 %2426
      %v2430 = vunpack.c.l.s4 839922192
      %v2431 = vunpack.c.0.s8 %v2430
      %v2432 = vlaneseq
      %v2433 = vshrl.u32 %v2432, 7
      %v2434 = vsub.s32 %v2431, %v2433
      %v2435 = vrot.slane %v2427, %v2434
      %2436 = vset.pattern.permute.xlu0 22
      %2437 = vperm.xlu0 %2436, %v288
      %v2438 = vpop.permute.xlu0 %2437
      %v2441 = vunpack.c.l.s4 839922192
      %v2442 = vunpack.c.0.s8 %v2441
      %v2443 = vlaneseq
      %v2444 = vshrl.u32 %v2443, 7
      %v2445 = vsub.s32 %v2442, %v2444
      %v2446 = vrot.slane %v2438, %v2445
      %2447 = vset.pattern.permute.xlu0 22
      %2448 = vperm.xlu0 %2447, %v289
      %v2449 = vpop.permute.xlu0 %2448
      %v2452 = vunpack.c.l.s4 839922192
      %v2453 = vunpack.c.0.s8 %v2452
      %v2454 = vlaneseq
      %v2455 = vshrl.u32 %v2454, 7
      %v2456 = vsub.s32 %v2453, %v2455
      %v2457 = vrot.slane %v2449, %v2456
      %2458 = vset.pattern.permute.xlu0 22
      %2459 = vperm.xlu0 %2458, %v290
      %v2460 = vpop.permute.xlu0 %2459
      %v2463 = vunpack.c.l.s4 839922192
      %v2464 = vunpack.c.0.s8 %v2463
      %v2465 = vlaneseq
      %v2466 = vshrl.u32 %v2465, 7
      %v2467 = vsub.s32 %v2464, %v2466
      %v2468 = vrot.slane %v2460, %v2467
      %2469 = vset.pattern.permute.xlu0 22
      %2470 = vperm.xlu0 %2469, %v291
      %v2471 = vpop.permute.xlu0 %2470
      %v2474 = vunpack.c.l.s4 839922192
      %v2475 = vunpack.c.0.s8 %v2474
      %v2476 = vlaneseq
      %v2477 = vshrl.u32 %v2476, 7
      %v2478 = vsub.s32 %v2475, %v2477
      %v2479 = vrot.slane %v2471, %v2478
      %2480 = vset.pattern.permute.xlu0 22
      %2481 = vperm.xlu0 %2480, %v292
      %v2482 = vpop.permute.xlu0 %2481
      %v2485 = vunpack.c.l.s4 839922192
      %v2486 = vunpack.c.0.s8 %v2485
      %v2487 = vlaneseq
      %v2488 = vshrl.u32 %v2487, 7
      %v2489 = vsub.s32 %v2486, %v2488
      %v2490 = vrot.slane %v2482, %v2489
      %2491 = vset.pattern.permute.xlu0 22
      %2492 = vperm.xlu0 %2491, %v293
      %v2493 = vpop.permute.xlu0 %2492
      %v2496 = vunpack.c.l.s4 839922192
      %v2497 = vunpack.c.0.s8 %v2496
      %v2498 = vlaneseq
      %v2499 = vshrl.u32 %v2498, 7
      %v2500 = vsub.s32 %v2497, %v2499
      %v2501 = vrot.slane %v2493, %v2500
      %v2502 = vmul.bf16 %v278, %v2424
      %v2503 = vmul.bf16 %v279, %v2435
      %v2504 = vmul.bf16 %v280, %v2446
      %v2505 = vmul.bf16 %v281, %v2457
      %v2506 = vmul.bf16 %v282, %v2468
      %v2507 = vmul.bf16 %v283, %v2479
      %v2508 = vmul.bf16 %v284, %v2490
      %v2509 = vmul.bf16 %v285, %v2501
      %2510 = vset.pattern.permute.xlu0 23
      %2511 = vperm.xlu0 %2510, %v286
      %v2512 = vpop.permute.xlu0 %2511
      %v2515 = vunpack.c.l.s4 839922192
      %v2516 = vunpack.c.0.s8 %v2515
      %v2517 = vlaneseq
      %v2518 = vshrl.u32 %v2517, 7
      %v2519 = vsub.s32 %v2516, %v2518
      %v2520 = vrot.slane %v2512, %v2519
      %2521 = vset.pattern.permute.xlu0 23
      %2522 = vperm.xlu0 %2521, %v287
      %v2523 = vpop.permute.xlu0 %2522
      %v2526 = vunpack.c.l.s4 839922192
      %v2527 = vunpack.c.0.s8 %v2526
      %v2528 = vlaneseq
      %v2529 = vshrl.u32 %v2528, 7
      %v2530 = vsub.s32 %v2527, %v2529
      %v2531 = vrot.slane %v2523, %v2530
      %2532 = vset.pattern.permute.xlu0 23
      %2533 = vperm.xlu0 %2532, %v288
      %v2534 = vpop.permute.xlu0 %2533
      %v2537 = vunpack.c.l.s4 839922192
      %v2538 = vunpack.c.0.s8 %v2537
      %v2539 = vlaneseq
      %v2540 = vshrl.u32 %v2539, 7
      %v2541 = vsub.s32 %v2538, %v2540
      %v2542 = vrot.slane %v2534, %v2541
      %2543 = vset.pattern.permute.xlu0 23
      %2544 = vperm.xlu0 %2543, %v289
      %v2545 = vpop.permute.xlu0 %2544
      %v2548 = vunpack.c.l.s4 839922192
      %v2549 = vunpack.c.0.s8 %v2548
      %v2550 = vlaneseq
      %v2551 = vshrl.u32 %v2550, 7
      %v2552 = vsub.s32 %v2549, %v2551
      %v2553 = vrot.slane %v2545, %v2552
      %2554 = vset.pattern.permute.xlu0 23
      %2555 = vperm.xlu0 %2554, %v290
      %v2556 = vpop.permute.xlu0 %2555
      %v2559 = vunpack.c.l.s4 839922192
      %v2560 = vunpack.c.0.s8 %v2559
      %v2561 = vlaneseq
      %v2562 = vshrl.u32 %v2561, 7
      %v2563 = vsub.s32 %v2560, %v2562
      %v2564 = vrot.slane %v2556, %v2563
      %2565 = vset.pattern.permute.xlu0 23
      %2566 = vperm.xlu0 %2565, %v291
      %v2567 = vpop.permute.xlu0 %2566
      %v2570 = vunpack.c.l.s4 839922192
      %v2571 = vunpack.c.0.s8 %v2570
      %v2572 = vlaneseq
      %v2573 = vshrl.u32 %v2572, 7
      %v2574 = vsub.s32 %v2571, %v2573
      %v2575 = vrot.slane %v2567, %v2574
      %2576 = vset.pattern.permute.xlu0 23
      %2577 = vperm.xlu0 %2576, %v292
      %v2578 = vpop.permute.xlu0 %2577
      %v2581 = vunpack.c.l.s4 839922192
      %v2582 = vunpack.c.0.s8 %v2581
      %v2583 = vlaneseq
      %v2584 = vshrl.u32 %v2583, 7
      %v2585 = vsub.s32 %v2582, %v2584
      %v2586 = vrot.slane %v2578, %v2585
      %2587 = vset.pattern.permute.xlu0 23
      %2588 = vperm.xlu0 %2587, %v293
      %v2589 = vpop.permute.xlu0 %2588
      %v2592 = vunpack.c.l.s4 839922192
      %v2593 = vunpack.c.0.s8 %v2592
      %v2594 = vlaneseq
      %v2595 = vshrl.u32 %v2594, 7
      %v2596 = vsub.s32 %v2593, %v2595
      %v2597 = vrot.slane %v2589, %v2596
      %v2598 = vmul.bf16 %v278, %v2520
      %v2599 = vmul.bf16 %v279, %v2531
      %v2600 = vmul.bf16 %v280, %v2542
      %v2601 = vmul.bf16 %v281, %v2553
      %v2602 = vmul.bf16 %v282, %v2564
      %v2603 = vmul.bf16 %v283, %v2575
      %v2604 = vmul.bf16 %v284, %v2586
      %v2605 = vmul.bf16 %v285, %v2597
      %v2614 = vunpack.c.l.b16 %v390
      %v2615 = vunpack.c.l.b16 %v391
      %v2616 = vunpack.c.l.b16 %v392
      %v2617 = vunpack.c.l.b16 %v393
      %v2618 = vunpack.c.l.b16 %v394
      %v2619 = vunpack.c.l.b16 %v395
      %v2620 = vunpack.c.l.b16 %v396
      %v2621 = vunpack.c.l.b16 %v397
      %v2622 = vpack.c.b16 %v2615, %v2614
      %v2623 = vpack.c.b16 %v2617, %v2616
      %v2624 = vpack.c.b16 %v2619, %v2618
      %v2625 = vpack.c.b16 %v2621, %v2620
      %v2634 = vunpack.c.l.b16 %v486
      %v2635 = vunpack.c.l.b16 %v487
      %v2636 = vunpack.c.l.b16 %v488
      %v2637 = vunpack.c.l.b16 %v489
      %v2638 = vunpack.c.l.b16 %v490
      %v2639 = vunpack.c.l.b16 %v491
      %v2640 = vunpack.c.l.b16 %v492
      %v2641 = vunpack.c.l.b16 %v493
      %v2642 = vpack.c.b16 %v2635, %v2634
      %v2643 = vpack.c.b16 %v2637, %v2636
      %v2644 = vpack.c.b16 %v2639, %v2638
      %v2645 = vpack.c.b16 %v2641, %v2640
      %2646 = vrot.lane.b32.xlu0 %v2642, 32
      %v2647 = vpop.permute.xlu0 %2646
      %2648 = vrot.lane.b32.xlu0 %v2643, 32
      %v2649 = vpop.permute.xlu0 %2648
      %2650 = vrot.lane.b32.xlu0 %v2644, 32
      %v2651 = vpop.permute.xlu0 %2650
      %2652 = vrot.lane.b32.xlu0 %v2645, 32
      %v2653 = vpop.permute.xlu0 %2652
      %v2662 = vunpack.c.l.b16 %v582
      %v2663 = vunpack.c.l.b16 %v583
      %v2664 = vunpack.c.l.b16 %v584
      %v2665 = vunpack.c.l.b16 %v585
      %v2666 = vunpack.c.l.b16 %v586
      %v2667 = vunpack.c.l.b16 %v587
      %v2668 = vunpack.c.l.b16 %v588
      %v2669 = vunpack.c.l.b16 %v589
      %v2670 = vpack.c.b16 %v2663, %v2662
      %v2671 = vpack.c.b16 %v2665, %v2664
      %v2672 = vpack.c.b16 %v2667, %v2666
      %v2673 = vpack.c.b16 %v2669, %v2668
      %2674 = vrot.lane.b32.xlu0 %v2670, 64
      %v2675 = vpop.permute.xlu0 %2674
      %2676 = vrot.lane.b32.xlu0 %v2671, 64
      %v2677 = vpop.permute.xlu0 %2676
      %2678 = vrot.lane.b32.xlu0 %v2672, 64
      %v2679 = vpop.permute.xlu0 %2678
      %2680 = vrot.lane.b32.xlu0 %v2673, 64
      %v2681 = vpop.permute.xlu0 %2680
      %v2690 = vunpack.c.l.b16 %v678
      %v2691 = vunpack.c.l.b16 %v679
      %v2692 = vunpack.c.l.b16 %v680
      %v2693 = vunpack.c.l.b16 %v681
      %v2694 = vunpack.c.l.b16 %v682
      %v2695 = vunpack.c.l.b16 %v683
      %v2696 = vunpack.c.l.b16 %v684
      %v2697 = vunpack.c.l.b16 %v685
      %v2698 = vpack.c.b16 %v2691, %v2690
      %v2699 = vpack.c.b16 %v2693, %v2692
      %v2700 = vpack.c.b16 %v2695, %v2694
      %v2701 = vpack.c.b16 %v2697, %v2696
      %2702 = vrot.lane.b32.xlu0 %v2698, 96
      %v2703 = vpop.permute.xlu0 %2702
      %2704 = vrot.lane.b32.xlu0 %v2699, 96
      %v2705 = vpop.permute.xlu0 %2704
      %2706 = vrot.lane.b32.xlu0 %v2700, 96
      %v2707 = vpop.permute.xlu0 %2706
      %2708 = vrot.lane.b32.xlu0 %v2701, 96
      %v2709 = vpop.permute.xlu0 %2708
      %v2718 = vunpack.c.l.b16 %v774
      %v2719 = vunpack.c.l.b16 %v775
      %v2720 = vunpack.c.l.b16 %v776
      %v2721 = vunpack.c.l.b16 %v777
      %v2722 = vunpack.c.l.b16 %v778
      %v2723 = vunpack.c.l.b16 %v779
      %v2724 = vunpack.c.l.b16 %v780
      %v2725 = vunpack.c.l.b16 %v781
      %v2726 = vpack.c.b16 %v2719, %v2718
      %v2727 = vpack.c.b16 %v2721, %v2720
      %v2728 = vpack.c.b16 %v2723, %v2722
      %v2729 = vpack.c.b16 %v2725, %v2724
      %v2738 = vunpack.c.l.b16 %v870
      %v2739 = vunpack.c.l.b16 %v871
      %v2740 = vunpack.c.l.b16 %v872
      %v2741 = vunpack.c.l.b16 %v873
      %v2742 = vunpack.c.l.b16 %v874
      %v2743 = vunpack.c.l.b16 %v875
      %v2744 = vunpack.c.l.b16 %v876
      %v2745 = vunpack.c.l.b16 %v877
      %v2746 = vpack.c.b16 %v2739, %v2738
      %v2747 = vpack.c.b16 %v2741, %v2740
      %v2748 = vpack.c.b16 %v2743, %v2742
      %v2749 = vpack.c.b16 %v2745, %v2744
      %2750 = vrot.lane.b32.xlu0 %v2746, 32
      %v2751 = vpop.permute.xlu0 %2750
      %2752 = vrot.lane.b32.xlu0 %v2747, 32
      %v2753 = vpop.permute.xlu0 %2752
      %2754 = vrot.lane.b32.xlu0 %v2748, 32
      %v2755 = vpop.permute.xlu0 %2754
      %2756 = vrot.lane.b32.xlu0 %v2749, 32
      %v2757 = vpop.permute.xlu0 %2756
      %v2766 = vunpack.c.l.b16 %v966
      %v2767 = vunpack.c.l.b16 %v967
      %v2768 = vunpack.c.l.b16 %v968
      %v2769 = vunpack.c.l.b16 %v969
      %v2770 = vunpack.c.l.b16 %v970
      %v2771 = vunpack.c.l.b16 %v971
      %v2772 = vunpack.c.l.b16 %v972
      %v2773 = vunpack.c.l.b16 %v973
      %v2774 = vpack.c.b16 %v2767, %v2766
      %v2775 = vpack.c.b16 %v2769, %v2768
      %v2776 = vpack.c.b16 %v2771, %v2770
      %v2777 = vpack.c.b16 %v2773, %v2772
      %2778 = vrot.lane.b32.xlu0 %v2774, 64
      %v2779 = vpop.permute.xlu0 %2778
      %2780 = vrot.lane.b32.xlu0 %v2775, 64
      %v2781 = vpop.permute.xlu0 %2780
      %2782 = vrot.lane.b32.xlu0 %v2776, 64
      %v2783 = vpop.permute.xlu0 %2782
      %2784 = vrot.lane.b32.xlu0 %v2777, 64
      %v2785 = vpop.permute.xlu0 %2784
      %v2794 = vunpack.c.l.b16 %v1062
      %v2795 = vunpack.c.l.b16 %v1063
      %v2796 = vunpack.c.l.b16 %v1064
      %v2797 = vunpack.c.l.b16 %v1065
      %v2798 = vunpack.c.l.b16 %v1066
      %v2799 = vunpack.c.l.b16 %v1067
      %v2800 = vunpack.c.l.b16 %v1068
      %v2801 = vunpack.c.l.b16 %v1069
      %v2802 = vpack.c.b16 %v2795, %v2794
      %v2803 = vpack.c.b16 %v2797, %v2796
      %v2804 = vpack.c.b16 %v2799, %v2798
      %v2805 = vpack.c.b16 %v2801, %v2800
      %2806 = vrot.lane.b32.xlu0 %v2802, 96
      %v2807 = vpop.permute.xlu0 %2806
      %2808 = vrot.lane.b32.xlu0 %v2803, 96
      %v2809 = vpop.permute.xlu0 %2808
      %2810 = vrot.lane.b32.xlu0 %v2804, 96
      %v2811 = vpop.permute.xlu0 %2810
      %2812 = vrot.lane.b32.xlu0 %v2805, 96
      %v2813 = vpop.permute.xlu0 %2812
      %v2822 = vunpack.c.l.b16 %v1158
      %v2823 = vunpack.c.l.b16 %v1159
      %v2824 = vunpack.c.l.b16 %v1160
      %v2825 = vunpack.c.l.b16 %v1161
      %v2826 = vunpack.c.l.b16 %v1162
      %v2827 = vunpack.c.l.b16 %v1163
      %v2828 = vunpack.c.l.b16 %v1164
      %v2829 = vunpack.c.l.b16 %v1165
      %v2830 = vpack.c.b16 %v2823, %v2822
      %v2831 = vpack.c.b16 %v2825, %v2824
      %v2832 = vpack.c.b16 %v2827, %v2826
      %v2833 = vpack.c.b16 %v2829, %v2828
      %v2842 = vunpack.c.l.b16 %v1254
      %v2843 = vunpack.c.l.b16 %v1255
      %v2844 = vunpack.c.l.b16 %v1256
      %v2845 = vunpack.c.l.b16 %v1257
      %v2846 = vunpack.c.l.b16 %v1258
      %v2847 = vunpack.c.l.b16 %v1259
      %v2848 = vunpack.c.l.b16 %v1260
      %v2849 = vunpack.c.l.b16 %v1261
      %v2850 = vpack.c.b16 %v2843, %v2842
      %v2851 = vpack.c.b16 %v2845, %v2844
      %v2852 = vpack.c.b16 %v2847, %v2846
      %v2853 = vpack.c.b16 %v2849, %v2848
      %2854 = vrot.lane.b32.xlu0 %v2850, 32
      %v2855 = vpop.permute.xlu0 %2854
      %2856 = vrot.lane.b32.xlu0 %v2851, 32
      %v2857 = vpop.permute.xlu0 %2856
      %2858 = vrot.lane.b32.xlu0 %v2852, 32
      %v2859 = vpop.permute.xlu0 %2858
      %2860 = vrot.lane.b32.xlu0 %v2853, 32
      %v2861 = vpop.permute.xlu0 %2860
      %v2870 = vunpack.c.l.b16 %v1350
      %v2871 = vunpack.c.l.b16 %v1351
      %v2872 = vunpack.c.l.b16 %v1352
      %v2873 = vunpack.c.l.b16 %v1353
      %v2874 = vunpack.c.l.b16 %v1354
      %v2875 = vunpack.c.l.b16 %v1355
      %v2876 = vunpack.c.l.b16 %v1356
      %v2877 = vunpack.c.l.b16 %v1357
      %v2878 = vpack.c.b16 %v2871, %v2870
      %v2879 = vpack.c.b16 %v2873, %v2872
      %v2880 = vpack.c.b16 %v2875, %v2874
      %v2881 = vpack.c.b16 %v2877, %v2876
      %2882 = vrot.lane.b32.xlu0 %v2878, 64
      %v2883 = vpop.permute.xlu0 %2882
      %2884 = vrot.lane.b32.xlu0 %v2879, 64
      %v2885 = vpop.permute.xlu0 %2884
      %2886 = vrot.lane.b32.xlu0 %v2880, 64
      %v2887 = vpop.permute.xlu0 %2886
      %2888 = vrot.lane.b32.xlu0 %v2881, 64
      %v2889 = vpop.permute.xlu0 %2888
      %v2898 = vunpack.c.l.b16 %v1446
      %v2899 = vunpack.c.l.b16 %v1447
      %v2900 = vunpack.c.l.b16 %v1448
      %v2901 = vunpack.c.l.b16 %v1449
      %v2902 = vunpack.c.l.b16 %v1450
      %v2903 = vunpack.c.l.b16 %v1451
      %v2904 = vunpack.c.l.b16 %v1452
      %v2905 = vunpack.c.l.b16 %v1453
      %v2906 = vpack.c.b16 %v2899, %v2898
      %v2907 = vpack.c.b16 %v2901, %v2900
      %v2908 = vpack.c.b16 %v2903, %v2902
      %v2909 = vpack.c.b16 %v2905, %v2904
      %2910 = vrot.lane.b32.xlu0 %v2906, 96
      %v2911 = vpop.permute.xlu0 %2910
      %2912 = vrot.lane.b32.xlu0 %v2907, 96
      %v2913 = vpop.permute.xlu0 %2912
      %2914 = vrot.lane.b32.xlu0 %v2908, 96
      %v2915 = vpop.permute.xlu0 %2914
      %2916 = vrot.lane.b32.xlu0 %v2909, 96
      %v2917 = vpop.permute.xlu0 %2916
      %v2926 = vunpack.c.l.b16 %v1542
      %v2927 = vunpack.c.l.b16 %v1543
      %v2928 = vunpack.c.l.b16 %v1544
      %v2929 = vunpack.c.l.b16 %v1545
      %v2930 = vunpack.c.l.b16 %v1546
      %v2931 = vunpack.c.l.b16 %v1547
      %v2932 = vunpack.c.l.b16 %v1548
      %v2933 = vunpack.c.l.b16 %v1549
      %v2934 = vpack.c.b16 %v2927, %v2926
      %v2935 = vpack.c.b16 %v2929, %v2928
      %v2936 = vpack.c.b16 %v2931, %v2930
      %v2937 = vpack.c.b16 %v2933, %v2932
      %v2946 = vunpack.c.l.b16 %v1638
      %v2947 = vunpack.c.l.b16 %v1639
      %v2948 = vunpack.c.l.b16 %v1640
      %v2949 = vunpack.c.l.b16 %v1641
      %v2950 = vunpack.c.l.b16 %v1642
      %v2951 = vunpack.c.l.b16 %v1643
      %v2952 = vunpack.c.l.b16 %v1644
      %v2953 = vunpack.c.l.b16 %v1645
      %v2954 = vpack.c.b16 %v2947, %v2946
      %v2955 = vpack.c.b16 %v2949, %v2948
      %v2956 = vpack.c.b16 %v2951, %v2950
      %v2957 = vpack.c.b16 %v2953, %v2952
      %2958 = vrot.lane.b32.xlu0 %v2954, 32
      %v2959 = vpop.permute.xlu0 %2958
      %2960 = vrot.lane.b32.xlu0 %v2955, 32
      %v2961 = vpop.permute.xlu0 %2960
      %2962 = vrot.lane.b32.xlu0 %v2956, 32
      %v2963 = vpop.permute.xlu0 %2962
      %2964 = vrot.lane.b32.xlu0 %v2957, 32
      %v2965 = vpop.permute.xlu0 %2964
      %v2974 = vunpack.c.l.b16 %v1734
      %v2975 = vunpack.c.l.b16 %v1735
      %v2976 = vunpack.c.l.b16 %v1736
      %v2977 = vunpack.c.l.b16 %v1737
      %v2978 = vunpack.c.l.b16 %v1738
      %v2979 = vunpack.c.l.b16 %v1739
      %v2980 = vunpack.c.l.b16 %v1740
      %v2981 = vunpack.c.l.b16 %v1741
      %v2982 = vpack.c.b16 %v2975, %v2974
      %v2983 = vpack.c.b16 %v2977, %v2976
      %v2984 = vpack.c.b16 %v2979, %v2978
      %v2985 = vpack.c.b16 %v2981, %v2980
      %2986 = vrot.lane.b32.xlu0 %v2982, 64
      %v2987 = vpop.permute.xlu0 %2986
      %2988 = vrot.lane.b32.xlu0 %v2983, 64
      %v2989 = vpop.permute.xlu0 %2988
      %2990 = vrot.lane.b32.xlu0 %v2984, 64
      %v2991 = vpop.permute.xlu0 %2990
      %2992 = vrot.lane.b32.xlu0 %v2985, 64
      %v2993 = vpop.permute.xlu0 %2992
      %v3002 = vunpack.c.l.b16 %v1830
      %v3003 = vunpack.c.l.b16 %v1831
      %v3004 = vunpack.c.l.b16 %v1832
      %v3005 = vunpack.c.l.b16 %v1833
      %v3006 = vunpack.c.l.b16 %v1834
      %v3007 = vunpack.c.l.b16 %v1835
      %v3008 = vunpack.c.l.b16 %v1836
      %v3009 = vunpack.c.l.b16 %v1837
      %v3010 = vpack.c.b16 %v3003, %v3002
      %v3011 = vpack.c.b16 %v3005, %v3004
      %v3012 = vpack.c.b16 %v3007, %v3006
      %v3013 = vpack.c.b16 %v3009, %v3008
      %3014 = vrot.lane.b32.xlu0 %v3010, 96
      %v3015 = vpop.permute.xlu0 %3014
      %3016 = vrot.lane.b32.xlu0 %v3011, 96
      %v3017 = vpop.permute.xlu0 %3016
      %3018 = vrot.lane.b32.xlu0 %v3012, 96
      %v3019 = vpop.permute.xlu0 %3018
      %3020 = vrot.lane.b32.xlu0 %v3013, 96
      %v3021 = vpop.permute.xlu0 %3020
      %vm3022 = vcmask 261120
      %v3025 = vsel %vm3022, %v2622, %v2647
      %v3028 = vsel %vm3022, %v2623, %v2649
      %v3031 = vsel %vm3022, %v2624, %v2651
      %v3034 = vsel %vm3022, %v2625, %v2653
      %vm3035 = vcmask 523264
      %v3037 = vsel %vm3035, %v3025, %v2675
      %v3039 = vsel %vm3035, %v3028, %v2677
      %v3041 = vsel %vm3035, %v3031, %v2679
      %v3043 = vsel %vm3035, %v3034, %v2681
      %vm3044 = vcmask 785408
      %v3046 = vsel %vm3044, %v3037, %v2703
      %v3049 = vsel %vm3044, %v3039, %v2705
      %v3052 = vsel %vm3044, %v3041, %v2707
      %v3055 = vsel %vm3044, %v3043, %v2709
      %v3059 = vsel %vm3022, %v2726, %v2751
      %v3062 = vsel %vm3022, %v2727, %v2753
      %v3065 = vsel %vm3022, %v2728, %v2755
      %v3068 = vsel %vm3022, %v2729, %v2757
      %v3070 = vsel %vm3035, %v3059, %v2779
      %v3072 = vsel %vm3035, %v3062, %v2781
      %v3074 = vsel %vm3035, %v3065, %v2783
      %v3076 = vsel %vm3035, %v3068, %v2785
      %v3078 = vsel %vm3044, %v3070, %v2807
      %v3081 = vsel %vm3044, %v3072, %v2809
      %v3084 = vsel %vm3044, %v3074, %v2811
      %v3087 = vsel %vm3044, %v3076, %v2813
      %v3091 = vsel %vm3022, %v2830, %v2855
      %v3094 = vsel %vm3022, %v2831, %v2857
      %v3097 = vsel %vm3022, %v2832, %v2859
      %v3100 = vsel %vm3022, %v2833, %v2861
      %v3102 = vsel %vm3035, %v3091, %v2883
      %v3104 = vsel %vm3035, %v3094, %v2885
      %v3106 = vsel %vm3035, %v3097, %v2887
      %v3108 = vsel %vm3035, %v3100, %v2889
      %v3110 = vsel %vm3044, %v3102, %v2911
      %v3113 = vsel %vm3044, %v3104, %v2913
      %v3116 = vsel %vm3044, %v3106, %v2915
      %v3119 = vsel %vm3044, %v3108, %v2917
      %v3123 = vsel %vm3022, %v2934, %v2959
      %v3126 = vsel %vm3022, %v2935, %v2961
      %v3129 = vsel %vm3022, %v2936, %v2963
      %v3132 = vsel %vm3022, %v2937, %v2965
      %v3134 = vsel %vm3035, %v3123, %v2987
      %v3136 = vsel %vm3035, %v3126, %v2989
      %v3138 = vsel %vm3035, %v3129, %v2991
      %v3140 = vsel %vm3035, %v3132, %v2993
      %v3142 = vsel %vm3044, %v3134, %v3015
      %v3145 = vsel %vm3044, %v3136, %v3017
      %v3148 = vsel %vm3044, %v3138, %v3019
      %v3151 = vsel %vm3044, %v3140, %v3021
      %v3161 = vunpack.c.l.b16 %v1926
      %v3162 = vunpack.c.l.b16 %v1927
      %v3163 = vunpack.c.l.b16 %v1928
      %v3164 = vunpack.c.l.b16 %v1929
      %v3165 = vunpack.c.l.b16 %v1930
      %v3166 = vunpack.c.l.b16 %v1931
      %v3167 = vunpack.c.l.b16 %v1932
      %v3168 = vunpack.c.l.b16 %v1933
      %v3169 = vpack.c.b16 %v3162, %v3161
      %v3170 = vpack.c.b16 %v3164, %v3163
      %v3171 = vpack.c.b16 %v3166, %v3165
      %v3172 = vpack.c.b16 %v3168, %v3167
      %v3181 = vunpack.c.l.b16 %v2022
      %v3182 = vunpack.c.l.b16 %v2023
      %v3183 = vunpack.c.l.b16 %v2024
      %v3184 = vunpack.c.l.b16 %v2025
      %v3185 = vunpack.c.l.b16 %v2026
      %v3186 = vunpack.c.l.b16 %v2027
      %v3187 = vunpack.c.l.b16 %v2028
      %v3188 = vunpack.c.l.b16 %v2029
      %v3189 = vpack.c.b16 %v3182, %v3181
      %v3190 = vpack.c.b16 %v3184, %v3183
      %v3191 = vpack.c.b16 %v3186, %v3185
      %v3192 = vpack.c.b16 %v3188, %v3187
      %3193 = vrot.lane.b32.xlu0 %v3189, 32
      %v3194 = vpop.permute.xlu0 %3193
      %3195 = vrot.lane.b32.xlu0 %v3190, 32
      %v3196 = vpop.permute.xlu0 %3195
      %3197 = vrot.lane.b32.xlu0 %v3191, 32
      %v3198 = vpop.permute.xlu0 %3197
      %3199 = vrot.lane.b32.xlu0 %v3192, 32
      %v3200 = vpop.permute.xlu0 %3199
      %v3209 = vunpack.c.l.b16 %v2118
      %v3210 = vunpack.c.l.b16 %v2119
      %v3211 = vunpack.c.l.b16 %v2120
      %v3212 = vunpack.c.l.b16 %v2121
      %v3213 = vunpack.c.l.b16 %v2122
      %v3214 = vunpack.c.l.b16 %v2123
      %v3215 = vunpack.c.l.b16 %v2124
      %v3216 = vunpack.c.l.b16 %v2125
      %v3217 = vpack.c.b16 %v3210, %v3209
      %v3218 = vpack.c.b16 %v3212, %v3211
      %v3219 = vpack.c.b16 %v3214, %v3213
      %v3220 = vpack.c.b16 %v3216, %v3215
      %3221 = vrot.lane.b32.xlu0 %v3217, 64
      %v3222 = vpop.permute.xlu0 %3221
      %3223 = vrot.lane.b32.xlu0 %v3218, 64
      %v3224 = vpop.permute.xlu0 %3223
      %3225 = vrot.lane.b32.xlu0 %v3219, 64
      %v3226 = vpop.permute.xlu0 %3225
      %3227 = vrot.lane.b32.xlu0 %v3220, 64
      %v3228 = vpop.permute.xlu0 %3227
      %v3237 = vunpack.c.l.b16 %v2214
      %v3238 = vunpack.c.l.b16 %v2215
      %v3239 = vunpack.c.l.b16 %v2216
      %v3240 = vunpack.c.l.b16 %v2217
      %v3241 = vunpack.c.l.b16 %v2218
      %v3242 = vunpack.c.l.b16 %v2219
      %v3243 = vunpack.c.l.b16 %v2220
      %v3244 = vunpack.c.l.b16 %v2221
      %v3245 = vpack.c.b16 %v3238, %v3237
      %v3246 = vpack.c.b16 %v3240, %v3239
      %v3247 = vpack.c.b16 %v3242, %v3241
      %v3248 = vpack.c.b16 %v3244, %v3243
      %3249 = vrot.lane.b32.xlu0 %v3245, 96
      %v3250 = vpop.permute.xlu0 %3249
      %3251 = vrot.lane.b32.xlu0 %v3246, 96
      %v3252 = vpop.permute.xlu0 %3251
      %3253 = vrot.lane.b32.xlu0 %v3247, 96
      %v3254 = vpop.permute.xlu0 %3253
      %3255 = vrot.lane.b32.xlu0 %v3248, 96
      %v3256 = vpop.permute.xlu0 %3255
      %v3265 = vunpack.c.l.b16 %v2310
      %v3266 = vunpack.c.l.b16 %v2311
      %v3267 = vunpack.c.l.b16 %v2312
      %v3268 = vunpack.c.l.b16 %v2313
      %v3269 = vunpack.c.l.b16 %v2314
      %v3270 = vunpack.c.l.b16 %v2315
      %v3271 = vunpack.c.l.b16 %v2316
      %v3272 = vunpack.c.l.b16 %v2317
      %v3273 = vpack.c.b16 %v3266, %v3265
      %v3274 = vpack.c.b16 %v3268, %v3267
      %v3275 = vpack.c.b16 %v3270, %v3269
      %v3276 = vpack.c.b16 %v3272, %v3271
      %v3285 = vunpack.c.l.b16 %v2406
      %v3286 = vunpack.c.l.b16 %v2407
      %v3287 = vunpack.c.l.b16 %v2408
      %v3288 = vunpack.c.l.b16 %v2409
      %v3289 = vunpack.c.l.b16 %v2410
      %v3290 = vunpack.c.l.b16 %v2411
      %v3291 = vunpack.c.l.b16 %v2412
      %v3292 = vunpack.c.l.b16 %v2413
      %v3293 = vpack.c.b16 %v3286, %v3285
      %v3294 = vpack.c.b16 %v3288, %v3287
      %v3295 = vpack.c.b16 %v3290, %v3289
      %v3296 = vpack.c.b16 %v3292, %v3291
      %3297 = vrot.lane.b32.xlu0 %v3293, 32
      %v3298 = vpop.permute.xlu0 %3297
      %3299 = vrot.lane.b32.xlu0 %v3294, 32
      %v3300 = vpop.permute.xlu0 %3299
      %3301 = vrot.lane.b32.xlu0 %v3295, 32
      %v3302 = vpop.permute.xlu0 %3301
      %3303 = vrot.lane.b32.xlu0 %v3296, 32
      %v3304 = vpop.permute.xlu0 %3303
      %v3313 = vunpack.c.l.b16 %v2502
      %v3314 = vunpack.c.l.b16 %v2503
      %v3315 = vunpack.c.l.b16 %v2504
      %v3316 = vunpack.c.l.b16 %v2505
      %v3317 = vunpack.c.l.b16 %v2506
      %v3318 = vunpack.c.l.b16 %v2507
      %v3319 = vunpack.c.l.b16 %v2508
      %v3320 = vunpack.c.l.b16 %v2509
      %v3321 = vpack.c.b16 %v3314, %v3313
      %v3322 = vpack.c.b16 %v3316, %v3315
      %v3323 = vpack.c.b16 %v3318, %v3317
      %v3324 = vpack.c.b16 %v3320, %v3319
      %3325 = vrot.lane.b32.xlu0 %v3321, 64
      %v3326 = vpop.permute.xlu0 %3325
      %3327 = vrot.lane.b32.xlu0 %v3322, 64
      %v3328 = vpop.permute.xlu0 %3327
      %3329 = vrot.lane.b32.xlu0 %v3323, 64
      %v3330 = vpop.permute.xlu0 %3329
      %3331 = vrot.lane.b32.xlu0 %v3324, 64
      %v3332 = vpop.permute.xlu0 %3331
      %v3341 = vunpack.c.l.b16 %v2598
      %v3342 = vunpack.c.l.b16 %v2599
      %v3343 = vunpack.c.l.b16 %v2600
      %v3344 = vunpack.c.l.b16 %v2601
      %v3345 = vunpack.c.l.b16 %v2602
      %v3346 = vunpack.c.l.b16 %v2603
      %v3347 = vunpack.c.l.b16 %v2604
      %v3348 = vunpack.c.l.b16 %v2605
      %v3349 = vpack.c.b16 %v3342, %v3341
      %v3350 = vpack.c.b16 %v3344, %v3343
      %v3351 = vpack.c.b16 %v3346, %v3345
      %v3352 = vpack.c.b16 %v3348, %v3347
      %3353 = vrot.lane.b32.xlu0 %v3349, 96
      %v3354 = vpop.permute.xlu0 %3353
      %3355 = vrot.lane.b32.xlu0 %v3350, 96
      %v3356 = vpop.permute.xlu0 %3355
      %3357 = vrot.lane.b32.xlu0 %v3351, 96
      %v3358 = vpop.permute.xlu0 %3357
      %3359 = vrot.lane.b32.xlu0 %v3352, 96
      %v3360 = vpop.permute.xlu0 %3359
      %v3363 = vsel %vm3022, %v3169, %v3194
      %v3366 = vsel %vm3022, %v3170, %v3196
      %v3369 = vsel %vm3022, %v3171, %v3198
      %v3372 = vsel %vm3022, %v3172, %v3200
      %v3374 = vsel %vm3035, %v3363, %v3222
      %v3376 = vsel %vm3035, %v3366, %v3224
      %v3378 = vsel %vm3035, %v3369, %v3226
      %v3380 = vsel %vm3035, %v3372, %v3228
      %v3382 = vsel %vm3044, %v3374, %v3250
      %v3385 = vsel %vm3044, %v3376, %v3252
      %v3388 = vsel %vm3044, %v3378, %v3254
      %v3391 = vsel %vm3044, %v3380, %v3256
      %v3395 = vsel %vm3022, %v3273, %v3298
      %v3398 = vsel %vm3022, %v3274, %v3300
      %v3401 = vsel %vm3022, %v3275, %v3302
      %v3404 = vsel %vm3022, %v3276, %v3304
      %v3406 = vsel %vm3035, %v3395, %v3326
      %v3408 = vsel %vm3035, %v3398, %v3328
      %v3410 = vsel %vm3035, %v3401, %v3330
      %v3412 = vsel %vm3035, %v3404, %v3332
      %v3414 = vsel %vm3044, %v3406, %v3354
      %v3417 = vsel %vm3044, %v3408, %v3356
      %v3420 = vsel %vm3044, %v3410, %v3358
      %v3423 = vsel %vm3044, %v3412, %v3360
      %v3425 = vld [vmem:[%s2] sm:$0xff]
      %v3426 = vld [vmem:[%s2 + $0x8] sm:$0xf]
      %v3427 = vld [vmem:[%s2 + $0xc] sm:$0xff]
      %v3428 = vld [vmem:[%s2 + $0x14] sm:$0xf]
      %v3429 = vld [vmem:[%s2 + $0x18] sm:$0xff]
      %v3430 = vld [vmem:[%s2 + $0x20] sm:$0xf]
      %v3431 = vld [vmem:[%s2 + $0x24] sm:$0xff]
      %v3432 = vld [vmem:[%s2 + $0x2c] sm:$0xf]
      %v3433 = vld [vmem:[%s2 + $0x30] sm:$0xff]
      %v3434 = vld [vmem:[%s2 + $0x38] sm:$0xf]
      %v3435 = vld [vmem:[%s2 + $0x3c] sm:$0xff]
      %v3436 = vld [vmem:[%s2 + $0x44] sm:$0xf]
      %v3437 = vld [vmem:[%s2 + $0x48] sm:$0xff]
      %v3438 = vld [vmem:[%s2 + $0x50] sm:$0xf]
      %v3439 = vld [vmem:[%s2 + $0x54] sm:$0xff]
      %v3440 = vld [vmem:[%s2 + $0x5c] sm:$0xf]
      %v3441 = vld [vmem:[%s2 + $0x60] sm:$0xff]
      %v3442 = vld [vmem:[%s2 + $0x68] sm:$0xf]
      %v3443 = vld [vmem:[%s2 + $0x6c] sm:$0xff]
      %v3444 = vld [vmem:[%s2 + $0x74] sm:$0xf]
      %v3445 = vld [vmem:[%s2 + $0x78] sm:$0xff]
      %v3446 = vld [vmem:[%s2 + $0x80] sm:$0xf]
      %v3447 = vld [vmem:[%s2 + $0x84] sm:$0xff]
      %v3448 = vld [vmem:[%s2 + $0x8c] sm:$0xf]
      %v3449 = vld [vmem:[%s2 + $0x90] sm:$0xff]
      %v3450 = vld [vmem:[%s2 + $0x98] sm:$0xf]
      %v3451 = vld [vmem:[%s2 + $0x9c] sm:$0xff]
      %v3452 = vld [vmem:[%s2 + $0xa4] sm:$0xf]
      %v3453 = vld [vmem:[%s2 + $0xa8] sm:$0xff]
      %v3454 = vld [vmem:[%s2 + $0xb0] sm:$0xf]
      %v3455 = vld [vmem:[%s2 + $0xb4] sm:$0xff]
      %v3456 = vld [vmem:[%s2 + $0xbc] sm:$0xf]
      %v3457 = vld [vmem:[%s2 + $0xc0] sm:$0xff]
      %v3458 = vld [vmem:[%s2 + $0xc8] sm:$0xf]
      %v3459 = vld [vmem:[%s2 + $0xcc] sm:$0xff]
      %v3460 = vld [vmem:[%s2 + $0xd4] sm:$0xf]
      %v3461 = vld [vmem:[%s2 + $0xd8] sm:$0xff]
      %v3462 = vld [vmem:[%s2 + $0xe0] sm:$0xf]
      %v3463 = vld [vmem:[%s2 + $0xe4] sm:$0xff]
      %v3464 = vld [vmem:[%s2 + $0xec] sm:$0xf]
      %v3465 = vld [vmem:[%s2 + $0xf0] sm:$0xff]
      %v3466 = vld [vmem:[%s2 + $0xf8] sm:$0xf]
      %v3467 = vld [vmem:[%s2 + $0xfc] sm:$0xff]
      %v3468 = vld [vmem:[%s2 + $0x104] sm:$0xf]
      %v3469 = vld [vmem:[%s2 + $0x108] sm:$0xff]
      %v3470 = vld [vmem:[%s2 + $0x110] sm:$0xf]
      %v3471 = vld [vmem:[%s2 + $0x114] sm:$0xff]
      %v3472 = vld [vmem:[%s2 + $0x11c] sm:$0xf]
      %v3473 = vld [vmem:[%s2 + $0x120] sm:$0xff]
      %v3474 = vld [vmem:[%s2 + $0x128] sm:$0xf]
      %v3475 = vld [vmem:[%s2 + $0x12c] sm:$0xff]
      %v3476 = vld [vmem:[%s2 + $0x134] sm:$0xf]
      %v3477 = vld [vmem:[%s2 + $0x138] sm:$0xff]
      %v3478 = vld [vmem:[%s2 + $0x140] sm:$0xf]
      %v3479 = vld [vmem:[%s2 + $0x144] sm:$0xff]
      %v3480 = vld [vmem:[%s2 + $0x14c] sm:$0xf]
      %v3481 = vld [vmem:[%s2 + $0x150] sm:$0xff]
      %v3482 = vld [vmem:[%s2 + $0x158] sm:$0xf]
      %v3483 = vld [vmem:[%s2 + $0x15c] sm:$0xff]
      %v3484 = vld [vmem:[%s2 + $0x164] sm:$0xf]
      %v3485 = vld [vmem:[%s2 + $0x168] sm:$0xff]
      %v3486 = vld [vmem:[%s2 + $0x170] sm:$0xf]
      %v3487 = vld [vmem:[%s2 + $0x174] sm:$0xff]
      %v3488 = vld [vmem:[%s2 + $0x17c] sm:$0xf]
      %v3489 = vld [vmem:[%s2 + $0x180] sm:$0xff]
      %v3490 = vld [vmem:[%s2 + $0x188] sm:$0xf]
      %v3491 = vld [vmem:[%s2 + $0x18c] sm:$0xff]
      %v3492 = vld [vmem:[%s2 + $0x194] sm:$0xf]
      %v3493 = vld [vmem:[%s2 + $0x198] sm:$0xff]
      %v3494 = vld [vmem:[%s2 + $0x1a0] sm:$0xf]
      %v3495 = vld [vmem:[%s2 + $0x1a4] sm:$0xff]
      %v3496 = vld [vmem:[%s2 + $0x1ac] sm:$0xf]
      %v3497 = vld [vmem:[%s2 + $0x1b0] sm:$0xff]
      %v3498 = vld [vmem:[%s2 + $0x1b8] sm:$0xf]
      %v3499 = vld [vmem:[%s2 + $0x1bc] sm:$0xff]
      %v3500 = vld [vmem:[%s2 + $0x1c4] sm:$0xf]
      %v3501 = vld [vmem:[%s2 + $0x1c8] sm:$0xff]
      %v3502 = vld [vmem:[%s2 + $0x1d0] sm:$0xf]
      %v3503 = vld [vmem:[%s2 + $0x1d4] sm:$0xff]
      %v3504 = vld [vmem:[%s2 + $0x1dc] sm:$0xf]
      %v3505 = vld [vmem:[%s2 + $0x1e0] sm:$0xff]
      %v3506 = vld [vmem:[%s2 + $0x1e8] sm:$0xf]
      %v3507 = vld [vmem:[%s2 + $0x1ec] sm:$0xff]
      %v3508 = vld [vmem:[%s2 + $0x1f4] sm:$0xf]
      %v3509 = vld [vmem:[%s2 + $0x1f8] sm:$0xff]
      %v3510 = vld [vmem:[%s2 + $0x200] sm:$0xf]
      %v3511 = vld [vmem:[%s2 + $0x204] sm:$0xff]
      %v3512 = vld [vmem:[%s2 + $0x20c] sm:$0xf]
      %v3513 = vld [vmem:[%s2 + $0x210] sm:$0xff]
      %v3514 = vld [vmem:[%s2 + $0x218] sm:$0xf]
      %v3515 = vld [vmem:[%s2 + $0x21c] sm:$0xff]
      %v3516 = vld [vmem:[%s2 + $0x224] sm:$0xf]
      %v3517 = vld [vmem:[%s2 + $0x228] sm:$0xff]
      %v3518 = vld [vmem:[%s2 + $0x230] sm:$0xf]
      %v3519 = vld [vmem:[%s2 + $0x234] sm:$0xff]
      %v3520 = vld [vmem:[%s2 + $0x23c] sm:$0xf]
      %v3521 = vld [vmem:[%s2 + $0x240] sm:$0xff]
      %v3522 = vld [vmem:[%s2 + $0x248] sm:$0xf]
      %v3523 = vld [vmem:[%s2 + $0x24c] sm:$0xff]
      %v3524 = vld [vmem:[%s2 + $0x254] sm:$0xf]
      %v3525 = vld [vmem:[%s2 + $0x258] sm:$0xff]
      %v3526 = vld [vmem:[%s2 + $0x260] sm:$0xf]
      %v3527 = vld [vmem:[%s2 + $0x264] sm:$0xff]
      %v3528 = vld [vmem:[%s2 + $0x26c] sm:$0xf]
      %v3529 = vld [vmem:[%s2 + $0x270] sm:$0xff]
      %v3530 = vld [vmem:[%s2 + $0x278] sm:$0xf]
      %v3531 = vld [vmem:[%s2 + $0x27c] sm:$0xff]
      %v3532 = vld [vmem:[%s2 + $0x284] sm:$0xf]
      %v3533 = vld [vmem:[%s2 + $0x288] sm:$0xff]
      %v3534 = vld [vmem:[%s2 + $0x290] sm:$0xf]
      %v3535 = vld [vmem:[%s2 + $0x294] sm:$0xff]
      %v3536 = vld [vmem:[%s2 + $0x29c] sm:$0xf]
      %v3537 = vld [vmem:[%s2 + $0x2a0] sm:$0xff]
      %v3538 = vld [vmem:[%s2 + $0x2a8] sm:$0xf]
      %v3539 = vld [vmem:[%s2 + $0x2ac] sm:$0xff]
      %v3540 = vld [vmem:[%s2 + $0x2b4] sm:$0xf]
      %v3541 = vld [vmem:[%s2 + $0x2b8] sm:$0xff]
      %v3542 = vld [vmem:[%s2 + $0x2c0] sm:$0xf]
      %v3543 = vld [vmem:[%s2 + $0x2c4] sm:$0xff]
      %v3544 = vld [vmem:[%s2 + $0x2cc] sm:$0xf]
      %v3545 = vld [vmem:[%s2 + $0x2d0] sm:$0xff]
      %v3546 = vld [vmem:[%s2 + $0x2d8] sm:$0xf]
      %v3547 = vld [vmem:[%s2 + $0x2dc] sm:$0xff]
      %v3548 = vld [vmem:[%s2 + $0x2e4] sm:$0xf]
      %v3549 = vld [vmem:[%s2 + $0x2e8] sm:$0xff]
      %v3550 = vld [vmem:[%s2 + $0x2f0] sm:$0xf]
      %v3551 = vld [vmem:[%s2 + $0x2f4] sm:$0xff]
      %v3552 = vld [vmem:[%s2 + $0x2fc] sm:$0xf]
      %v3553 = vld [vmem:[%s2 + $0x300] sm:$0xff]
      %v3554 = vld [vmem:[%s2 + $0x308] sm:$0xf]
      %v3555 = vld [vmem:[%s2 + $0x30c] sm:$0xff]
      %v3556 = vld [vmem:[%s2 + $0x314] sm:$0xf]
      %v3557 = vld [vmem:[%s2 + $0x318] sm:$0xff]
      %v3558 = vld [vmem:[%s2 + $0x320] sm:$0xf]
      %v3559 = vld [vmem:[%s2 + $0x324] sm:$0xff]
      %v3560 = vld [vmem:[%s2 + $0x32c] sm:$0xf]
      %v3561 = vld [vmem:[%s2 + $0x330] sm:$0xff]
      %v3562 = vld [vmem:[%s2 + $0x338] sm:$0xf]
      %v3563 = vld [vmem:[%s2 + $0x33c] sm:$0xff]
      %v3564 = vld [vmem:[%s2 + $0x344] sm:$0xf]
      %v3565 = vld [vmem:[%s2 + $0x348] sm:$0xff]
      %v3566 = vld [vmem:[%s2 + $0x350] sm:$0xf]
      %v3567 = vld [vmem:[%s2 + $0x354] sm:$0xff]
      %v3568 = vld [vmem:[%s2 + $0x35c] sm:$0xf]
      %v3569 = vld [vmem:[%s2 + $0x360] sm:$0xff]
      %v3570 = vld [vmem:[%s2 + $0x368] sm:$0xf]
      %v3571 = vld [vmem:[%s2 + $0x36c] sm:$0xff]
      %v3572 = vld [vmem:[%s2 + $0x374] sm:$0xf]
      %v3573 = vld [vmem:[%s2 + $0x378] sm:$0xff]
      %v3574 = vld [vmem:[%s2 + $0x380] sm:$0xf]
      %v3575 = vld [vmem:[%s2 + $0x384] sm:$0xff]
      %v3576 = vld [vmem:[%s2 + $0x38c] sm:$0xf]
      %v3577 = vld [vmem:[%s2 + $0x390] sm:$0xff]
      %v3578 = vld [vmem:[%s2 + $0x398] sm:$0xf]
      %v3579 = vld [vmem:[%s2 + $0x39c] sm:$0xff]
      %v3580 = vld [vmem:[%s2 + $0x3a4] sm:$0xf]
      %v3581 = vld [vmem:[%s2 + $0x3a8] sm:$0xff]
      %v3582 = vld [vmem:[%s2 + $0x3b0] sm:$0xf]
      %v3583 = vld [vmem:[%s2 + $0x3b4] sm:$0xff]
      %v3584 = vld [vmem:[%s2 + $0x3bc] sm:$0xf]
      %v3585 = vld [vmem:[%s2 + $0x3c0] sm:$0xff]
      %v3586 = vld [vmem:[%s2 + $0x3c8] sm:$0xf]
      %v3587 = vld [vmem:[%s2 + $0x3cc] sm:$0xff]
      %v3588 = vld [vmem:[%s2 + $0x3d4] sm:$0xf]
      %v3589 = vld [vmem:[%s2 + $0x3d8] sm:$0xff]
      %v3590 = vld [vmem:[%s2 + $0x3e0] sm:$0xf]
      %v3591 = vld [vmem:[%s2 + $0x3e4] sm:$0xff]
      %v3592 = vld [vmem:[%s2 + $0x3ec] sm:$0xf]
      %v3593 = vld [vmem:[%s2 + $0x3f0] sm:$0xff]
      %v3594 = vld [vmem:[%s2 + $0x3f8] sm:$0xf]
      %v3595 = vld [vmem:[%s2 + $0x3fc] sm:$0xff]
      %v3596 = vld [vmem:[%s2 + $0x404] sm:$0xf]
      %v3597 = vld [vmem:[%s2 + $0x408] sm:$0xff]
      %v3598 = vld [vmem:[%s2 + $0x410] sm:$0xf]
      %v3599 = vld [vmem:[%s2 + $0x414] sm:$0xff]
      %v3600 = vld [vmem:[%s2 + $0x41c] sm:$0xf]
      %v3601 = vld [vmem:[%s2 + $0x420] sm:$0xff]
      %v3602 = vld [vmem:[%s2 + $0x428] sm:$0xf]
      %v3603 = vld [vmem:[%s2 + $0x42c] sm:$0xff]
      %v3604 = vld [vmem:[%s2 + $0x434] sm:$0xf]
      %v3605 = vld [vmem:[%s2 + $0x438] sm:$0xff]
      %v3606 = vld [vmem:[%s2 + $0x440] sm:$0xf]
      %v3607 = vld [vmem:[%s2 + $0x444] sm:$0xff]
      %v3608 = vld [vmem:[%s2 + $0x44c] sm:$0xf]
      %v3609 = vld [vmem:[%s2 + $0x450] sm:$0xff]
      %v3610 = vld [vmem:[%s2 + $0x458] sm:$0xf]
      %v3611 = vld [vmem:[%s2 + $0x45c] sm:$0xff]
      %v3612 = vld [vmem:[%s2 + $0x464] sm:$0xf]
      %v3613 = vld [vmem:[%s2 + $0x468] sm:$0xff]
      %v3614 = vld [vmem:[%s2 + $0x470] sm:$0xf]
      %v3615 = vld [vmem:[%s2 + $0x474] sm:$0xff]
      %v3616 = vld [vmem:[%s2 + $0x47c] sm:$0xf]
      %v3617 = vld [vmem:[%s3] sm:$0x7]
      %v3619 = vlaneseq
      %v3620 = vshrl.u32 %v3619, 7
      %v3621 = vsub.s32 0, %v3620
      %v3622 = vrot.slane %v3617, %v3621
      %v3623 = vlaneseq
      %v3624 = vshrl.u32 %v3623, 7
      %v3625 = vsub.s32 1, %v3624
      %v3626 = vrot.slane %v3617, %v3625
      %v3627 = vlaneseq
      %v3628 = vshrl.u32 %v3627, 7
      %v3629 = vsub.s32 2, %v3628
      %v3630 = vrot.slane %v3617, %v3629
      %v3826 = vunpack.c.l.b16 %v3425
      %v3827 = vunpack.c.h.b16 %v3425
      %v3828 = vunpack.c.l.b16 %v3426
      %v3829 = vunpack.c.l.b16 %v3427
      %v3830 = vunpack.c.h.b16 %v3427
      %v3831 = vunpack.c.l.b16 %v3428
      %v3832 = vunpack.c.l.b16 %v3429
      %v3833 = vunpack.c.h.b16 %v3429
      %v3834 = vunpack.c.l.b16 %v3430
      %v3835 = vunpack.c.l.b16 %v3431
      %v3836 = vunpack.c.h.b16 %v3431
      %v3837 = vunpack.c.l.b16 %v3432
      %v3838 = vunpack.c.l.b16 %v3433
      %v3839 = vunpack.c.h.b16 %v3433
      %v3840 = vunpack.c.l.b16 %v3434
      %v3841 = vunpack.c.l.b16 %v3435
      %v3842 = vunpack.c.h.b16 %v3435
      %v3843 = vunpack.c.l.b16 %v3436
      %v3844 = vunpack.c.l.b16 %v3437
      %v3845 = vunpack.c.h.b16 %v3437
      %v3846 = vunpack.c.l.b16 %v3438
      %v3847 = vunpack.c.l.b16 %v3439
      %v3848 = vunpack.c.h.b16 %v3439
      %v3849 = vunpack.c.l.b16 %v3440
      %v3850 = vunpack.c.l.b16 %v3441
      %v3851 = vunpack.c.h.b16 %v3441
      %v3852 = vunpack.c.l.b16 %v3442
      %v3853 = vunpack.c.l.b16 %v3443
      %v3854 = vunpack.c.h.b16 %v3443
      %v3855 = vunpack.c.l.b16 %v3444
      %v3856 = vunpack.c.l.b16 %v3445
      %v3857 = vunpack.c.h.b16 %v3445
      %v3858 = vunpack.c.l.b16 %v3446
      %v3859 = vunpack.c.l.b16 %v3447
      %v3860 = vunpack.c.h.b16 %v3447
      %v3861 = vunpack.c.l.b16 %v3448
      %v3862 = vunpack.c.l.b16 %v3449
      %v3863 = vunpack.c.h.b16 %v3449
      %v3864 = vunpack.c.l.b16 %v3450
      %v3865 = vunpack.c.l.b16 %v3451
      %v3866 = vunpack.c.h.b16 %v3451
      %v3867 = vunpack.c.l.b16 %v3452
      %v3868 = vunpack.c.l.b16 %v3453
      %v3869 = vunpack.c.h.b16 %v3453
      %v3870 = vunpack.c.l.b16 %v3454
      %v3871 = vunpack.c.l.b16 %v3455
      %v3872 = vunpack.c.h.b16 %v3455
      %v3873 = vunpack.c.l.b16 %v3456
      %v3874 = vunpack.c.l.b16 %v3457
      %v3875 = vunpack.c.h.b16 %v3457
      %v3876 = vunpack.c.l.b16 %v3458
      %v3877 = vunpack.c.l.b16 %v3459
      %v3878 = vunpack.c.h.b16 %v3459
      %v3879 = vunpack.c.l.b16 %v3460
      %v3880 = vunpack.c.l.b16 %v3461
      %v3881 = vunpack.c.h.b16 %v3461
      %v3882 = vunpack.c.l.b16 %v3462
      %v3883 = vunpack.c.l.b16 %v3463
      %v3884 = vunpack.c.h.b16 %v3463
      %v3885 = vunpack.c.l.b16 %v3464
      %v3886 = vunpack.c.l.b16 %v3465
      %v3887 = vunpack.c.h.b16 %v3465
      %v3888 = vunpack.c.l.b16 %v3466
      %v3889 = vunpack.c.l.b16 %v3467
      %v3890 = vunpack.c.h.b16 %v3467
      %v3891 = vunpack.c.l.b16 %v3468
      %v3892 = vunpack.c.l.b16 %v3469
      %v3893 = vunpack.c.h.b16 %v3469
      %v3894 = vunpack.c.l.b16 %v3470
      %v3895 = vunpack.c.l.b16 %v3471
      %v3896 = vunpack.c.h.b16 %v3471
      %v3897 = vunpack.c.l.b16 %v3472
      %v3898 = vunpack.c.l.b16 %v3473
      %v3899 = vunpack.c.h.b16 %v3473
      %v3900 = vunpack.c.l.b16 %v3474
      %v3901 = vunpack.c.l.b16 %v3475
      %v3902 = vunpack.c.h.b16 %v3475
      %v3903 = vunpack.c.l.b16 %v3476
      %v3904 = vunpack.c.l.b16 %v3477
      %v3905 = vunpack.c.h.b16 %v3477
      %v3906 = vunpack.c.l.b16 %v3478
      %v3907 = vunpack.c.l.b16 %v3479
      %v3908 = vunpack.c.h.b16 %v3479
      %v3909 = vunpack.c.l.b16 %v3480
      %v3910 = vunpack.c.l.b16 %v3481
      %v3911 = vunpack.c.h.b16 %v3481
      %v3912 = vunpack.c.l.b16 %v3482
      %v3913 = vunpack.c.l.b16 %v3483
      %v3914 = vunpack.c.h.b16 %v3483
      %v3915 = vunpack.c.l.b16 %v3484
      %v3916 = vunpack.c.l.b16 %v3485
      %v3917 = vunpack.c.h.b16 %v3485
      %v3918 = vunpack.c.l.b16 %v3486
      %v3919 = vunpack.c.l.b16 %v3487
      %v3920 = vunpack.c.h.b16 %v3487
      %v3921 = vunpack.c.l.b16 %v3488
      %v3922 = vunpack.c.l.b16 %v3489
      %v3923 = vunpack.c.h.b16 %v3489
      %v3924 = vunpack.c.l.b16 %v3490
      %v3925 = vunpack.c.l.b16 %v3491
      %v3926 = vunpack.c.h.b16 %v3491
      %v3927 = vunpack.c.l.b16 %v3492
      %v3928 = vunpack.c.l.b16 %v3493
      %v3929 = vunpack.c.h.b16 %v3493
      %v3930 = vunpack.c.l.b16 %v3494
      %v3931 = vunpack.c.l.b16 %v3495
      %v3932 = vunpack.c.h.b16 %v3495
      %v3933 = vunpack.c.l.b16 %v3496
      %v3934 = vunpack.c.l.b16 %v3497
      %v3935 = vunpack.c.h.b16 %v3497
      %v3936 = vunpack.c.l.b16 %v3498
      %v3937 = vunpack.c.l.b16 %v3499
      %v3938 = vunpack.c.h.b16 %v3499
      %v3939 = vunpack.c.l.b16 %v3500
      %v3940 = vunpack.c.l.b16 %v3501
      %v3941 = vunpack.c.h.b16 %v3501
      %v3942 = vunpack.c.l.b16 %v3502
      %v3943 = vunpack.c.l.b16 %v3503
      %v3944 = vunpack.c.h.b16 %v3503
      %v3945 = vunpack.c.l.b16 %v3504
      %v3946 = vunpack.c.l.b16 %v3505
      %v3947 = vunpack.c.h.b16 %v3505
      %v3948 = vunpack.c.l.b16 %v3506
      %v3949 = vunpack.c.l.b16 %v3507
      %v3950 = vunpack.c.h.b16 %v3507
      %v3951 = vunpack.c.l.b16 %v3508
      %v3952 = vunpack.c.l.b16 %v3509
      %v3953 = vunpack.c.h.b16 %v3509
      %v3954 = vunpack.c.l.b16 %v3510
      %v3955 = vunpack.c.l.b16 %v3511
      %v3956 = vunpack.c.h.b16 %v3511
      %v3957 = vunpack.c.l.b16 %v3512
      %v3958 = vunpack.c.l.b16 %v3513
      %v3959 = vunpack.c.h.b16 %v3513
      %v3960 = vunpack.c.l.b16 %v3514
      %v3961 = vunpack.c.l.b16 %v3515
      %v3962 = vunpack.c.h.b16 %v3515
      %v3963 = vunpack.c.l.b16 %v3516
      %v3964 = vunpack.c.l.b16 %v3517
      %v3965 = vunpack.c.h.b16 %v3517
      %v3966 = vunpack.c.l.b16 %v3518
      %v3967 = vunpack.c.l.b16 %v3519
      %v3968 = vunpack.c.h.b16 %v3519
      %v3969 = vunpack.c.l.b16 %v3520
      %v3970 = vunpack.c.l.b16 %v3521
      %v3971 = vunpack.c.h.b16 %v3521
      %v3972 = vunpack.c.l.b16 %v3522
      %v3973 = vunpack.c.l.b16 %v3523
      %v3974 = vunpack.c.h.b16 %v3523
      %v3975 = vunpack.c.l.b16 %v3524
      %v3976 = vunpack.c.l.b16 %v3525
      %v3977 = vunpack.c.h.b16 %v3525
      %v3978 = vunpack.c.l.b16 %v3526
      %v3979 = vunpack.c.l.b16 %v3527
      %v3980 = vunpack.c.h.b16 %v3527
      %v3981 = vunpack.c.l.b16 %v3528
      %v3982 = vunpack.c.l.b16 %v3529
      %v3983 = vunpack.c.h.b16 %v3529
      %v3984 = vunpack.c.l.b16 %v3530
      %v3985 = vunpack.c.l.b16 %v3531
      %v3986 = vunpack.c.h.b16 %v3531
      %v3987 = vunpack.c.l.b16 %v3532
      %v3988 = vunpack.c.l.b16 %v3533
      %v3989 = vunpack.c.h.b16 %v3533
      %v3990 = vunpack.c.l.b16 %v3534
      %v3991 = vunpack.c.l.b16 %v3535
      %v3992 = vunpack.c.h.b16 %v3535
      %v3993 = vunpack.c.l.b16 %v3536
      %v3994 = vunpack.c.l.b16 %v3537
      %v3995 = vunpack.c.h.b16 %v3537
      %v3996 = vunpack.c.l.b16 %v3538
      %v3997 = vunpack.c.l.b16 %v3539
      %v3998 = vunpack.c.h.b16 %v3539
      %v3999 = vunpack.c.l.b16 %v3540
      %v4000 = vunpack.c.l.b16 %v3541
      %v4001 = vunpack.c.h.b16 %v3541
      %v4002 = vunpack.c.l.b16 %v3542
      %v4003 = vunpack.c.l.b16 %v3543
      %v4004 = vunpack.c.h.b16 %v3543
      %v4005 = vunpack.c.l.b16 %v3544
      %v4006 = vunpack.c.l.b16 %v3545
      %v4007 = vunpack.c.h.b16 %v3545
      %v4008 = vunpack.c.l.b16 %v3546
      %v4009 = vunpack.c.l.b16 %v3547
      %v4010 = vunpack.c.h.b16 %v3547
      %v4011 = vunpack.c.l.b16 %v3548
      %v4012 = vunpack.c.l.b16 %v3549
      %v4013 = vunpack.c.h.b16 %v3549
      %v4014 = vunpack.c.l.b16 %v3550
      %v4015 = vunpack.c.l.b16 %v3551
      %v4016 = vunpack.c.h.b16 %v3551
      %v4017 = vunpack.c.l.b16 %v3552
      %v4018 = vunpack.c.l.b16 %v3553
      %v4019 = vunpack.c.h.b16 %v3553
      %v4020 = vunpack.c.l.b16 %v3554
      %v4021 = vunpack.c.l.b16 %v3555
      %v4022 = vunpack.c.h.b16 %v3555
      %v4023 = vunpack.c.l.b16 %v3556
      %v4024 = vunpack.c.l.b16 %v3557
      %v4025 = vunpack.c.h.b16 %v3557
      %v4026 = vunpack.c.l.b16 %v3558
      %v4027 = vunpack.c.l.b16 %v3559
      %v4028 = vunpack.c.h.b16 %v3559
      %v4029 = vunpack.c.l.b16 %v3560
      %v4030 = vunpack.c.l.b16 %v3561
      %v4031 = vunpack.c.h.b16 %v3561
      %v4032 = vunpack.c.l.b16 %v3562
      %v4033 = vunpack.c.l.b16 %v3563
      %v4034 = vunpack.c.h.b16 %v3563
      %v4035 = vunpack.c.l.b16 %v3564
      %v4036 = vunpack.c.l.b16 %v3565
      %v4037 = vunpack.c.h.b16 %v3565
      %v4038 = vunpack.c.l.b16 %v3566
      %v4039 = vunpack.c.l.b16 %v3567
      %v4040 = vunpack.c.h.b16 %v3567
      %v4041 = vunpack.c.l.b16 %v3568
      %v4042 = vunpack.c.l.b16 %v3569
      %v4043 = vunpack.c.h.b16 %v3569
      %v4044 = vunpack.c.l.b16 %v3570
      %v4045 = vunpack.c.l.b16 %v3571
      %v4046 = vunpack.c.h.b16 %v3571
      %v4047 = vunpack.c.l.b16 %v3572
      %v4048 = vunpack.c.l.b16 %v3573
      %v4049 = vunpack.c.h.b16 %v3573
      %v4050 = vunpack.c.l.b16 %v3574
      %v4051 = vunpack.c.l.b16 %v3575
      %v4052 = vunpack.c.h.b16 %v3575
      %v4053 = vunpack.c.l.b16 %v3576
      %v4054 = vunpack.c.l.b16 %v3577
      %v4055 = vunpack.c.h.b16 %v3577
      %v4056 = vunpack.c.l.b16 %v3578
      %v4057 = vunpack.c.l.b16 %v3579
      %v4058 = vunpack.c.h.b16 %v3579
      %v4059 = vunpack.c.l.b16 %v3580
      %v4060 = vunpack.c.l.b16 %v3581
      %v4061 = vunpack.c.h.b16 %v3581
      %v4062 = vunpack.c.l.b16 %v3582
      %v4063 = vunpack.c.l.b16 %v3583
      %v4064 = vunpack.c.h.b16 %v3583
      %v4065 = vunpack.c.l.b16 %v3584
      %v4066 = vunpack.c.l.b16 %v3585
      %v4067 = vunpack.c.h.b16 %v3585
      %v4068 = vunpack.c.l.b16 %v3586
      %v4069 = vunpack.c.l.b16 %v3587
      %v4070 = vunpack.c.h.b16 %v3587
      %v4071 = vunpack.c.l.b16 %v3588
      %v4072 = vunpack.c.l.b16 %v3589
      %v4073 = vunpack.c.h.b16 %v3589
      %v4074 = vunpack.c.l.b16 %v3590
      %v4075 = vunpack.c.l.b16 %v3591
      %v4076 = vunpack.c.h.b16 %v3591
      %v4077 = vunpack.c.l.b16 %v3592
      %v4078 = vunpack.c.l.b16 %v3593
      %v4079 = vunpack.c.h.b16 %v3593
      %v4080 = vunpack.c.l.b16 %v3594
      %v4081 = vunpack.c.l.b16 %v3595
      %v4082 = vunpack.c.h.b16 %v3595
      %v4083 = vunpack.c.l.b16 %v3596
      %v4084 = vunpack.c.l.b16 %v3597
      %v4085 = vunpack.c.h.b16 %v3597
      %v4086 = vunpack.c.l.b16 %v3598
      %v4087 = vunpack.c.l.b16 %v3599
      %v4088 = vunpack.c.h.b16 %v3599
      %v4089 = vunpack.c.l.b16 %v3600
      %v4090 = vunpack.c.l.b16 %v3601
      %v4091 = vunpack.c.h.b16 %v3601
      %v4092 = vunpack.c.l.b16 %v3602
      %v4093 = vunpack.c.l.b16 %v3603
      %v4094 = vunpack.c.h.b16 %v3603
      %v4095 = vunpack.c.l.b16 %v3604
      %v4096 = vunpack.c.l.b16 %v3605
      %v4097 = vunpack.c.h.b16 %v3605
      %v4098 = vunpack.c.l.b16 %v3606
      %v4099 = vunpack.c.l.b16 %v3607
      %v4100 = vunpack.c.h.b16 %v3607
      %v4101 = vunpack.c.l.b16 %v3608
      %v4102 = vunpack.c.l.b16 %v3609
      %v4103 = vunpack.c.h.b16 %v3609
      %v4104 = vunpack.c.l.b16 %v3610
      %v4105 = vunpack.c.l.b16 %v3611
      %v4106 = vunpack.c.h.b16 %v3611
      %v4107 = vunpack.c.l.b16 %v3612
      %v4108 = vunpack.c.l.b16 %v3613
      %v4109 = vunpack.c.h.b16 %v3613
      %v4110 = vunpack.c.l.b16 %v3614
      %v4111 = vunpack.c.l.b16 %v3615
      %v4112 = vunpack.c.h.b16 %v3615
      %v4113 = vunpack.c.l.b16 %v3616
      %v4114 = vpack.c.b16 %v3829, %v3826
      %v4115 = vpack.c.b16 %v3830, %v3827
      %v4116 = vpack.c.b16 %v3831, %v3828
      %v4117 = vpack.c.b16 %v3835, %v3832
      %v4118 = vpack.c.b16 %v3836, %v3833
      %v4119 = vpack.c.b16 %v3837, %v3834
      %v4120 = vpack.c.b16 %v3841, %v3838
      %v4121 = vpack.c.b16 %v3842, %v3839
      %v4122 = vpack.c.b16 %v3843, %v3840
      %v4123 = vpack.c.b16 %v3847, %v3844
      %v4124 = vpack.c.b16 %v3848, %v3845
      %v4125 = vpack.c.b16 %v3849, %v3846
      %v4126 = vpack.c.b16 %v3853, %v3850
      %v4127 = vpack.c.b16 %v3854, %v3851
      %v4128 = vpack.c.b16 %v3855, %v3852
      %v4129 = vpack.c.b16 %v3859, %v3856
      %v4130 = vpack.c.b16 %v3860, %v3857
      %v4131 = vpack.c.b16 %v3861, %v3858
      %v4132 = vpack.c.b16 %v3865, %v3862
      %v4133 = vpack.c.b16 %v3866, %v3863
      %v4134 = vpack.c.b16 %v3867, %v3864
      %v4135 = vpack.c.b16 %v3871, %v3868
      %v4136 = vpack.c.b16 %v3872, %v3869
      %v4137 = vpack.c.b16 %v3873, %v3870
      %v4138 = vpack.c.b16 %v3877, %v3874
      %v4139 = vpack.c.b16 %v3878, %v3875
      %v4140 = vpack.c.b16 %v3879, %v3876
      %v4141 = vpack.c.b16 %v3883, %v3880
      %v4142 = vpack.c.b16 %v3884, %v3881
      %v4143 = vpack.c.b16 %v3885, %v3882
      %v4144 = vpack.c.b16 %v3889, %v3886
      %v4145 = vpack.c.b16 %v3890, %v3887
      %v4146 = vpack.c.b16 %v3891, %v3888
      %v4147 = vpack.c.b16 %v3895, %v3892
      %v4148 = vpack.c.b16 %v3896, %v3893
      %v4149 = vpack.c.b16 %v3897, %v3894
      %v4150 = vpack.c.b16 %v3901, %v3898
      %v4151 = vpack.c.b16 %v3902, %v3899
      %v4152 = vpack.c.b16 %v3903, %v3900
      %v4153 = vpack.c.b16 %v3907, %v3904
      %v4154 = vpack.c.b16 %v3908, %v3905
      %v4155 = vpack.c.b16 %v3909, %v3906
      %v4156 = vpack.c.b16 %v3913, %v3910
      %v4157 = vpack.c.b16 %v3914, %v3911
      %v4158 = vpack.c.b16 %v3915, %v3912
      %v4159 = vpack.c.b16 %v3919, %v3916
      %v4160 = vpack.c.b16 %v3920, %v3917
      %v4161 = vpack.c.b16 %v3921, %v3918
      %v4162 = vpack.c.b16 %v3925, %v3922
      %v4163 = vpack.c.b16 %v3926, %v3923
      %v4164 = vpack.c.b16 %v3927, %v3924
      %v4165 = vpack.c.b16 %v3931, %v3928
      %v4166 = vpack.c.b16 %v3932, %v3929
      %v4167 = vpack.c.b16 %v3933, %v3930
      %v4168 = vpack.c.b16 %v3937, %v3934
      %v4169 = vpack.c.b16 %v3938, %v3935
      %v4170 = vpack.c.b16 %v3939, %v3936
      %v4171 = vpack.c.b16 %v3943, %v3940
      %v4172 = vpack.c.b16 %v3944, %v3941
      %v4173 = vpack.c.b16 %v3945, %v3942
      %v4174 = vpack.c.b16 %v3949, %v3946
      %v4175 = vpack.c.b16 %v3950, %v3947
      %v4176 = vpack.c.b16 %v3951, %v3948
      %v4177 = vpack.c.b16 %v3955, %v3952
      %v4178 = vpack.c.b16 %v3956, %v3953
      %v4179 = vpack.c.b16 %v3957, %v3954
      %v4180 = vpack.c.b16 %v3961, %v3958
      %v4181 = vpack.c.b16 %v3962, %v3959
      %v4182 = vpack.c.b16 %v3963, %v3960
      %v4183 = vpack.c.b16 %v3967, %v3964
      %v4184 = vpack.c.b16 %v3968, %v3965
      %v4185 = vpack.c.b16 %v3969, %v3966
      %v4186 = vpack.c.b16 %v3973, %v3970
      %v4187 = vpack.c.b16 %v3974, %v3971
      %v4188 = vpack.c.b16 %v3975, %v3972
      %v4189 = vpack.c.b16 %v3979, %v3976
      %v4190 = vpack.c.b16 %v3980, %v3977
      %v4191 = vpack.c.b16 %v3981, %v3978
      %v4192 = vpack.c.b16 %v3985, %v3982
      %v4193 = vpack.c.b16 %v3986, %v3983
      %v4194 = vpack.c.b16 %v3987, %v3984
      %v4195 = vpack.c.b16 %v3991, %v3988
      %v4196 = vpack.c.b16 %v3992, %v3989
      %v4197 = vpack.c.b16 %v3993, %v3990
      %v4198 = vpack.c.b16 %v3997, %v3994
      %v4199 = vpack.c.b16 %v3998, %v3995
      %v4200 = vpack.c.b16 %v3999, %v3996
      %v4201 = vpack.c.b16 %v4003, %v4000
      %v4202 = vpack.c.b16 %v4004, %v4001
      %v4203 = vpack.c.b16 %v4005, %v4002
      %v4204 = vpack.c.b16 %v4009, %v4006
      %v4205 = vpack.c.b16 %v4010, %v4007
      %v4206 = vpack.c.b16 %v4011, %v4008
      %v4207 = vpack.c.b16 %v4015, %v4012
      %v4208 = vpack.c.b16 %v4016, %v4013
      %v4209 = vpack.c.b16 %v4017, %v4014
      %v4210 = vpack.c.b16 %v4021, %v4018
      %v4211 = vpack.c.b16 %v4022, %v4019
      %v4212 = vpack.c.b16 %v4023, %v4020
      %v4213 = vpack.c.b16 %v4027, %v4024
      %v4214 = vpack.c.b16 %v4028, %v4025
      %v4215 = vpack.c.b16 %v4029, %v4026
      %v4216 = vpack.c.b16 %v4033, %v4030
      %v4217 = vpack.c.b16 %v4034, %v4031
      %v4218 = vpack.c.b16 %v4035, %v4032
      %v4219 = vpack.c.b16 %v4039, %v4036
      %v4220 = vpack.c.b16 %v4040, %v4037
      %v4221 = vpack.c.b16 %v4041, %v4038
      %v4222 = vpack.c.b16 %v4045, %v4042
      %v4223 = vpack.c.b16 %v4046, %v4043
      %v4224 = vpack.c.b16 %v4047, %v4044
      %v4225 = vpack.c.b16 %v4051, %v4048
      %v4226 = vpack.c.b16 %v4052, %v4049
      %v4227 = vpack.c.b16 %v4053, %v4050
      %v4228 = vpack.c.b16 %v4057, %v4054
      %v4229 = vpack.c.b16 %v4058, %v4055
      %v4230 = vpack.c.b16 %v4059, %v4056
      %v4231 = vpack.c.b16 %v4063, %v4060
      %v4232 = vpack.c.b16 %v4064, %v4061
      %v4233 = vpack.c.b16 %v4065, %v4062
      %v4234 = vpack.c.b16 %v4069, %v4066
      %v4235 = vpack.c.b16 %v4070, %v4067
      %v4236 = vpack.c.b16 %v4071, %v4068
      %v4237 = vpack.c.b16 %v4075, %v4072
      %v4238 = vpack.c.b16 %v4076, %v4073
      %v4239 = vpack.c.b16 %v4077, %v4074
      %v4240 = vpack.c.b16 %v4081, %v4078
      %v4241 = vpack.c.b16 %v4082, %v4079
      %v4242 = vpack.c.b16 %v4083, %v4080
      %v4243 = vpack.c.b16 %v4087, %v4084
      %v4244 = vpack.c.b16 %v4088, %v4085
      %v4245 = vpack.c.b16 %v4089, %v4086
      %v4246 = vpack.c.b16 %v4093, %v4090
      %v4247 = vpack.c.b16 %v4094, %v4091
      %v4248 = vpack.c.b16 %v4095, %v4092
      %v4249 = vpack.c.b16 %v4099, %v4096
      %v4250 = vpack.c.b16 %v4100, %v4097
      %v4251 = vpack.c.b16 %v4101, %v4098
      %v4252 = vpack.c.b16 %v4105, %v4102
      %v4253 = vpack.c.b16 %v4106, %v4103
      %v4254 = vpack.c.b16 %v4107, %v4104
      %v4255 = vpack.c.b16 %v4111, %v4108
      %v4256 = vpack.c.b16 %v4112, %v4109
      %v4257 = vpack.c.b16 %v4113, %v4110
      %4402 = vmatprep.subr.bf16.mxu0 %v4136
      %4403 = vmatpush1.bf16.msra.mxu0 %v4135
      %4404 = vmatprep.subr.bf16.mxu0 %v4133
      %4405 = vmatpush1.bf16.msra.mxu0 %v4132
      %4406 = vmatprep.subr.bf16.mxu0 %v4130
      %4407 = vmatpush1.bf16.msra.mxu0 %v4129
      %4408 = vmatprep.subr.bf16.mxu0 %v4127
      %4409 = vmatpush1.bf16.msra.mxu0 %v4126
      %4410 = vmatprep.subr.bf16.mxu0 %v4124
      %4411 = vmatpush1.bf16.msra.mxu0 %v4123
      %4412 = vmatprep.subr.bf16.mxu0 %v4121
      %4413 = vmatpush1.bf16.msra.mxu0 %v4120
      %4414 = vmatprep.subr.bf16.mxu0 %v4118
      %4415 = vmatpush1.bf16.msra.mxu0 %v4117
      %4416 = vmatprep.subr.bf16.mxu0 %v4115
      %4417 = vmatpush1.bf16.msra.mxu0 %v4114
      %4418 = vmatprep.subr.bf16.mxu0 %v4160
      %4419 = vmatpush2.bf16.msra.mxu0 %v4159
      %4420 = vmatprep.subr.bf16.mxu0 %v4157
      %4421 = vmatpush2.bf16.msra.mxu0 %v4156
      %4422 = vmatprep.subr.bf16.mxu0 %v4154
      %4423 = vmatpush2.bf16.msra.mxu0 %v4153
      %4424 = vmatprep.subr.bf16.mxu0 %v4151
      %4425 = vmatpush2.bf16.msra.mxu0 %v4150
      %4426 = vmatprep.subr.bf16.mxu0 %v4148
      %4427 = vmatpush2.bf16.msra.mxu0 %v4147
      %4428 = vmatprep.subr.bf16.mxu0 %v4145
      %4429 = vmatpush2.bf16.msra.mxu0 %v4144
      %4430 = vmatprep.subr.bf16.mxu0 %v4142
      %4431 = vmatpush2.bf16.msra.mxu0 %v4141
      %4432 = vmatprep.subr.bf16.mxu0 %v4139
      %4433 = vmatpush2.bf16.msra.mxu0 %v4138
      %4434 = vmatprep.mubr.bf16.mxu0 %v3078
      %4435 = vmatmul.mubr.bf16.gmra.mxu0 %v3046
      %v4436 = vpop.f32.mrf.mxu0
      %v4437 = vadd.f32 %v3622, %v4436
      %v4438 = vpop.f32.mrf.mxu0
      %v4439 = vadd.f32 %v3626, %v4438
      %v4440 = vpop.f32.mrf.mxu0
      %v4441 = vadd.f32 %v3622, %v4440
      %v4442 = vpop.f32.mrf.mxu0
      %v4443 = vadd.f32 %v3626, %v4442
      %4444 = vmatprep.mubr.bf16.mxu0 %v3081
      %4445 = vmatmul.mubr.bf16.gmra.mxu0 %v3049
      %v4446 = vpop.f32.mrf.mxu0
      %v4447 = vadd.f32 %v3622, %v4446
      %v4448 = vpop.f32.mrf.mxu0
      %v4449 = vadd.f32 %v3626, %v4448
      %v4450 = vpop.f32.mrf.mxu0
      %v4451 = vadd.f32 %v3622, %v4450
      %v4452 = vpop.f32.mrf.mxu0
      %v4453 = vadd.f32 %v3626, %v4452
      %4454 = vmatprep.mubr.bf16.mxu0 %v3084
      %4455 = vmatmul.mubr.bf16.gmra.mxu0 %v3052
      %v4456 = vpop.f32.mrf.mxu0
      %v4457 = vadd.f32 %v3622, %v4456
      %v4458 = vpop.f32.mrf.mxu0
      %v4459 = vadd.f32 %v3626, %v4458
      %v4460 = vpop.f32.mrf.mxu0
      %v4461 = vadd.f32 %v3622, %v4460
      %v4462 = vpop.f32.mrf.mxu0
      %v4463 = vadd.f32 %v3626, %v4462
      %4464 = vmatprep.mubr.bf16.mxu0 %v3087
      %4465 = vmatmul.mubr.bf16.gmra.mxu0 %v3055
      %v4466 = vpop.f32.mrf.mxu0
      %v4467 = vadd.f32 %v3622, %v4466
      %v4468 = vpop.f32.mrf.mxu0
      %v4469 = vadd.f32 %v3626, %v4468
      %v4470 = vpop.f32.mrf.mxu0
      %v4471 = vadd.f32 %v3622, %v4470
      %v4472 = vpop.f32.mrf.mxu0
      %v4473 = vadd.f32 %v3626, %v4472
      %4474 = vdwg.mxu0
      %4475 = vmatprep.subr.bf16.mxu0 %v4184
      %4476 = vmatpush1.bf16.msra.mxu0 %v4183
      %4477 = vmatprep.subr.bf16.mxu0 %v4181
      %4478 = vmatpush1.bf16.msra.mxu0 %v4180
      %4479 = vmatprep.subr.bf16.mxu0 %v4178
      %4480 = vmatpush1.bf16.msra.mxu0 %v4177
      %4481 = vmatprep.subr.bf16.mxu0 %v4175
      %4482 = vmatpush1.bf16.msra.mxu0 %v4174
      %4483 = vmatprep.subr.bf16.mxu0 %v4172
      %4484 = vmatpush1.bf16.msra.mxu0 %v4171
      %4485 = vmatprep.subr.bf16.mxu0 %v4169
      %4486 = vmatpush1.bf16.msra.mxu0 %v4168
      %4487 = vmatprep.subr.bf16.mxu0 %v4166
      %4488 = vmatpush1.bf16.msra.mxu0 %v4165
      %4489 = vmatprep.subr.bf16.mxu0 %v4163
      %4490 = vmatpush1.bf16.msra.mxu0 %v4162
      %4491 = vmatprep.subr.bf16.mxu0 %v4208
      %4492 = vmatpush2.bf16.msra.mxu0 %v4207
      %4493 = vmatprep.subr.bf16.mxu0 %v4205
      %4494 = vmatpush2.bf16.msra.mxu0 %v4204
      %4495 = vmatprep.subr.bf16.mxu0 %v4202
      %4496 = vmatpush2.bf16.msra.mxu0 %v4201
      %4497 = vmatprep.subr.bf16.mxu0 %v4199
      %4498 = vmatpush2.bf16.msra.mxu0 %v4198
      %4499 = vmatprep.subr.bf16.mxu0 %v4196
      %4500 = vmatpush2.bf16.msra.mxu0 %v4195
      %4501 = vmatprep.subr.bf16.mxu0 %v4193
      %4502 = vmatpush2.bf16.msra.mxu0 %v4192
      %4503 = vmatprep.subr.bf16.mxu0 %v4190
      %4504 = vmatpush2.bf16.msra.mxu0 %v4189
      %4505 = vmatprep.subr.bf16.mxu0 %v4187
      %4506 = vmatpush2.bf16.msra.mxu0 %v4186
      %4507 = vmatprep.mubr.bf16.mxu0 %v3142
      %4508 = vmatmul.mubr.bf16.gmra.mxu0 %v3110
      %v4509 = vpop.f32.mrf.mxu0
      %v4510 = vadd.f32 %v4437, %v4509
      %v4511 = vpop.f32.mrf.mxu0
      %v4512 = vadd.f32 %v4439, %v4511
      %v4513 = vpop.f32.mrf.mxu0
      %v4514 = vadd.f32 %v4441, %v4513
      %v4515 = vpop.f32.mrf.mxu0
      %v4516 = vadd.f32 %v4443, %v4515
      %4517 = vmatprep.mubr.bf16.mxu0 %v3145
      %4518 = vmatmul.mubr.bf16.gmra.mxu0 %v3113
      %v4519 = vpop.f32.mrf.mxu0
      %v4520 = vadd.f32 %v4447, %v4519
      %v4521 = vpop.f32.mrf.mxu0
      %v4522 = vadd.f32 %v4449, %v4521
      %v4523 = vpop.f32.mrf.mxu0
      %v4524 = vadd.f32 %v4451, %v4523
      %v4525 = vpop.f32.mrf.mxu0
      %v4526 = vadd.f32 %v4453, %v4525
      %4527 = vmatprep.mubr.bf16.mxu0 %v3148
      %4528 = vmatmul.mubr.bf16.gmra.mxu0 %v3116
      %v4529 = vpop.f32.mrf.mxu0
      %v4530 = vadd.f32 %v4457, %v4529
      %v4531 = vpop.f32.mrf.mxu0
      %v4532 = vadd.f32 %v4459, %v4531
      %v4533 = vpop.f32.mrf.mxu0
      %v4534 = vadd.f32 %v4461, %v4533
      %v4535 = vpop.f32.mrf.mxu0
      %v4536 = vadd.f32 %v4463, %v4535
      %4537 = vmatprep.mubr.bf16.mxu0 %v3151
      %4538 = vmatmul.mubr.bf16.gmra.mxu0 %v3119
      %v4539 = vpop.f32.mrf.mxu0
      %v4540 = vadd.f32 %v4467, %v4539
      %v4541 = vpop.f32.mrf.mxu0
      %v4542 = vadd.f32 %v4469, %v4541
      %v4543 = vpop.f32.mrf.mxu0
      %v4544 = vadd.f32 %v4471, %v4543
      %v4545 = vpop.f32.mrf.mxu0
      %v4546 = vadd.f32 %v4473, %v4545
      %4547 = vdwg.mxu0
      %4548 = vmatprep.subr.bf16.mxu0 %v4232
      %4549 = vmatpush1.bf16.msra.mxu0 %v4231
      %4550 = vmatprep.subr.bf16.mxu0 %v4229
      %4551 = vmatpush1.bf16.msra.mxu0 %v4228
      %4552 = vmatprep.subr.bf16.mxu0 %v4226
      %4553 = vmatpush1.bf16.msra.mxu0 %v4225
      %4554 = vmatprep.subr.bf16.mxu0 %v4223
      %4555 = vmatpush1.bf16.msra.mxu0 %v4222
      %4556 = vmatprep.subr.bf16.mxu0 %v4220
      %4557 = vmatpush1.bf16.msra.mxu0 %v4219
      %4558 = vmatprep.subr.bf16.mxu0 %v4217
      %4559 = vmatpush1.bf16.msra.mxu0 %v4216
      %4560 = vmatprep.subr.bf16.mxu0 %v4214
      %4561 = vmatpush1.bf16.msra.mxu0 %v4213
      %4562 = vmatprep.subr.bf16.mxu0 %v4211
      %4563 = vmatpush1.bf16.msra.mxu0 %v4210
      %4564 = vmatprep.subr.bf16.mxu0 %v4256
      %4565 = vmatpush2.bf16.msra.mxu0 %v4255
      %4566 = vmatprep.subr.bf16.mxu0 %v4253
      %4567 = vmatpush2.bf16.msra.mxu0 %v4252
      %4568 = vmatprep.subr.bf16.mxu0 %v4250
      %4569 = vmatpush2.bf16.msra.mxu0 %v4249
      %4570 = vmatprep.subr.bf16.mxu0 %v4247
      %4571 = vmatpush2.bf16.msra.mxu0 %v4246
      %4572 = vmatprep.subr.bf16.mxu0 %v4244
      %4573 = vmatpush2.bf16.msra.mxu0 %v4243
      %4574 = vmatprep.subr.bf16.mxu0 %v4241
      %4575 = vmatpush2.bf16.msra.mxu0 %v4240
      %4576 = vmatprep.subr.bf16.mxu0 %v4238
      %4577 = vmatpush2.bf16.msra.mxu0 %v4237
      %4578 = vmatprep.subr.bf16.mxu0 %v4235
      %4579 = vmatpush2.bf16.msra.mxu0 %v4234
      %4580 = vmatprep.mubr.bf16.mxu0 %v3414
      %4581 = vmatmul.mubr.bf16.gmra.mxu0 %v3382
      %v4582 = vpop.f32.mrf.mxu0
      %v4583 = vadd.f32 %v4510, %v4582
      %v4584 = vpop.f32.mrf.mxu0
      %v4585 = vadd.f32 %v4512, %v4584
      %v4586 = vpop.f32.mrf.mxu0
      %v4587 = vadd.f32 %v4514, %v4586
      %v4588 = vpop.f32.mrf.mxu0
      %v4589 = vadd.f32 %v4516, %v4588
      %4590 = vmatprep.mubr.bf16.mxu0 %v3417
      %4591 = vmatmul.mubr.bf16.gmra.mxu0 %v3385
      %v4592 = vpop.f32.mrf.mxu0
      %v4593 = vadd.f32 %v4520, %v4592
      %v4594 = vpop.f32.mrf.mxu0
      %v4595 = vadd.f32 %v4522, %v4594
      %v4596 = vpop.f32.mrf.mxu0
      %v4597 = vadd.f32 %v4524, %v4596
      %v4598 = vpop.f32.mrf.mxu0
      %v4599 = vadd.f32 %v4526, %v4598
      %4600 = vmatprep.mubr.bf16.mxu0 %v3420
      %4601 = vmatmul.mubr.bf16.gmra.mxu0 %v3388
      %v4602 = vpop.f32.mrf.mxu0
      %v4603 = vadd.f32 %v4530, %v4602
      %v4604 = vpop.f32.mrf.mxu0
      %v4605 = vadd.f32 %v4532, %v4604
      %v4606 = vpop.f32.mrf.mxu0
      %v4607 = vadd.f32 %v4534, %v4606
      %v4608 = vpop.f32.mrf.mxu0
      %v4609 = vadd.f32 %v4536, %v4608
      %4610 = vmatprep.mubr.bf16.mxu0 %v3423
      %4611 = vmatmul.mubr.bf16.gmra.mxu0 %v3391
      %v4612 = vpop.f32.mrf.mxu0
      %v4613 = vadd.f32 %v4540, %v4612
      %v4614 = vpop.f32.mrf.mxu0
      %v4615 = vadd.f32 %v4542, %v4614
      %v4616 = vpop.f32.mrf.mxu0
      %v4617 = vadd.f32 %v4544, %v4616
      %v4618 = vpop.f32.mrf.mxu0
      %v4619 = vadd.f32 %v4546, %v4618
      %4620 = vdwg.mxu0
      %4621 = vmatprep.subr.bf16.mxu0 0
      %4622 = vmatpush1.bf16.msra.mxu0 %v4137
      %4623 = vmatprep.subr.bf16.mxu0 0
      %4624 = vmatpush1.bf16.msra.mxu0 %v4134
      %4625 = vmatprep.subr.bf16.mxu0 0
      %4626 = vmatpush1.bf16.msra.mxu0 %v4131
      %4627 = vmatprep.subr.bf16.mxu0 0
      %4628 = vmatpush1.bf16.msra.mxu0 %v4128
      %4629 = vmatprep.subr.bf16.mxu0 0
      %4630 = vmatpush1.bf16.msra.mxu0 %v4125
      %4631 = vmatprep.subr.bf16.mxu0 0
      %4632 = vmatpush1.bf16.msra.mxu0 %v4122
      %4633 = vmatprep.subr.bf16.mxu0 0
      %4634 = vmatpush1.bf16.msra.mxu0 %v4119
      %4635 = vmatprep.subr.bf16.mxu0 0
      %4636 = vmatpush1.bf16.msra.mxu0 %v4116
      %4637 = vmatprep.subr.bf16.mxu0 0
      %4638 = vmatpush2.bf16.msra.mxu0 %v4161
      %4639 = vmatprep.subr.bf16.mxu0 0
      %4640 = vmatpush2.bf16.msra.mxu0 %v4158
      %4641 = vmatprep.subr.bf16.mxu0 0
      %4642 = vmatpush2.bf16.msra.mxu0 %v4155
      %4643 = vmatprep.subr.bf16.mxu0 0
      %4644 = vmatpush2.bf16.msra.mxu0 %v4152
      %4645 = vmatprep.subr.bf16.mxu0 0
      %4646 = vmatpush2.bf16.msra.mxu0 %v4149
      %4647 = vmatprep.subr.bf16.mxu0 0
      %4648 = vmatpush2.bf16.msra.mxu0 %v4146
      %4649 = vmatprep.subr.bf16.mxu0 0
      %4650 = vmatpush2.bf16.msra.mxu0 %v4143
      %4651 = vmatprep.subr.bf16.mxu0 0
      %4652 = vmatpush2.bf16.msra.mxu0 %v4140
      %4653 = vmatprep.mubr.bf16.mxu0 %v3078
      %4654 = vmatmul.mubr.bf16.gmra.mxu0 %v3046
      %v4655 = vpop.f32.mrf.mxu0
      %v4656 = vadd.f32 %v3630, %v4655
      %v4657 = vpop.f32.mrf.mxu0
      %v4658 = vpop.f32.mrf.mxu0
      %v4659 = vadd.f32 %v3630, %v4658
      %v4660 = vpop.f32.mrf.mxu0
      %4661 = vmatprep.mubr.bf16.mxu0 %v3081
      %4662 = vmatmul.mubr.bf16.gmra.mxu0 %v3049
      %v4663 = vpop.f32.mrf.mxu0
      %v4664 = vadd.f32 %v3630, %v4663
      %v4665 = vpop.f32.mrf.mxu0
      %v4666 = vpop.f32.mrf.mxu0
      %v4667 = vadd.f32 %v3630, %v4666
      %v4668 = vpop.f32.mrf.mxu0
      %4669 = vmatprep.mubr.bf16.mxu0 %v3084
      %4670 = vmatmul.mubr.bf16.gmra.mxu0 %v3052
      %v4671 = vpop.f32.mrf.mxu0
      %v4672 = vadd.f32 %v3630, %v4671
      %v4673 = vpop.f32.mrf.mxu0
      %v4674 = vpop.f32.mrf.mxu0
      %v4675 = vadd.f32 %v3630, %v4674
      %v4676 = vpop.f32.mrf.mxu0
      %4677 = vmatprep.mubr.bf16.mxu0 %v3087
      %4678 = vmatmul.mubr.bf16.gmra.mxu0 %v3055
      %v4679 = vpop.f32.mrf.mxu0
      %v4680 = vadd.f32 %v3630, %v4679
      %v4681 = vpop.f32.mrf.mxu0
      %v4682 = vpop.f32.mrf.mxu0
      %v4683 = vadd.f32 %v3630, %v4682
      %v4684 = vpop.f32.mrf.mxu0
      %4685 = vdwg.mxu0
      %4686 = vmatprep.subr.bf16.mxu0 0
      %4687 = vmatpush1.bf16.msra.mxu0 %v4185
      %4688 = vmatprep.subr.bf16.mxu0 0
      %4689 = vmatpush1.bf16.msra.mxu0 %v4182
      %4690 = vmatprep.subr.bf16.mxu0 0
      %4691 = vmatpush1.bf16.msra.mxu0 %v4179
      %4692 = vmatprep.subr.bf16.mxu0 0
      %4693 = vmatpush1.bf16.msra.mxu0 %v4176
      %4694 = vmatprep.subr.bf16.mxu0 0
      %4695 = vmatpush1.bf16.msra.mxu0 %v4173
      %4696 = vmatprep.subr.bf16.mxu0 0
      %4697 = vmatpush1.bf16.msra.mxu0 %v4170
      %4698 = vmatprep.subr.bf16.mxu0 0
      %4699 = vmatpush1.bf16.msra.mxu0 %v4167
      %4700 = vmatprep.subr.bf16.mxu0 0
      %4701 = vmatpush1.bf16.msra.mxu0 %v4164
      %4702 = vmatprep.subr.bf16.mxu0 0
      %4703 = vmatpush2.bf16.msra.mxu0 %v4209
      %4704 = vmatprep.subr.bf16.mxu0 0
      %4705 = vmatpush2.bf16.msra.mxu0 %v4206
      %4706 = vmatprep.subr.bf16.mxu0 0
      %4707 = vmatpush2.bf16.msra.mxu0 %v4203
      %4708 = vmatprep.subr.bf16.mxu0 0
      %4709 = vmatpush2.bf16.msra.mxu0 %v4200
      %4710 = vmatprep.subr.bf16.mxu0 0
      %4711 = vmatpush2.bf16.msra.mxu0 %v4197
      %4712 = vmatprep.subr.bf16.mxu0 0
      %4713 = vmatpush2.bf16.msra.mxu0 %v4194
      %4714 = vmatprep.subr.bf16.mxu0 0
      %4715 = vmatpush2.bf16.msra.mxu0 %v4191
      %4716 = vmatprep.subr.bf16.mxu0 0
      %4717 = vmatpush2.bf16.msra.mxu0 %v4188
      %4718 = vmatprep.mubr.bf16.mxu0 %v3142
      %4719 = vmatmul.mubr.bf16.gmra.mxu0 %v3110
      %v4720 = vpop.f32.mrf.mxu0
      %v4721 = vadd.f32 %v4656, %v4720
      %v4722 = vpop.f32.mrf.mxu0
      %v4723 = vpop.f32.mrf.mxu0
      %v4724 = vadd.f32 %v4659, %v4723
      %v4725 = vpop.f32.mrf.mxu0
      %4726 = vmatprep.mubr.bf16.mxu0 %v3145
      %4727 = vmatmul.mubr.bf16.gmra.mxu0 %v3113
      %v4728 = vpop.f32.mrf.mxu0
      %v4729 = vadd.f32 %v4664, %v4728
      %v4730 = vpop.f32.mrf.mxu0
      %v4731 = vpop.f32.mrf.mxu0
      %v4732 = vadd.f32 %v4667, %v4731
      %v4733 = vpop.f32.mrf.mxu0
      %4734 = vmatprep.mubr.bf16.mxu0 %v3148
      %4735 = vmatmul.mubr.bf16.gmra.mxu0 %v3116
      %v4736 = vpop.f32.mrf.mxu0
      %v4737 = vadd.f32 %v4672, %v4736
      %v4738 = vpop.f32.mrf.mxu0
      %v4739 = vpop.f32.mrf.mxu0
      %v4740 = vadd.f32 %v4675, %v4739
      %v4741 = vpop.f32.mrf.mxu0
      %4742 = vmatprep.mubr.bf16.mxu0 %v3151
      %4743 = vmatmul.mubr.bf16.gmra.mxu0 %v3119
      %v4744 = vpop.f32.mrf.mxu0
      %v4745 = vadd.f32 %v4680, %v4744
      %v4746 = vpop.f32.mrf.mxu0
      %v4747 = vpop.f32.mrf.mxu0
      %v4748 = vadd.f32 %v4683, %v4747
      %v4749 = vpop.f32.mrf.mxu0
      %4750 = vdwg.mxu0
      %4751 = vmatprep.subr.bf16.mxu0 0
      %4752 = vmatpush1.bf16.msra.mxu0 %v4233
      %4753 = vmatprep.subr.bf16.mxu0 0
      %4754 = vmatpush1.bf16.msra.mxu0 %v4230
      %4755 = vmatprep.subr.bf16.mxu0 0
      %4756 = vmatpush1.bf16.msra.mxu0 %v4227
      %4757 = vmatprep.subr.bf16.mxu0 0
      %4758 = vmatpush1.bf16.msra.mxu0 %v4224
      %4759 = vmatprep.subr.bf16.mxu0 0
      %4760 = vmatpush1.bf16.msra.mxu0 %v4221
      %4761 = vmatprep.subr.bf16.mxu0 0
      %4762 = vmatpush1.bf16.msra.mxu0 %v4218
      %4763 = vmatprep.subr.bf16.mxu0 0
      %4764 = vmatpush1.bf16.msra.mxu0 %v4215
      %4765 = vmatprep.subr.bf16.mxu0 0
      %4766 = vmatpush1.bf16.msra.mxu0 %v4212
      %4767 = vmatprep.subr.bf16.mxu0 0
      %4768 = vmatpush2.bf16.msra.mxu0 %v4257
      %4769 = vmatprep.subr.bf16.mxu0 0
      %4770 = vmatpush2.bf16.msra.mxu0 %v4254
      %4771 = vmatprep.subr.bf16.mxu0 0
      %4772 = vmatpush2.bf16.msra.mxu0 %v4251
      %4773 = vmatprep.subr.bf16.mxu0 0
      %4774 = vmatpush2.bf16.msra.mxu0 %v4248
      %4775 = vmatprep.subr.bf16.mxu0 0
      %4776 = vmatpush2.bf16.msra.mxu0 %v4245
      %4777 = vmatprep.subr.bf16.mxu0 0
      %4778 = vmatpush2.bf16.msra.mxu0 %v4242
      %4779 = vmatprep.subr.bf16.mxu0 0
      %4780 = vmatpush2.bf16.msra.mxu0 %v4239
      %4781 = vmatprep.subr.bf16.mxu0 0
      %4782 = vmatpush2.bf16.msra.mxu0 %v4236
      %4783 = vmatprep.mubr.bf16.mxu0 %v3414
      %4784 = vmatmul.mubr.bf16.gmra.mxu0 %v3382
      %v4785 = vpop.f32.mrf.mxu0
      %v4786 = vadd.f32 %v4721, %v4785
      %v4787 = vpop.f32.mrf.mxu0
      %v4788 = vpop.f32.mrf.mxu0
      %v4789 = vadd.f32 %v4724, %v4788
      %v4790 = vpop.f32.mrf.mxu0
      %4791 = vmatprep.mubr.bf16.mxu0 %v3417
      %4792 = vmatmul.mubr.bf16.gmra.mxu0 %v3385
      %v4793 = vpop.f32.mrf.mxu0
      %v4794 = vadd.f32 %v4729, %v4793
      %v4795 = vpop.f32.mrf.mxu0
      %v4796 = vpop.f32.mrf.mxu0
      %v4797 = vadd.f32 %v4732, %v4796
      %v4798 = vpop.f32.mrf.mxu0
      %4799 = vmatprep.mubr.bf16.mxu0 %v3420
      %4800 = vmatmul.mubr.bf16.gmra.mxu0 %v3388
      %v4801 = vpop.f32.mrf.mxu0
      %v4802 = vadd.f32 %v4737, %v4801
      %v4803 = vpop.f32.mrf.mxu0
      %v4804 = vpop.f32.mrf.mxu0
      %v4805 = vadd.f32 %v4740, %v4804
      %v4806 = vpop.f32.mrf.mxu0
      %4807 = vmatprep.mubr.bf16.mxu0 %v3423
      %4808 = vmatmul.mubr.bf16.gmra.mxu0 %v3391
      %v4809 = vpop.f32.mrf.mxu0
      %v4810 = vadd.f32 %v4745, %v4809
      %v4811 = vpop.f32.mrf.mxu0
      %v4812 = vpop.f32.mrf.mxu0
      %v4813 = vadd.f32 %v4748, %v4812
      %v4814 = vpop.f32.mrf.mxu0
      %4815 = vdwg.mxu0
      %v4816 = vmax.f32 %v4583, 0.0
      %v4817 = vmax.f32 %v4585, 0.0
      %v4818 = vmax.f32 %v4786, 0.0
      %v4819 = vmax.f32 %v4587, 0.0
      %v4820 = vmax.f32 %v4589, 0.0
      %v4821 = vmax.f32 %v4789, 0.0
      %v4822 = vmax.f32 %v4593, 0.0
      %v4823 = vmax.f32 %v4595, 0.0
      %v4824 = vmax.f32 %v4794, 0.0
      %v4825 = vmax.f32 %v4597, 0.0
      %v4826 = vmax.f32 %v4599, 0.0
      %v4827 = vmax.f32 %v4797, 0.0
      %v4828 = vmax.f32 %v4603, 0.0
      %v4829 = vmax.f32 %v4605, 0.0
      %v4830 = vmax.f32 %v4802, 0.0
      %v4831 = vmax.f32 %v4607, 0.0
      %v4832 = vmax.f32 %v4609, 0.0
      %v4833 = vmax.f32 %v4805, 0.0
      %v4834 = vmax.f32 %v4613, 0.0
      %v4835 = vmax.f32 %v4615, 0.0
      %v4836 = vmax.f32 %v4810, 0.0
      %v4837 = vmax.f32 %v4617, 0.0
      %v4838 = vmax.f32 %v4619, 0.0
      %v4839 = vmax.f32 %v4813, 0.0
      %v4840 = vpack.c.bf16 %v4819, %v4816
      %v4841 = vpack.c.bf16 %v4820, %v4817
      %v4842 = vpack.c.bf16 %v4821, %v4818
      %v4843 = vpack.c.bf16 %v4825, %v4822
      %v4844 = vpack.c.bf16 %v4826, %v4823
      %v4845 = vpack.c.bf16 %v4827, %v4824
      %v4846 = vpack.c.bf16 %v4831, %v4828
      %v4847 = vpack.c.bf16 %v4832, %v4829
      %v4848 = vpack.c.bf16 %v4833, %v4830
      %v4849 = vpack.c.bf16 %v4837, %v4834
      %v4850 = vpack.c.bf16 %v4838, %v4835
      %v4851 = vpack.c.bf16 %v4839, %v4836
      %v4852 = vld [vmem:[%s4] sm:$0xf]
      %v4853 = vld [vmem:[%s4 + $0x4] sm:$0xf]
      %v4854 = vld [vmem:[%s4 + $0x8] sm:$0xf]
      %v4855 = vld [vmem:[%s4 + $0xc] sm:$0xf]
      %v4856 = vld [vmem:[%s4 + $0x10] sm:$0xf]
      %v4857 = vld [vmem:[%s4 + $0x14] sm:$0xf]
      %v4858 = vld [vmem:[%s4 + $0x18] sm:$0xf]
      %v4859 = vld [vmem:[%s4 + $0x1c] sm:$0xf]
      %v4860 = vld [vmem:[%s4 + $0x20] sm:$0xf]
      %v4861 = vld [vmem:[%s4 + $0x24] sm:$0xf]
      %v4862 = vld [vmem:[%s4 + $0x28] sm:$0xf]
      %v4863 = vld [vmem:[%s4 + $0x2c] sm:$0xf]
      %v4864 = vld [vmem:[%s4 + $0x30] sm:$0xf]
      %v4865 = vld [vmem:[%s4 + $0x34] sm:$0xf]
      %v4866 = vld [vmem:[%s4 + $0x38] sm:$0xf]
      %v4867 = vld [vmem:[%s4 + $0x3c] sm:$0xf]
      %v4868 = vld [vmem:[%s4 + $0x40] sm:$0xf]
      %v4869 = vld [vmem:[%s4 + $0x44] sm:$0xf]
      %v4870 = vld [vmem:[%s4 + $0x48] sm:$0xf]
      %v4871 = vld [vmem:[%s4 + $0x4c] sm:$0xf]
      %v4872 = vld [vmem:[%s4 + $0x50] sm:$0xf]
      %v4873 = vld [vmem:[%s4 + $0x54] sm:$0xf]
      %v4874 = vld [vmem:[%s4 + $0x58] sm:$0xf]
      %v4875 = vld [vmem:[%s4 + $0x5c] sm:$0xf]
      %v4876 = vld [vmem:[%s4 + $0x60] sm:$0xf]
      %v4877 = vld [vmem:[%s4 + $0x64] sm:$0xf]
      %v4878 = vld [vmem:[%s4 + $0x68] sm:$0xf]
      %v4879 = vld [vmem:[%s4 + $0x6c] sm:$0xf]
      %v4880 = vld [vmem:[%s4 + $0x70] sm:$0xf]
      %v4881 = vld [vmem:[%s4 + $0x74] sm:$0xf]
      %v4882 = vld [vmem:[%s4 + $0x78] sm:$0xf]
      %v4883 = vld [vmem:[%s4 + $0x7c] sm:$0xf]
      %v4884 = vld [vmem:[%s4 + $0x80] sm:$0xf]
      %v4885 = vld [vmem:[%s4 + $0x84] sm:$0xf]
      %v4886 = vld [vmem:[%s4 + $0x88] sm:$0xf]
      %v4887 = vld [vmem:[%s4 + $0x8c] sm:$0xf]
      %v4888 = vld [vmem:[%s4 + $0x90] sm:$0xf]
      %v4889 = vld [vmem:[%s4 + $0x94] sm:$0xf]
      %v4890 = vld [vmem:[%s4 + $0x98] sm:$0xf]
      %v4891 = vld [vmem:[%s4 + $0x9c] sm:$0xf]
      %v4892 = vld [vmem:[%s4 + $0xa0] sm:$0xf]
      %v4893 = vld [vmem:[%s4 + $0xa4] sm:$0xf]
      %v4894 = vld [vmem:[%s4 + $0xa8] sm:$0xf]
      %v4895 = vld [vmem:[%s4 + $0xac] sm:$0xf]
      %v4896 = vld [vmem:[%s4 + $0xb0] sm:$0xf]
      %v4897 = vld [vmem:[%s4 + $0xb4] sm:$0xf]
      %v4898 = vld [vmem:[%s4 + $0xb8] sm:$0xf]
      %v4899 = vld [vmem:[%s4 + $0xbc] sm:$0xf]
      %v4900 = vld [vmem:[%s5] sm:$0x1]
      %v4902 = vlaneseq
      %v4903 = vshrl.u32 %v4902, 7
      %v4904 = vsub.s32 0, %v4903
      %v4905 = vrot.slane %v4900, %v4904
      %v4955 = vunpack.c.l.b16 %v4852
      %v4956 = vunpack.c.l.b16 %v4853
      %v4957 = vunpack.c.l.b16 %v4854
      %v4958 = vunpack.c.l.b16 %v4855
      %v4959 = vunpack.c.l.b16 %v4856
      %v4960 = vunpack.c.l.b16 %v4857
      %v4961 = vunpack.c.l.b16 %v4858
      %v4962 = vunpack.c.l.b16 %v4859
      %v4963 = vunpack.c.l.b16 %v4860
      %v4964 = vunpack.c.l.b16 %v4861
      %v4965 = vunpack.c.l.b16 %v4862
      %v4966 = vunpack.c.l.b16 %v4863
      %v4967 = vunpack.c.l.b16 %v4864
      %v4968 = vunpack.c.l.b16 %v4865
      %v4969 = vunpack.c.l.b16 %v4866
      %v4970 = vunpack.c.l.b16 %v4867
      %v4971 = vunpack.c.l.b16 %v4868
      %v4972 = vunpack.c.l.b16 %v4869
      %v4973 = vunpack.c.l.b16 %v4870
      %v4974 = vunpack.c.l.b16 %v4871
      %v4975 = vunpack.c.l.b16 %v4872
      %v4976 = vunpack.c.l.b16 %v4873
      %v4977 = vunpack.c.l.b16 %v4874
      %v4978 = vunpack.c.l.b16 %v4875
      %v4979 = vunpack.c.l.b16 %v4876
      %v4980 = vunpack.c.l.b16 %v4877
      %v4981 = vunpack.c.l.b16 %v4878
      %v4982 = vunpack.c.l.b16 %v4879
      %v4983 = vunpack.c.l.b16 %v4880
      %v4984 = vunpack.c.l.b16 %v4881
      %v4985 = vunpack.c.l.b16 %v4882
      %v4986 = vunpack.c.l.b16 %v4883
      %v4987 = vunpack.c.l.b16 %v4884
      %v4988 = vunpack.c.l.b16 %v4885
      %v4989 = vunpack.c.l.b16 %v4886
      %v4990 = vunpack.c.l.b16 %v4887
      %v4991 = vunpack.c.l.b16 %v4888
      %v4992 = vunpack.c.l.b16 %v4889
      %v4993 = vunpack.c.l.b16 %v4890
      %v4994 = vunpack.c.l.b16 %v4891
      %v4995 = vunpack.c.l.b16 %v4892
      %v4996 = vunpack.c.l.b16 %v4893
      %v4997 = vunpack.c.l.b16 %v4894
      %v4998 = vunpack.c.l.b16 %v4895
      %v4999 = vunpack.c.l.b16 %v4896
      %v5000 = vunpack.c.l.b16 %v4897
      %v5001 = vunpack.c.l.b16 %v4898
      %v5002 = vunpack.c.l.b16 %v4899
      %v5003 = vpack.c.b16 %v4956, %v4955
      %v5004 = vpack.c.b16 %v4958, %v4957
      %v5005 = vpack.c.b16 %v4960, %v4959
      %v5006 = vpack.c.b16 %v4962, %v4961
      %v5007 = vpack.c.b16 %v4964, %v4963
      %v5008 = vpack.c.b16 %v4966, %v4965
      %v5009 = vpack.c.b16 %v4968, %v4967
      %v5010 = vpack.c.b16 %v4970, %v4969
      %v5011 = vpack.c.b16 %v4972, %v4971
      %v5012 = vpack.c.b16 %v4974, %v4973
      %v5013 = vpack.c.b16 %v4976, %v4975
      %v5014 = vpack.c.b16 %v4978, %v4977
      %v5015 = vpack.c.b16 %v4980, %v4979
      %v5016 = vpack.c.b16 %v4982, %v4981
      %v5017 = vpack.c.b16 %v4984, %v4983
      %v5018 = vpack.c.b16 %v4986, %v4985
      %v5019 = vpack.c.b16 %v4988, %v4987
      %v5020 = vpack.c.b16 %v4990, %v4989
      %v5021 = vpack.c.b16 %v4992, %v4991
      %v5022 = vpack.c.b16 %v4994, %v4993
      %v5023 = vpack.c.b16 %v4996, %v4995
      %v5024 = vpack.c.b16 %v4998, %v4997
      %v5025 = vpack.c.b16 %v5000, %v4999
      %v5026 = vpack.c.b16 %v5002, %v5001
      %5051 = vmatprep.subr.bf16.mxu0 0
      %5052 = vmatpush1.bf16.msra.mxu0 %v5010
      %5053 = vmatprep.subr.bf16.mxu0 0
      %5054 = vmatpush1.bf16.msra.mxu0 %v5009
      %5055 = vmatprep.subr.bf16.mxu0 0
      %5056 = vmatpush1.bf16.msra.mxu0 %v5008
      %5057 = vmatprep.subr.bf16.mxu0 0
      %5058 = vmatpush1.bf16.msra.mxu0 %v5007
      %5059 = vmatprep.subr.bf16.mxu0 0
      %5060 = vmatpush1.bf16.msra.mxu0 %v5006
      %5061 = vmatprep.subr.bf16.mxu0 0
      %5062 = vmatpush1.bf16.msra.mxu0 %v5005
      %5063 = vmatprep.subr.bf16.mxu0 0
      %5064 = vmatpush1.bf16.msra.mxu0 %v5004
      %5065 = vmatprep.subr.bf16.mxu0 0
      %5066 = vmatpush1.bf16.msra.mxu0 %v5003
      %5067 = vmatprep.subr.bf16.mxu0 0
      %5068 = vmatpush2.bf16.msra.mxu0 %v5018
      %5069 = vmatprep.subr.bf16.mxu0 0
      %5070 = vmatpush2.bf16.msra.mxu0 %v5017
      %5071 = vmatprep.subr.bf16.mxu0 0
      %5072 = vmatpush2.bf16.msra.mxu0 %v5016
      %5073 = vmatprep.subr.bf16.mxu0 0
      %5074 = vmatpush2.bf16.msra.mxu0 %v5015
      %5075 = vmatprep.subr.bf16.mxu0 0
      %5076 = vmatpush2.bf16.msra.mxu0 %v5014
      %5077 = vmatprep.subr.bf16.mxu0 0
      %5078 = vmatpush2.bf16.msra.mxu0 %v5013
      %5079 = vmatprep.subr.bf16.mxu0 0
      %5080 = vmatpush2.bf16.msra.mxu0 %v5012
      %5081 = vmatprep.subr.bf16.mxu0 0
      %5082 = vmatpush2.bf16.msra.mxu0 %v5011
      %5083 = vmatprep.mubr.bf16.mxu0 %v4841
      %5084 = vmatmul.mubr.bf16.gmra.mxu0 %v4840
      %v5085 = vpop.f32.mrf.mxu0
      %v5086 = vadd.f32 %v4905, %v5085
      %v5087 = vpop.f32.mrf.mxu0
      %v5088 = vpop.f32.mrf.mxu0
      %v5089 = vadd.f32 %v4905, %v5088
      %v5090 = vpop.f32.mrf.mxu0
      %5091 = vmatprep.mubr.bf16.mxu0 %v4844
      %5092 = vmatmul.mubr.bf16.gmra.mxu0 %v4843
      %v5093 = vpop.f32.mrf.mxu0
      %v5094 = vadd.f32 %v4905, %v5093
      %v5095 = vpop.f32.mrf.mxu0
      %v5096 = vpop.f32.mrf.mxu0
      %v5097 = vadd.f32 %v4905, %v5096
      %v5098 = vpop.f32.mrf.mxu0
      %5099 = vmatprep.mubr.bf16.mxu0 %v4847
      %5100 = vmatmul.mubr.bf16.gmra.mxu0 %v4846
      %v5101 = vpop.f32.mrf.mxu0
      %v5102 = vadd.f32 %v4905, %v5101
      %v5103 = vpop.f32.mrf.mxu0
      %v5104 = vpop.f32.mrf.mxu0
      %v5105 = vadd.f32 %v4905, %v5104
      %v5106 = vpop.f32.mrf.mxu0
      %5107 = vmatprep.mubr.bf16.mxu0 %v4850
      %5108 = vmatmul.mubr.bf16.gmra.mxu0 %v4849
      %v5109 = vpop.f32.mrf.mxu0
      %v5110 = vadd.f32 %v4905, %v5109
      %v5111 = vpop.f32.mrf.mxu0
      %v5112 = vpop.f32.mrf.mxu0
      %v5113 = vadd.f32 %v4905, %v5112
      %v5114 = vpop.f32.mrf.mxu0
      %5115 = vdwg.mxu0
      %5116 = vmatprep.subr.bf16.mxu0 0
      %5117 = vmatpush1.bf16.msra.mxu0 %v5026
      %5118 = vmatprep.subr.bf16.mxu0 0
      %5119 = vmatpush1.bf16.msra.mxu0 %v5025
      %5120 = vmatprep.subr.bf16.mxu0 0
      %5121 = vmatpush1.bf16.msra.mxu0 %v5024
      %5122 = vmatprep.subr.bf16.mxu0 0
      %5123 = vmatpush1.bf16.msra.mxu0 %v5023
      %5124 = vmatprep.subr.bf16.mxu0 0
      %5125 = vmatpush1.bf16.msra.mxu0 %v5022
      %5126 = vmatprep.subr.bf16.mxu0 0
      %5127 = vmatpush1.bf16.msra.mxu0 %v5021
      %5128 = vmatprep.subr.bf16.mxu0 0
      %5129 = vmatpush1.bf16.msra.mxu0 %v5020
      %5130 = vmatprep.subr.bf16.mxu0 0
      %5131 = vmatpush1.bf16.msra.mxu0 %v5019
      %5132 = vmatprep.subr.bf16.mxu0 0
      %5133 = vmatpush2.bf16.msra.mxu0 0
      %5134 = vmatprep.subr.bf16.mxu0 0
      %5135 = vmatpush2.bf16.msra.mxu0 0
      %5136 = vmatprep.subr.bf16.mxu0 0
      %5137 = vmatpush2.bf16.msra.mxu0 0
      %5138 = vmatprep.subr.bf16.mxu0 0
      %5139 = vmatpush2.bf16.msra.mxu0 0
      %5140 = vmatprep.subr.bf16.mxu0 0
      %5141 = vmatpush2.bf16.msra.mxu0 0
      %5142 = vmatprep.subr.bf16.mxu0 0
      %5143 = vmatpush2.bf16.msra.mxu0 0
      %5144 = vmatprep.subr.bf16.mxu0 0
      %5145 = vmatpush2.bf16.msra.mxu0 0
      %5146 = vmatprep.subr.bf16.mxu0 0
      %5147 = vmatpush2.bf16.msra.mxu0 0
      %5148 = vmatprep.mubr.bf16.mxu0 0
      %5149 = vmatmul.mubr.bf16.gmra.mxu0 %v4842
      %v5150 = vpop.f32.mrf.mxu0
      %v5151 = vadd.f32 %v5086, %v5150
      %v5152 = vpop.f32.mrf.mxu0
      %v5153 = vpop.f32.mrf.mxu0
      %v5154 = vadd.f32 %v5089, %v5153
      %v5155 = vpop.f32.mrf.mxu0
      %5156 = vmatprep.mubr.bf16.mxu0 0
      %5157 = vmatmul.mubr.bf16.gmra.mxu0 %v4845
      %v5158 = vpop.f32.mrf.mxu0
      %v5159 = vadd.f32 %v5094, %v5158
      %v5160 = vpop.f32.mrf.mxu0
      %v5161 = vpop.f32.mrf.mxu0
      %v5162 = vadd.f32 %v5097, %v5161
      %v5163 = vpop.f32.mrf.mxu0
      %5164 = vmatprep.mubr.bf16.mxu0 0
      %5165 = vmatmul.mubr.bf16.gmra.mxu0 %v4848
      %v5166 = vpop.f32.mrf.mxu0
      %v5167 = vadd.f32 %v5102, %v5166
      %v5168 = vpop.f32.mrf.mxu0
      %v5169 = vpop.f32.mrf.mxu0
      %v5170 = vadd.f32 %v5105, %v5169
      %v5171 = vpop.f32.mrf.mxu0
      %5172 = vmatprep.mubr.bf16.mxu0 0
      %5173 = vmatmul.mubr.bf16.gmra.mxu0 %v4851
      %v5174 = vpop.f32.mrf.mxu0
      %v5175 = vadd.f32 %v5110, %v5174
      %v5176 = vpop.f32.mrf.mxu0
      %v5177 = vpop.f32.mrf.mxu0
      %v5178 = vadd.f32 %v5113, %v5177
      %v5179 = vpop.f32.mrf.mxu0
      %5180 = vdwg.mxu0
      %5181 = vst.msk [vmem:[%s275] sm:$0xff] %vm3022, %v5151
      %5182 = vst.msk [vmem:[%s275 + $0x8] sm:$0xff] %vm3022, %v5154
      %5183 = vst.msk [vmem:[%s275 + $0x10] sm:$0xff] %vm3022, %v5159
      %5184 = vst.msk [vmem:[%s275 + $0x18] sm:$0xff] %vm3022, %v5162
      %5185 = vst.msk [vmem:[%s275 + $0x20] sm:$0xff] %vm3022, %v5167
      %5186 = vst.msk [vmem:[%s275 + $0x28] sm:$0xff] %vm3022, %v5170
      %5187 = vst.msk [vmem:[%s275 + $0x30] sm:$0xff] %vm3022, %v5175
      %5188 = vst.msk [vmem:[%s275 + $0x38] sm:$0xff] %vm3022, %v5178
      %s5189 = smul.u32 8, %s17
      %p5190 = scmp.lt.s32.totalorder %s5189, 31
      %s5191 = scalar_select %p5190, %s5189, 31
      %s5192 = smul.addr %s5191, 8
      %s5193 = scalar_lea.vmem %s6, %s5192
      // Predicated region
      $region45: #{a_call__.1} parent=43 // pred_check
        %p5194 = pneg %p171
      $region46: #{a_call__.1} parent=43 // pred_check_branch
        %5196 = sbr.rel (%p5194) target = $region48
      $region47: #{a_call__.1} parent=43 // pred_region
        %s5197 = smul.u32 8, %s17
      $region48: #{a_call__.1} parent=43 // pred_fallthru
        _
    $region44: #{a_call__.1} parent=5 // pred_fallthru
      _
    %p5198 = scmp.le.s32.totalorder 2, %s12
    // Predicated region
    $region49: #{a_call__.1} parent=5 // pred_check
      %p5199 = pneg %p5198
    $region50: #{a_call__.1} parent=5 // pred_check_branch
      %5201 = sbr.rel (%p5199) target = $region52
    $region51: #{a_call__.1} parent=5 // pred_region
      %s5202 = ssub.s32 %s12, 2
      // Predicated region
      $region53: #{a_call__.1} parent=51 // pred_check
        %p5203 = pneg %p177
      $region54: #{a_call__.1} parent=51 // pred_check_branch
        %5205 = sbr.rel (%p5203) target = $region56
      $region55: #{a_call__.1} parent=51 // pred_region
        %s5206 = smul.u32 8, %s18
        %p5207 = scmp.lt.s32.totalorder %s5206, 31
        %s5208 = scalar_select %p5207, %s5206, 31
        %s5209 = smul.addr %s5208, 8
        %s5210 = scalar_lea.vmem %s6, %s5209
      $region56: #{a_call__.1} parent=51 // pred_fallthru
        _
    $region52: #{a_call__.1} parent=5 // pred_fallthru
      _
  $region6: #{a_call__.1} parent=0 // loop_footer
    %s16 = sadd.s32 1, %s12
  $region7: #{a_call__.1} parent=0 // loop_footer_branch
    %11 = sbr.rel target = $region3
  $region8: #{a_call__.1} parent=0 // loop_exit
    _

</llo_original>
